<compile_context>
chip_gen: v6e
topology: v6e:2x2x1
jax: 0.10.0
libtpu: 0.0.40
codegen_flags: <defaults>
</compile_context>

<pallas_src>
import functools

import jax
import jax.numpy as jnp
import numpy as np
from jax import lax
from jax.experimental import pallas as pl
from jax.experimental.pallas import tpu as pltpu


def _round_up(x, m):
    return (x + m - 1) // m * m


# ----------------------------------------------------------------------------
# Fused kernel.  Activation layout: (C, L) with channels on sublanes and the
# flattened, image-major spatial extent L = images_per_step * H * W on lanes.
# ----------------------------------------------------------------------------
def _attention_kernel(x_ref, masks_ref, sel_ref, selT_ref,
                      w1m_ref, b1_ref, w2m_ref, b2_ref, wfm_ref, bf_ref,
                      sw1_ref, sw2_ref, o_ref, *, H, W, act_dtype):
    HW = H * W
    CS, L = x_ref.shape            # small (padded) channel count, lane extent

    # Static lane-rotation amounts for the 9 taps (dy, dx in {-1,0,1}).  The
    # resident masks zero every lane whose source pixel falls outside its own
    # image, which also kills the cross-image wrap introduced by batch folding.
    shifts = [(-(dy * W + dx)) % L for dy in (-1, 0, 1) for dx in (-1, 0, 1)]
    CENTER = 4

    def tap(x, t):
        """Masked lane rotation of a (CS, L) tile for tap t (XLU + VPU)."""
        if t == CENTER:
            return x
        return pltpu.roll(x, shifts[t], axis=1) * masks_ref[t]

    def conv_small_in(x, wm_ref, b_ref, relu):
        """3x3 conv whose INPUT is the small (8-row) side: roll the input,
        build a (9*CS, L) patch matrix, ONE MXU dot.  x: (CS, L) act_dtype."""
        patches = jnp.concatenate([tap(x, t) for t in range(9)], axis=0)
        acc = jnp.dot(wm_ref[...], patches,
                      preferred_element_type=jnp.float32) + b_ref[...]
        return jnp.maximum(acc, 0.0) if relu else acc

    def conv_big_in(x, wm_ref, b_ref, res):
        """3x3 conv whose INPUT is the big (64-row) side: one K=64 dot emits
        all nine per-tap outputs stacked on sublanes, then the SMALL (CS, L)
        per-tap slices are rolled/masked/accumulated (no (576, L) patch
        matrix).  x: (64, L) act_dtype; returns (CS, L) f32 (ReLU + residual)."""
        z = jnp.dot(wm_ref[...], x,
                    preferred_element_type=jnp.float32).astype(act_dtype)
        acc = b_ref[...]                                   # (CS, L) f32
        for t in range(9):
            acc = acc + tap(z[CS * t:CS * (t + 1), :], t)
        return jnp.maximum(acc, 0.0) + res

    x_act = x_ref[...]                                     # (CS, L) act_dtype
    x_f32 = x_act.astype(jnp.float32)                      # residual kept f32

    # --- Convv1 -------------------------------------------------------------
    a = conv_small_in(x_act, w1m_ref, b1_ref, relu=True)   # (64, L) f32

    # --- SEAttention: per-image GAP -> FC -> ReLU -> FC -> sigmoid -> scale --
    # sel/selT map lanes <-> images so pooling stays per-image with several
    # images folded on the lane axis (MXU is idle, so the selector dots are
    # effectively free and avoid any cross-lane XLU reshuffle).
    pooled = jnp.dot(a, selT_ref[...],
                     preferred_element_type=jnp.float32) * (1.0 / HW)  # (64, P)
    hid = jnp.maximum(jnp.dot(sw1_ref[...], pooled,
                              preferred_element_type=jnp.float32), 0.0)
    sc = jax.nn.sigmoid(jnp.dot(sw2_ref[...], hid,
                                preferred_element_type=jnp.float32))   # (64, P)
    a = a * jnp.dot(sc, sel_ref[...], preferred_element_type=jnp.float32)

    # --- Convv2 (+x), Convv1, Convv2 (+x), final ----------------------------
    a = conv_big_in(a.astype(act_dtype), w2m_ref, b2_ref, res=x_f32)   # (8, L)
    a = conv_small_in(a.astype(act_dtype), w1m_ref, b1_ref, relu=True)
    a = conv_big_in(a.astype(act_dtype), w2m_ref, b2_ref, res=x_f32)
    out = conv_small_in(a.astype(act_dtype), wfm_ref, bf_ref, relu=False)

    o_ref[...] = out.astype(o_ref.dtype)


# ----------------------------------------------------------------------------
# Wrapper: takes the PyTorch-layout NCHW input, prepares resident constants
# (im2col/per-tap weight matrices, lane-wide biases, boundary masks, SE
# pooling selectors) once, and launches the single fused kernel.
# ----------------------------------------------------------------------------
@functools.partial(jax.jit, static_argnames=("images_per_step", "act_dtype"))
def attention_forward(x_nchw, params, *, images_per_step=1,
                      act_dtype=jnp.float32):
    N, Cin, H, W = x_nchw.shape
    HW = H * W
    Cmid = params["conv1_w"].shape[-1]              # 64
    Cout = params["final_w"].shape[-1]
    Chid = params["se_w1"].shape[-1]                # 64 // 7 = 9

    Cin_p = _round_up(Cin, 8)                       # pad small channel dims
    Cout_p = _round_up(Cout, 8)                     # tile-aligned final store
    Chid_p = _round_up(Chid, 8)

    P = max(1, min(images_per_step, N))             # images folded per step
    S = -(-N // P)                                  # grid steps
    N_pad = S * P
    L = P * HW                                      # lanes per grid step

    # --- activations: NCHW -> (steps, C, P*HW), channels padded to 8 --------
    x = x_nchw.reshape(N, Cin, HW).astype(jnp.float32)
    x = jnp.pad(x, ((0, N_pad - N), (0, Cin_p - Cin), (0, 0)))
    x = x.reshape(S, P, Cin_p, HW).transpose(0, 2, 1, 3).reshape(S, Cin_p, L)
    x = x.astype(act_dtype)

    # --- resident constants --------------------------------------------------
    # 9 boundary masks, tiled per image, pre-broadcast to 8 sublanes.
    li = np.arange(L) % HW
    hh, ww = li // W, li % W
    masks_np = np.empty((9, L), np.float32)
    t = 0
    for dy in (-1, 0, 1):
        for dx in (-1, 0, 1):
            ok = np.ones(L, bool)
            if dy:
                ok &= (hh + dy >= 0) & (hh + dy < H)
            if dx:
                ok &= (ww + dx >= 0) & (ww + dx < W)
            masks_np[t] = ok
            t += 1
    masks = jnp.asarray(np.broadcast_to(masks_np[:, None, :], (9, Cin_p, L)),
                        dtype=act_dtype)

    # Per-image pooling / broadcast selectors for the SE block.
    img = np.arange(L) // HW
    sel_np = (img[None, :] == np.arange(P)[:, None]).astype(np.float32)
    sel = jnp.asarray(sel_np)                              # (P, L)
    selT = jnp.asarray(np.ascontiguousarray(sel_np.T))     # (L, P)

    def conv_wmat(w_hwio, cin_pad, cout_pad):              # (cout_pad, 9*cin_pad)
        kh, kw, ci, co = w_hwio.shape
        w = jnp.pad(w_hwio, ((0, 0), (0, 0), (0, cin_pad - ci), (0, 0)))
        wm = w.reshape(kh * kw * cin_pad, co).T
        return jnp.pad(wm, ((0, cout_pad - co), (0, 0))).astype(act_dtype)

    w1m = conv_wmat(params["conv1_w"], Cin_p, Cmid)        # (64, 9*Cin_p)
    wfm = conv_wmat(params["final_w"], Cin_p, Cout_p)      # (8,  9*Cin_p)

    # Convv2 weights in per-tap layout (9*Cin_p, 64) for the roll-output path.
    w2 = jnp.pad(params["conv2_w"], ((0, 0), (0, 0), (0, 0), (0, Cin_p - Cin)))
    w2m = jnp.transpose(w2.reshape(9, Cmid, Cin_p), (0, 2, 1))
    w2m = w2m.reshape(9 * Cin_p, Cmid).astype(act_dtype)

    def bias_full(b, c_pad):                               # lane-wide f32 bias
        b = jnp.pad(b.astype(jnp.float32), (0, c_pad - b.shape[0]))
        return jnp.broadcast_to(b[:, None], (c_pad, L))

    b1 = bias_full(params["conv1_b"], Cmid)
    b2 = bias_full(params["conv2_b"], Cin_p)
    bf = bias_full(params["final_b"], Cout_p)

    sw1 = jnp.pad(params["se_w1"].T,
                  ((0, Chid_p - Chid), (0, 0))).astype(jnp.float32)  # (16, 64)
    sw2 = jnp.pad(params["se_w2"].T,
                  ((0, 0), (0, Chid_p - Chid))).astype(jnp.float32)  # (64, 16)

    def _res(a):   # whole-array block, resident across grid steps
        return pl.BlockSpec(a.shape, lambda s, nd=a.ndim: (0,) * nd)

    kernel = functools.partial(_attention_kernel, H=H, W=W, act_dtype=act_dtype)

    out = pl.pallas_call(
        kernel,
        out_shape=jax.ShapeDtypeStruct((S, Cout_p, L), jnp.float32),
        grid=(S,),
        in_specs=[
            pl.BlockSpec((None, Cin_p, L), lambda s: (s, 0, 0)),
            _res(masks), _res(sel), _res(selT),
            _res(w1m), _res(b1), _res(w2m), _res(b2), _res(wfm), _res(bf),
            _res(sw1), _res(sw2),
        ],
        out_specs=pl.BlockSpec((None, Cout_p, L), lambda s: (s, 0, 0)),
        compiler_params=pltpu.CompilerParams(
            dimension_semantics=("parallel",)),
    )(x, masks, sel, selT, w1m, b1, w2m, b2, wfm, bf, sw1, sw2)

    out = out.reshape(S, Cout_p, P, HW).transpose(0, 2, 1, 3)
    out = out.reshape(N_pad, Cout_p, HW)[:N, :Cout].reshape(N, Cout, H, W)
    return out


def _pick_config(batch, hw):
    """Choose activation dtype and images-per-grid-step for the local TPU."""
    kind = ""
    try:
        kind = jax.devices()[0].device_kind.lower()
    except Exception:
        pass
    # bf16 roll/mask/matmul path only where the VPU/MXU are bf16-native.
    bf16_native = ("v6" in kind) or ("v7" in kind) or ("tpu7" in kind)
    act_dtype = jnp.bfloat16 if bf16_native else jnp.float32
    max_ips = max(1, 2048 // hw)             # keep per-step lane extent modest
    two_cores = ("v7" in kind) or ("tpu7" in kind)
    ips = max(1, batch // 2) if (two_cores and batch > 1) else batch
    return act_dtype, max(1, min(ips, max_ips))


# ----------------------------------------------------------------------------
# Pure-JAX reference (same math, lax.conv) for a correctness check.
# ----------------------------------------------------------------------------
def _ref_conv(x_nhwc, w, b, relu):
    y = lax.conv_general_dilated(
        x_nhwc, w, window_strides=(1, 1), padding="SAME",
        dimension_numbers=("NHWC", "HWIO", "NHWC"),
        precision=lax.Precision.HIGHEST) + b
    return jnp.maximum(y, 0.0) if relu else y


def attention_ref(x_nchw, p):
    x = jnp.transpose(x_nchw, (0, 2, 3, 1))
    x1 = _ref_conv(x, p["conv1_w"], p["conv1_b"], True)
    y = jnp.mean(x1, axis=(1, 2))
    h = jnp.maximum(y @ p["se_w1"], 0.0)
    s = jax.nn.sigmoid(h @ p["se_w2"])
    x1 = x1 * s[:, None, None, :]
    x1 = _ref_conv(x1, p["conv2_w"], p["conv2_b"], True) + x
    x1 = _ref_conv(x1, p["conv1_w"], p["conv1_b"], True)
    x1 = _ref_conv(x1, p["conv2_w"], p["conv2_b"], True) + x
    out = _ref_conv(x1, p["final_w"], p["final_b"], False)
    return jnp.transpose(out, (0, 3, 1, 2))


if __name__ == "__main__":
    # Shapes implied by the module: in_channels=4, out_channels=4, SE hidden =
    # 64 // 7 = 9, spatial 16x16, batch 2.  Input is NCHW like PyTorch.
    N, H, W = 2, 16, 16
    in_ch, out_ch, mid_ch = 4, 4, 64
    se_hidden = mid_ch // 7  # = 9

    key = jax.random.PRNGKey(0)
    ks = jax.random.split(key, 9)
    params = {
        "conv1_w": 0.1 * jax.random.normal(ks[0], (3, 3, in_ch, mid_ch), jnp.float32),
        "conv1_b": 0.1 * jax.random.normal(ks[1], (mid_ch,), jnp.float32),
        "conv2_w": 0.1 * jax.random.normal(ks[2], (3, 3, mid_ch, in_ch), jnp.float32),
        "conv2_b": 0.1 * jax.random.normal(ks[3], (in_ch,), jnp.float32),
        "final_w": 0.1 * jax.random.normal(ks[4], (3, 3, in_ch, out_ch), jnp.float32),
        "final_b": 0.1 * jax.random.normal(ks[5], (out_ch,), jnp.float32),
        "se_w1": 0.1 * jax.random.normal(ks[6], (mid_ch, se_hidden), jnp.float32),
        "se_w2": 0.1 * jax.random.normal(ks[7], (se_hidden, mid_ch), jnp.float32),
    }
    x_nchw = jax.random.normal(ks[8], (N, in_ch, H, W), jnp.float32)

    act_dtype, ips = _pick_config(N, H * W)
    out = jax.block_until_ready(
        attention_forward(x_nchw, params, images_per_step=ips,
                          act_dtype=act_dtype))
    ref = jax.block_until_ready(attention_ref(x_nchw, params))

    tol = 1e-3 if act_dtype == jnp.float32 else 5e-2  # bf16 path needs slack
    np.testing.assert_allclose(np.asarray(out), np.asarray(ref),
                               rtol=tol, atol=tol)
    assert out.shape == (N, out_ch, H, W)
    print("KERNEL_OK")
</pallas_src>

<mosaic_0001>
module attributes {stable_mosaic.version = 11 : i64} {
  func.func @_attention_kernel(%arg0: i32, %arg1: memref<1x8x512xf32, #tpu.memory_space<vmem>>, %arg2: memref<9x8x512xf32, #tpu.memory_space<vmem>>, %arg3: memref<2x512xf32, #tpu.memory_space<vmem>>, %arg4: memref<512x2xf32, #tpu.memory_space<vmem>>, %arg5: memref<64x72xf32, #tpu.memory_space<vmem>>, %arg6: memref<64x512xf32, #tpu.memory_space<vmem>>, %arg7: memref<72x64xf32, #tpu.memory_space<vmem>>, %arg8: memref<8x512xf32, #tpu.memory_space<vmem>>, %arg9: memref<8x72xf32, #tpu.memory_space<vmem>>, %arg10: memref<8x512xf32, #tpu.memory_space<vmem>>, %arg11: memref<16x64xf32, #tpu.memory_space<vmem>>, %arg12: memref<64x16xf32, #tpu.memory_space<vmem>>, %arg13: memref<1x8x512xf32, #tpu.memory_space<vmem>>) attributes {dimension_semantics = [#tpu.dimension_semantics<parallel>], iteration_bounds = array<i64: 1>, scalar_prefetch = 0 : i64, scratch_operands = 0 : i64, tpu.core_type = #tpu.core_type<tc>, window_params = [{transform_indices = @transform_0, window_bounds = array<i64: 1, 8, 512>}, {pipeline_mode = #tpu.pipeline_mode<synchronous>, transform_indices = @transform_1, window_bounds = array<i64: 9, 8, 512>}, {pipeline_mode = #tpu.pipeline_mode<synchronous>, transform_indices = @transform_2, window_bounds = array<i64: 2, 512>}, {pipeline_mode = #tpu.pipeline_mode<synchronous>, transform_indices = @transform_3, window_bounds = array<i64: 512, 2>}, {pipeline_mode = #tpu.pipeline_mode<synchronous>, transform_indices = @transform_4, window_bounds = array<i64: 64, 72>}, {pipeline_mode = #tpu.pipeline_mode<synchronous>, transform_indices = @transform_5, window_bounds = array<i64: 64, 512>}, {pipeline_mode = #tpu.pipeline_mode<synchronous>, transform_indices = @transform_6, window_bounds = array<i64: 72, 64>}, {pipeline_mode = #tpu.pipeline_mode<synchronous>, transform_indices = @transform_7, window_bounds = array<i64: 8, 512>}, {pipeline_mode = #tpu.pipeline_mode<synchronous>, transform_indices = @transform_8, window_bounds = array<i64: 8, 72>}, {pipeline_mode = #tpu.pipeline_mode<synchronous>, transform_indices = @transform_9, window_bounds = array<i64: 8, 512>}, {pipeline_mode = #tpu.pipeline_mode<synchronous>, transform_indices = @transform_10, window_bounds = array<i64: 16, 64>}, {pipeline_mode = #tpu.pipeline_mode<synchronous>, transform_indices = @transform_11, window_bounds = array<i64: 64, 16>}, {transform_indices = @transform_12, window_bounds = array<i64: 1, 8, 512>}]} {
    %c0 = arith.constant 0 : index
    %c0_0 = arith.constant 0 : index
    %c0_1 = arith.constant 0 : index
    %0 = vector.load %arg1[%c0, %c0_0, %c0_1] : memref<1x8x512xf32, #tpu.memory_space<vmem>>, vector<1x8x512xf32>
    %1 = vector.shape_cast %0 : vector<1x8x512xf32> to vector<8x512xf32>
    %c17_i32 = arith.constant 17 : i32
    %2 = tpu.dynamic_rotate %1 by %c17_i32 dim 1 : vector<8x512xf32>, i32 -> vector<8x512xf32>
    %c0_2 = arith.constant 0 : index
    %c0_3 = arith.constant 0 : index
    %c0_4 = arith.constant 0 : index
    %3 = vector.load %arg2[%c0_2, %c0_3, %c0_4] : memref<9x8x512xf32, #tpu.memory_space<vmem>>, vector<1x8x512xf32>
    %4 = vector.shape_cast %3 : vector<1x8x512xf32> to vector<8x512xf32>
    %5 = arith.mulf %2, %4 : vector<8x512xf32>
    %c16_i32 = arith.constant 16 : i32
    %6 = tpu.dynamic_rotate %1 by %c16_i32 dim 1 : vector<8x512xf32>, i32 -> vector<8x512xf32>
    %c1 = arith.constant 1 : index
    %c0_5 = arith.constant 0 : index
    %c0_6 = arith.constant 0 : index
    %7 = vector.load %arg2[%c1, %c0_5, %c0_6] : memref<9x8x512xf32, #tpu.memory_space<vmem>>, vector<1x8x512xf32>
    %8 = vector.shape_cast %7 : vector<1x8x512xf32> to vector<8x512xf32>
    %9 = arith.mulf %6, %8 : vector<8x512xf32>
    %c15_i32 = arith.constant 15 : i32
    %10 = tpu.dynamic_rotate %1 by %c15_i32 dim 1 : vector<8x512xf32>, i32 -> vector<8x512xf32>
    %c2 = arith.constant 2 : index
    %c0_7 = arith.constant 0 : index
    %c0_8 = arith.constant 0 : index
    %11 = vector.load %arg2[%c2, %c0_7, %c0_8] : memref<9x8x512xf32, #tpu.memory_space<vmem>>, vector<1x8x512xf32>
    %12 = vector.shape_cast %11 : vector<1x8x512xf32> to vector<8x512xf32>
    %13 = arith.mulf %10, %12 : vector<8x512xf32>
    %c1_i32 = arith.constant 1 : i32
    %14 = tpu.dynamic_rotate %1 by %c1_i32 dim 1 : vector<8x512xf32>, i32 -> vector<8x512xf32>
    %c3 = arith.constant 3 : index
    %c0_9 = arith.constant 0 : index
    %c0_10 = arith.constant 0 : index
    %15 = vector.load %arg2[%c3, %c0_9, %c0_10] : memref<9x8x512xf32, #tpu.memory_space<vmem>>, vector<1x8x512xf32>
    %16 = vector.shape_cast %15 : vector<1x8x512xf32> to vector<8x512xf32>
    %17 = arith.mulf %14, %16 : vector<8x512xf32>
    %c511_i32 = arith.constant 511 : i32
    %18 = tpu.dynamic_rotate %1 by %c511_i32 dim 1 : vector<8x512xf32>, i32 -> vector<8x512xf32>
    %c5 = arith.constant 5 : index
    %c0_11 = arith.constant 0 : index
    %c0_12 = arith.constant 0 : index
    %19 = vector.load %arg2[%c5, %c0_11, %c0_12] : memref<9x8x512xf32, #tpu.memory_space<vmem>>, vector<1x8x512xf32>
    %20 = vector.shape_cast %19 : vector<1x8x512xf32> to vector<8x512xf32>
    %21 = arith.mulf %18, %20 : vector<8x512xf32>
    %c497_i32 = arith.constant 497 : i32
    %22 = tpu.dynamic_rotate %1 by %c497_i32 dim 1 : vector<8x512xf32>, i32 -> vector<8x512xf32>
    %c6 = arith.constant 6 : index
    %c0_13 = arith.constant 0 : index
    %c0_14 = arith.constant 0 : index
    %23 = vector.load %arg2[%c6, %c0_13, %c0_14] : memref<9x8x512xf32, #tpu.memory_space<vmem>>, vector<1x8x512xf32>
    %24 = vector.shape_cast %23 : vector<1x8x512xf32> to vector<8x512xf32>
    %25 = arith.mulf %22, %24 : vector<8x512xf32>
    %c496_i32 = arith.constant 496 : i32
    %26 = tpu.dynamic_rotate %1 by %c496_i32 dim 1 : vector<8x512xf32>, i32 -> vector<8x512xf32>
    %c7 = arith.constant 7 : index
    %c0_15 = arith.constant 0 : index
    %c0_16 = arith.constant 0 : index
    %27 = vector.load %arg2[%c7, %c0_15, %c0_16] : memref<9x8x512xf32, #tpu.memory_space<vmem>>, vector<1x8x512xf32>
    %28 = vector.shape_cast %27 : vector<1x8x512xf32> to vector<8x512xf32>
    %29 = arith.mulf %26, %28 : vector<8x512xf32>
    %c495_i32 = arith.constant 495 : i32
    %30 = tpu.dynamic_rotate %1 by %c495_i32 dim 1 : vector<8x512xf32>, i32 -> vector<8x512xf32>
    %c8 = arith.constant 8 : index
    %c0_17 = arith.constant 0 : index
    %c0_18 = arith.constant 0 : index
    %31 = vector.load %arg2[%c8, %c0_17, %c0_18] : memref<9x8x512xf32, #tpu.memory_space<vmem>>, vector<1x8x512xf32>
    %32 = vector.shape_cast %31 : vector<1x8x512xf32> to vector<8x512xf32>
    %33 = arith.mulf %30, %32 : vector<8x512xf32>
    %34 = tpu.concatenate %5, %9, %13, %17, %1, %21, %25, %29, %33 in 0 : vector<8x512xf32>, vector<8x512xf32>, vector<8x512xf32>, vector<8x512xf32>, vector<8x512xf32>, vector<8x512xf32>, vector<8x512xf32>, vector<8x512xf32>, vector<8x512xf32> -> vector<72x512xf32>
    %c0_19 = arith.constant 0 : index
    %c0_20 = arith.constant 0 : index
    %35 = vector.load %arg5[%c0_19, %c0_20] : memref<64x72xf32, #tpu.memory_space<vmem>>, vector<64x72xf32>
    %cst = arith.constant dense<0.000000e+00> : vector<64x512xf32>
    %36 = tpu.matmul %35, %34, %cst {dimension_numbers = #tpu.dot_dimension_numbers<[1], [0], [0], [1], [0, 0, 1, 1], [], []>} : vector<64x72xf32>, vector<72x512xf32>, vector<64x512xf32> -> vector<64x512xf32>
    %c0_21 = arith.constant 0 : index
    %c0_22 = arith.constant 0 : index
    %37 = vector.load %arg6[%c0_21, %c0_22] : memref<64x512xf32, #tpu.memory_space<vmem>>, vector<64x512xf32>
    %38 = arith.addf %36, %37 : vector<64x512xf32>
    %cst_23 = arith.constant 0.000000e+00 : f32
    %39 = vector.broadcast %cst_23 : f32 to vector<64x512xf32>
    %40 = arith.maximumf %38, %39 : vector<64x512xf32>
    %c0_24 = arith.constant 0 : index
    %c0_25 = arith.constant 0 : index
    %41 = vector.load %arg4[%c0_24, %c0_25] : memref<512x2xf32, #tpu.memory_space<vmem>>, vector<512x2xf32>
    %cst_26 = arith.constant dense<0.000000e+00> : vector<64x2xf32>
    %42 = tpu.matmul %40, %41, %cst_26 {dimension_numbers = #tpu.dot_dimension_numbers<[1], [0], [0], [1], [0, 0, 1, 1], [], []>} : vector<64x512xf32>, vector<512x2xf32>, vector<64x2xf32> -> vector<64x2xf32>
    %cst_27 = arith.constant 3.906250e-03 : f32
    %43 = vector.broadcast %cst_27 : f32 to vector<64x2xf32>
    %44 = arith.mulf %42, %43 : vector<64x2xf32>
    %c0_28 = arith.constant 0 : index
    %c0_29 = arith.constant 0 : index
    %45 = vector.load %arg11[%c0_28, %c0_29] : memref<16x64xf32, #tpu.memory_space<vmem>>, vector<16x64xf32>
    %cst_30 = arith.constant dense<0.000000e+00> : vector<16x2xf32>
    %46 = tpu.matmul %45, %44, %cst_30 {dimension_numbers = #tpu.dot_dimension_numbers<[1], [0], [0], [1], [0, 0, 1, 1], [], []>} : vector<16x64xf32>, vector<64x2xf32>, vector<16x2xf32> -> vector<16x2xf32>
    %cst_31 = arith.constant 0.000000e+00 : f32
    %47 = vector.broadcast %cst_31 : f32 to vector<16x2xf32>
    %48 = arith.maximumf %46, %47 : vector<16x2xf32>
    %c0_32 = arith.constant 0 : index
    %c0_33 = arith.constant 0 : index
    %49 = vector.load %arg12[%c0_32, %c0_33] : memref<64x16xf32, #tpu.memory_space<vmem>>, vector<64x16xf32>
    %cst_34 = arith.constant dense<0.000000e+00> : vector<64x2xf32>
    %50 = tpu.matmul %49, %48, %cst_34 {dimension_numbers = #tpu.dot_dimension_numbers<[1], [0], [0], [1], [0, 0, 1, 1], [], []>} : vector<64x16xf32>, vector<16x2xf32>, vector<64x2xf32> -> vector<64x2xf32>
    %51 = arith.negf %50 : vector<64x2xf32>
    %52 = math.exp %51 : vector<64x2xf32>
    %cst_35 = arith.constant 1.000000e+00 : f32
    %53 = vector.broadcast %cst_35 : f32 to vector<64x2xf32>
    %54 = arith.addf %53, %52 : vector<64x2xf32>
    %55 = arith.divf %53, %54 : vector<64x2xf32>
    %c0_36 = arith.constant 0 : index
    %c0_37 = arith.constant 0 : index
    %56 = vector.load %arg3[%c0_36, %c0_37] : memref<2x512xf32, #tpu.memory_space<vmem>>, vector<2x512xf32>
    %cst_38 = arith.constant dense<0.000000e+00> : vector<64x512xf32>
    %57 = tpu.matmul %55, %56, %cst_38 {dimension_numbers = #tpu.dot_dimension_numbers<[1], [0], [0], [1], [0, 0, 1, 1], [], []>} : vector<64x2xf32>, vector<2x512xf32>, vector<64x512xf32> -> vector<64x512xf32>
    %58 = arith.mulf %40, %57 : vector<64x512xf32>
    %c0_39 = arith.constant 0 : index
    %c0_40 = arith.constant 0 : index
    %59 = vector.load %arg7[%c0_39, %c0_40] : memref<72x64xf32, #tpu.memory_space<vmem>>, vector<72x64xf32>
    %cst_41 = arith.constant dense<0.000000e+00> : vector<72x512xf32>
    %60 = tpu.matmul %59, %58, %cst_41 {dimension_numbers = #tpu.dot_dimension_numbers<[1], [0], [0], [1], [0, 0, 1, 1], [], []>} : vector<72x64xf32>, vector<64x512xf32>, vector<72x512xf32> -> vector<72x512xf32>
    %c0_42 = arith.constant 0 : index
    %c0_43 = arith.constant 0 : index
    %61 = vector.load %arg8[%c0_42, %c0_43] : memref<8x512xf32, #tpu.memory_space<vmem>>, vector<8x512xf32>
    %62 = vector.extract_strided_slice %60 {offsets = [0, 0], sizes = [8, 512], strides = [1, 1]} : vector<72x512xf32> to vector<8x512xf32>
    %c17_i32_44 = arith.constant 17 : i32
    %63 = tpu.dynamic_rotate %62 by %c17_i32_44 dim 1 : vector<8x512xf32>, i32 -> vector<8x512xf32>
    %c0_45 = arith.constant 0 : index
    %c0_46 = arith.constant 0 : index
    %c0_47 = arith.constant 0 : index
    %64 = vector.load %arg2[%c0_45, %c0_46, %c0_47] : memref<9x8x512xf32, #tpu.memory_space<vmem>>, vector<1x8x512xf32>
    %65 = vector.shape_cast %64 : vector<1x8x512xf32> to vector<8x512xf32>
    %66 = arith.mulf %63, %65 : vector<8x512xf32>
    %67 = arith.addf %61, %66 : vector<8x512xf32>
    %68 = vector.extract_strided_slice %60 {offsets = [8, 0], sizes = [8, 512], strides = [1, 1]} : vector<72x512xf32> to vector<8x512xf32>
    %c16_i32_48 = arith.constant 16 : i32
    %69 = tpu.dynamic_rotate %68 by %c16_i32_48 dim 1 : vector<8x512xf32>, i32 -> vector<8x512xf32>
    %c1_49 = arith.constant 1 : index
    %c0_50 = arith.constant 0 : index
    %c0_51 = arith.constant 0 : index
    %70 = vector.load %arg2[%c1_49, %c0_50, %c0_51] : memref<9x8x512xf32, #tpu.memory_space<vmem>>, vector<1x8x512xf32>
    %71 = vector.shape_cast %70 : vector<1x8x512xf32> to vector<8x512xf32>
    %72 = arith.mulf %69, %71 : vector<8x512xf32>
    %73 = arith.addf %67, %72 : vector<8x512xf32>
    %74 = vector.extract_strided_slice %60 {offsets = [16, 0], sizes = [8, 512], strides = [1, 1]} : vector<72x512xf32> to vector<8x512xf32>
    %c15_i32_52 = arith.constant 15 : i32
    %75 = tpu.dynamic_rotate %74 by %c15_i32_52 dim 1 : vector<8x512xf32>, i32 -> vector<8x512xf32>
    %c2_53 = arith.constant 2 : index
    %c0_54 = arith.constant 0 : index
    %c0_55 = arith.constant 0 : index
    %76 = vector.load %arg2[%c2_53, %c0_54, %c0_55] : memref<9x8x512xf32, #tpu.memory_space<vmem>>, vector<1x8x512xf32>
    %77 = vector.shape_cast %76 : vector<1x8x512xf32> to vector<8x512xf32>
    %78 = arith.mulf %75, %77 : vector<8x512xf32>
    %79 = arith.addf %73, %78 : vector<8x512xf32>
    %80 = vector.extract_strided_slice %60 {offsets = [24, 0], sizes = [8, 512], strides = [1, 1]} : vector<72x512xf32> to vector<8x512xf32>
    %c1_i32_56 = arith.constant 1 : i32
    %81 = tpu.dynamic_rotate %80 by %c1_i32_56 dim 1 : vector<8x512xf32>, i32 -> vector<8x512xf32>
    %c3_57 = arith.constant 3 : index
    %c0_58 = arith.constant 0 : index
    %c0_59 = arith.constant 0 : index
    %82 = vector.load %arg2[%c3_57, %c0_58, %c0_59] : memref<9x8x512xf32, #tpu.memory_space<vmem>>, vector<1x8x512xf32>
    %83 = vector.shape_cast %82 : vector<1x8x512xf32> to vector<8x512xf32>
    %84 = arith.mulf %81, %83 : vector<8x512xf32>
    %85 = arith.addf %79, %84 : vector<8x512xf32>
    %86 = vector.extract_strided_slice %60 {offsets = [32, 0], sizes = [8, 512], strides = [1, 1]} : vector<72x512xf32> to vector<8x512xf32>
    %87 = arith.addf %85, %86 : vector<8x512xf32>
    %88 = vector.extract_strided_slice %60 {offsets = [40, 0], sizes = [8, 512], strides = [1, 1]} : vector<72x512xf32> to vector<8x512xf32>
    %c511_i32_60 = arith.constant 511 : i32
    %89 = tpu.dynamic_rotate %88 by %c511_i32_60 dim 1 : vector<8x512xf32>, i32 -> vector<8x512xf32>
    %c5_61 = arith.constant 5 : index
    %c0_62 = arith.constant 0 : index
    %c0_63 = arith.constant 0 : index
    %90 = vector.load %arg2[%c5_61, %c0_62, %c0_63] : memref<9x8x512xf32, #tpu.memory_space<vmem>>, vector<1x8x512xf32>
    %91 = vector.shape_cast %90 : vector<1x8x512xf32> to vector<8x512xf32>
    %92 = arith.mulf %89, %91 : vector<8x512xf32>
    %93 = arith.addf %87, %92 : vector<8x512xf32>
    %94 = vector.extract_strided_slice %60 {offsets = [48, 0], sizes = [8, 512], strides = [1, 1]} : vector<72x512xf32> to vector<8x512xf32>
    %c497_i32_64 = arith.constant 497 : i32
    %95 = tpu.dynamic_rotate %94 by %c497_i32_64 dim 1 : vector<8x512xf32>, i32 -> vector<8x512xf32>
    %c6_65 = arith.constant 6 : index
    %c0_66 = arith.constant 0 : index
    %c0_67 = arith.constant 0 : index
    %96 = vector.load %arg2[%c6_65, %c0_66, %c0_67] : memref<9x8x512xf32, #tpu.memory_space<vmem>>, vector<1x8x512xf32>
    %97 = vector.shape_cast %96 : vector<1x8x512xf32> to vector<8x512xf32>
    %98 = arith.mulf %95, %97 : vector<8x512xf32>
    %99 = arith.addf %93, %98 : vector<8x512xf32>
    %100 = vector.extract_strided_slice %60 {offsets = [56, 0], sizes = [8, 512], strides = [1, 1]} : vector<72x512xf32> to vector<8x512xf32>
    %c496_i32_68 = arith.constant 496 : i32
    %101 = tpu.dynamic_rotate %100 by %c496_i32_68 dim 1 : vector<8x512xf32>, i32 -> vector<8x512xf32>
    %c7_69 = arith.constant 7 : index
    %c0_70 = arith.constant 0 : index
    %c0_71 = arith.constant 0 : index
    %102 = vector.load %arg2[%c7_69, %c0_70, %c0_71] : memref<9x8x512xf32, #tpu.memory_space<vmem>>, vector<1x8x512xf32>
    %103 = vector.shape_cast %102 : vector<1x8x512xf32> to vector<8x512xf32>
    %104 = arith.mulf %101, %103 : vector<8x512xf32>
    %105 = arith.addf %99, %104 : vector<8x512xf32>
    %106 = vector.extract_strided_slice %60 {offsets = [64, 0], sizes = [8, 512], strides = [1, 1]} : vector<72x512xf32> to vector<8x512xf32>
    %c495_i32_72 = arith.constant 495 : i32
    %107 = tpu.dynamic_rotate %106 by %c495_i32_72 dim 1 : vector<8x512xf32>, i32 -> vector<8x512xf32>
    %c8_73 = arith.constant 8 : index
    %c0_74 = arith.constant 0 : index
    %c0_75 = arith.constant 0 : index
    %108 = vector.load %arg2[%c8_73, %c0_74, %c0_75] : memref<9x8x512xf32, #tpu.memory_space<vmem>>, vector<1x8x512xf32>
    %109 = vector.shape_cast %108 : vector<1x8x512xf32> to vector<8x512xf32>
    %110 = arith.mulf %107, %109 : vector<8x512xf32>
    %111 = arith.addf %105, %110 : vector<8x512xf32>
    %cst_76 = arith.constant 0.000000e+00 : f32
    %112 = vector.broadcast %cst_76 : f32 to vector<8x512xf32>
    %113 = arith.maximumf %111, %112 : vector<8x512xf32>
    %114 = arith.addf %113, %1 : vector<8x512xf32>
    %c17_i32_77 = arith.constant 17 : i32
    %115 = tpu.dynamic_rotate %114 by %c17_i32_77 dim 1 : vector<8x512xf32>, i32 -> vector<8x512xf32>
    %c0_78 = arith.constant 0 : index
    %c0_79 = arith.constant 0 : index
    %c0_80 = arith.constant 0 : index
    %116 = vector.load %arg2[%c0_78, %c0_79, %c0_80] : memref<9x8x512xf32, #tpu.memory_space<vmem>>, vector<1x8x512xf32>
    %117 = vector.shape_cast %116 : vector<1x8x512xf32> to vector<8x512xf32>
    %118 = arith.mulf %115, %117 : vector<8x512xf32>
    %c16_i32_81 = arith.constant 16 : i32
    %119 = tpu.dynamic_rotate %114 by %c16_i32_81 dim 1 : vector<8x512xf32>, i32 -> vector<8x512xf32>
    %c1_82 = arith.constant 1 : index
    %c0_83 = arith.constant 0 : index
    %c0_84 = arith.constant 0 : index
    %120 = vector.load %arg2[%c1_82, %c0_83, %c0_84] : memref<9x8x512xf32, #tpu.memory_space<vmem>>, vector<1x8x512xf32>
    %121 = vector.shape_cast %120 : vector<1x8x512xf32> to vector<8x512xf32>
    %122 = arith.mulf %119, %121 : vector<8x512xf32>
    %c15_i32_85 = arith.constant 15 : i32
    %123 = tpu.dynamic_rotate %114 by %c15_i32_85 dim 1 : vector<8x512xf32>, i32 -> vector<8x512xf32>
    %c2_86 = arith.constant 2 : index
    %c0_87 = arith.constant 0 : index
    %c0_88 = arith.constant 0 : index
    %124 = vector.load %arg2[%c2_86, %c0_87, %c0_88] : memref<9x8x512xf32, #tpu.memory_space<vmem>>, vector<1x8x512xf32>
    %125 = vector.shape_cast %124 : vector<1x8x512xf32> to vector<8x512xf32>
    %126 = arith.mulf %123, %125 : vector<8x512xf32>
    %c1_i32_89 = arith.constant 1 : i32
    %127 = tpu.dynamic_rotate %114 by %c1_i32_89 dim 1 : vector<8x512xf32>, i32 -> vector<8x512xf32>
    %c3_90 = arith.constant 3 : index
    %c0_91 = arith.constant 0 : index
    %c0_92 = arith.constant 0 : index
    %128 = vector.load %arg2[%c3_90, %c0_91, %c0_92] : memref<9x8x512xf32, #tpu.memory_space<vmem>>, vector<1x8x512xf32>
    %129 = vector.shape_cast %128 : vector<1x8x512xf32> to vector<8x512xf32>
    %130 = arith.mulf %127, %129 : vector<8x512xf32>
    %c511_i32_93 = arith.constant 511 : i32
    %131 = tpu.dynamic_rotate %114 by %c511_i32_93 dim 1 : vector<8x512xf32>, i32 -> vector<8x512xf32>
    %c5_94 = arith.constant 5 : index
    %c0_95 = arith.constant 0 : index
    %c0_96 = arith.constant 0 : index
    %132 = vector.load %arg2[%c5_94, %c0_95, %c0_96] : memref<9x8x512xf32, #tpu.memory_space<vmem>>, vector<1x8x512xf32>
    %133 = vector.shape_cast %132 : vector<1x8x512xf32> to vector<8x512xf32>
    %134 = arith.mulf %131, %133 : vector<8x512xf32>
    %c497_i32_97 = arith.constant 497 : i32
    %135 = tpu.dynamic_rotate %114 by %c497_i32_97 dim 1 : vector<8x512xf32>, i32 -> vector<8x512xf32>
    %c6_98 = arith.constant 6 : index
    %c0_99 = arith.constant 0 : index
    %c0_100 = arith.constant 0 : index
    %136 = vector.load %arg2[%c6_98, %c0_99, %c0_100] : memref<9x8x512xf32, #tpu.memory_space<vmem>>, vector<1x8x512xf32>
    %137 = vector.shape_cast %136 : vector<1x8x512xf32> to vector<8x512xf32>
    %138 = arith.mulf %135, %137 : vector<8x512xf32>
    %c496_i32_101 = arith.constant 496 : i32
    %139 = tpu.dynamic_rotate %114 by %c496_i32_101 dim 1 : vector<8x512xf32>, i32 -> vector<8x512xf32>
    %c7_102 = arith.constant 7 : index
    %c0_103 = arith.constant 0 : index
    %c0_104 = arith.constant 0 : index
    %140 = vector.load %arg2[%c7_102, %c0_103, %c0_104] : memref<9x8x512xf32, #tpu.memory_space<vmem>>, vector<1x8x512xf32>
    %141 = vector.shape_cast %140 : vector<1x8x512xf32> to vector<8x512xf32>
    %142 = arith.mulf %139, %141 : vector<8x512xf32>
    %c495_i32_105 = arith.constant 495 : i32
    %143 = tpu.dynamic_rotate %114 by %c495_i32_105 dim 1 : vector<8x512xf32>, i32 -> vector<8x512xf32>
    %c8_106 = arith.constant 8 : index
    %c0_107 = arith.constant 0 : index
    %c0_108 = arith.constant 0 : index
    %144 = vector.load %arg2[%c8_106, %c0_107, %c0_108] : memref<9x8x512xf32, #tpu.memory_space<vmem>>, vector<1x8x512xf32>
    %145 = vector.shape_cast %144 : vector<1x8x512xf32> to vector<8x512xf32>
    %146 = arith.mulf %143, %145 : vector<8x512xf32>
    %147 = tpu.concatenate %118, %122, %126, %130, %114, %134, %138, %142, %146 in 0 : vector<8x512xf32>, vector<8x512xf32>, vector<8x512xf32>, vector<8x512xf32>, vector<8x512xf32>, vector<8x512xf32>, vector<8x512xf32>, vector<8x512xf32>, vector<8x512xf32> -> vector<72x512xf32>
    %c0_109 = arith.constant 0 : index
    %c0_110 = arith.constant 0 : index
    %148 = vector.load %arg5[%c0_109, %c0_110] : memref<64x72xf32, #tpu.memory_space<vmem>>, vector<64x72xf32>
    %cst_111 = arith.constant dense<0.000000e+00> : vector<64x512xf32>
    %149 = tpu.matmul %148, %147, %cst_111 {dimension_numbers = #tpu.dot_dimension_numbers<[1], [0], [0], [1], [0, 0, 1, 1], [], []>} : vector<64x72xf32>, vector<72x512xf32>, vector<64x512xf32> -> vector<64x512xf32>
    %c0_112 = arith.constant 0 : index
    %c0_113 = arith.constant 0 : index
    %150 = vector.load %arg6[%c0_112, %c0_113] : memref<64x512xf32, #tpu.memory_space<vmem>>, vector<64x512xf32>
    %151 = arith.addf %149, %150 : vector<64x512xf32>
    %cst_114 = arith.constant 0.000000e+00 : f32
    %152 = vector.broadcast %cst_114 : f32 to vector<64x512xf32>
    %153 = arith.maximumf %151, %152 : vector<64x512xf32>
    %c0_115 = arith.constant 0 : index
    %c0_116 = arith.constant 0 : index
    %154 = vector.load %arg7[%c0_115, %c0_116] : memref<72x64xf32, #tpu.memory_space<vmem>>, vector<72x64xf32>
    %cst_117 = arith.constant dense<0.000000e+00> : vector<72x512xf32>
    %155 = tpu.matmul %154, %153, %cst_117 {dimension_numbers = #tpu.dot_dimension_numbers<[1], [0], [0], [1], [0, 0, 1, 1], [], []>} : vector<72x64xf32>, vector<64x512xf32>, vector<72x512xf32> -> vector<72x512xf32>
    %c0_118 = arith.constant 0 : index
    %c0_119 = arith.constant 0 : index
    %156 = vector.load %arg8[%c0_118, %c0_119] : memref<8x512xf32, #tpu.memory_space<vmem>>, vector<8x512xf32>
    %157 = vector.extract_strided_slice %155 {offsets = [0, 0], sizes = [8, 512], strides = [1, 1]} : vector<72x512xf32> to vector<8x512xf32>
    %c17_i32_120 = arith.constant 17 : i32
    %158 = tpu.dynamic_rotate %157 by %c17_i32_120 dim 1 : vector<8x512xf32>, i32 -> vector<8x512xf32>
    %c0_121 = arith.constant 0 : index
    %c0_122 = arith.constant 0 : index
    %c0_123 = arith.constant 0 : index
    %159 = vector.load %arg2[%c0_121, %c0_122, %c0_123] : memref<9x8x512xf32, #tpu.memory_space<vmem>>, vector<1x8x512xf32>
    %160 = vector.shape_cast %159 : vector<1x8x512xf32> to vector<8x512xf32>
    %161 = arith.mulf %158, %160 : vector<8x512xf32>
    %162 = arith.addf %156, %161 : vector<8x512xf32>
    %163 = vector.extract_strided_slice %155 {offsets = [8, 0], sizes = [8, 512], strides = [1, 1]} : vector<72x512xf32> to vector<8x512xf32>
    %c16_i32_124 = arith.constant 16 : i32
    %164 = tpu.dynamic_rotate %163 by %c16_i32_124 dim 1 : vector<8x512xf32>, i32 -> vector<8x512xf32>
    %c1_125 = arith.constant 1 : index
    %c0_126 = arith.constant 0 : index
    %c0_127 = arith.constant 0 : index
    %165 = vector.load %arg2[%c1_125, %c0_126, %c0_127] : memref<9x8x512xf32, #tpu.memory_space<vmem>>, vector<1x8x512xf32>
    %166 = vector.shape_cast %165 : vector<1x8x512xf32> to vector<8x512xf32>
    %167 = arith.mulf %164, %166 : vector<8x512xf32>
    %168 = arith.addf %162, %167 : vector<8x512xf32>
    %169 = vector.extract_strided_slice %155 {offsets = [16, 0], sizes = [8, 512], strides = [1, 1]} : vector<72x512xf32> to vector<8x512xf32>
    %c15_i32_128 = arith.constant 15 : i32
    %170 = tpu.dynamic_rotate %169 by %c15_i32_128 dim 1 : vector<8x512xf32>, i32 -> vector<8x512xf32>
    %c2_129 = arith.constant 2 : index
    %c0_130 = arith.constant 0 : index
    %c0_131 = arith.constant 0 : index
    %171 = vector.load %arg2[%c2_129, %c0_130, %c0_131] : memref<9x8x512xf32, #tpu.memory_space<vmem>>, vector<1x8x512xf32>
    %172 = vector.shape_cast %171 : vector<1x8x512xf32> to vector<8x512xf32>
    %173 = arith.mulf %170, %172 : vector<8x512xf32>
    %174 = arith.addf %168, %173 : vector<8x512xf32>
    %175 = vector.extract_strided_slice %155 {offsets = [24, 0], sizes = [8, 512], strides = [1, 1]} : vector<72x512xf32> to vector<8x512xf32>
    %c1_i32_132 = arith.constant 1 : i32
    %176 = tpu.dynamic_rotate %175 by %c1_i32_132 dim 1 : vector<8x512xf32>, i32 -> vector<8x512xf32>
    %c3_133 = arith.constant 3 : index
    %c0_134 = arith.constant 0 : index
    %c0_135 = arith.constant 0 : index
    %177 = vector.load %arg2[%c3_133, %c0_134, %c0_135] : memref<9x8x512xf32, #tpu.memory_space<vmem>>, vector<1x8x512xf32>
    %178 = vector.shape_cast %177 : vector<1x8x512xf32> to vector<8x512xf32>
    %179 = arith.mulf %176, %178 : vector<8x512xf32>
    %180 = arith.addf %174, %179 : vector<8x512xf32>
    %181 = vector.extract_strided_slice %155 {offsets = [32, 0], sizes = [8, 512], strides = [1, 1]} : vector<72x512xf32> to vector<8x512xf32>
    %182 = arith.addf %180, %181 : vector<8x512xf32>
    %183 = vector.extract_strided_slice %155 {offsets = [40, 0], sizes = [8, 512], strides = [1, 1]} : vector<72x512xf32> to vector<8x512xf32>
    %c511_i32_136 = arith.constant 511 : i32
    %184 = tpu.dynamic_rotate %183 by %c511_i32_136 dim 1 : vector<8x512xf32>, i32 -> vector<8x512xf32>
    %c5_137 = arith.constant 5 : index
    %c0_138 = arith.constant 0 : index
    %c0_139 = arith.constant 0 : index
    %185 = vector.load %arg2[%c5_137, %c0_138, %c0_139] : memref<9x8x512xf32, #tpu.memory_space<vmem>>, vector<1x8x512xf32>
    %186 = vector.shape_cast %185 : vector<1x8x512xf32> to vector<8x512xf32>
    %187 = arith.mulf %184, %186 : vector<8x512xf32>
    %188 = arith.addf %182, %187 : vector<8x512xf32>
    %189 = vector.extract_strided_slice %155 {offsets = [48, 0], sizes = [8, 512], strides = [1, 1]} : vector<72x512xf32> to vector<8x512xf32>
    %c497_i32_140 = arith.constant 497 : i32
    %190 = tpu.dynamic_rotate %189 by %c497_i32_140 dim 1 : vector<8x512xf32>, i32 -> vector<8x512xf32>
    %c6_141 = arith.constant 6 : index
    %c0_142 = arith.constant 0 : index
    %c0_143 = arith.constant 0 : index
    %191 = vector.load %arg2[%c6_141, %c0_142, %c0_143] : memref<9x8x512xf32, #tpu.memory_space<vmem>>, vector<1x8x512xf32>
    %192 = vector.shape_cast %191 : vector<1x8x512xf32> to vector<8x512xf32>
    %193 = arith.mulf %190, %192 : vector<8x512xf32>
    %194 = arith.addf %188, %193 : vector<8x512xf32>
    %195 = vector.extract_strided_slice %155 {offsets = [56, 0], sizes = [8, 512], strides = [1, 1]} : vector<72x512xf32> to vector<8x512xf32>
    %c496_i32_144 = arith.constant 496 : i32
    %196 = tpu.dynamic_rotate %195 by %c496_i32_144 dim 1 : vector<8x512xf32>, i32 -> vector<8x512xf32>
    %c7_145 = arith.constant 7 : index
    %c0_146 = arith.constant 0 : index
    %c0_147 = arith.constant 0 : index
    %197 = vector.load %arg2[%c7_145, %c0_146, %c0_147] : memref<9x8x512xf32, #tpu.memory_space<vmem>>, vector<1x8x512xf32>
    %198 = vector.shape_cast %197 : vector<1x8x512xf32> to vector<8x512xf32>
    %199 = arith.mulf %196, %198 : vector<8x512xf32>
    %200 = arith.addf %194, %199 : vector<8x512xf32>
    %201 = vector.extract_strided_slice %155 {offsets = [64, 0], sizes = [8, 512], strides = [1, 1]} : vector<72x512xf32> to vector<8x512xf32>
    %c495_i32_148 = arith.constant 495 : i32
    %202 = tpu.dynamic_rotate %201 by %c495_i32_148 dim 1 : vector<8x512xf32>, i32 -> vector<8x512xf32>
    %c8_149 = arith.constant 8 : index
    %c0_150 = arith.constant 0 : index
    %c0_151 = arith.constant 0 : index
    %203 = vector.load %arg2[%c8_149, %c0_150, %c0_151] : memref<9x8x512xf32, #tpu.memory_space<vmem>>, vector<1x8x512xf32>
    %204 = vector.shape_cast %203 : vector<1x8x512xf32> to vector<8x512xf32>
    %205 = arith.mulf %202, %204 : vector<8x512xf32>
    %206 = arith.addf %200, %205 : vector<8x512xf32>
    %cst_152 = arith.constant 0.000000e+00 : f32
    %207 = vector.broadcast %cst_152 : f32 to vector<8x512xf32>
    %208 = arith.maximumf %206, %207 : vector<8x512xf32>
    %209 = arith.addf %208, %1 : vector<8x512xf32>
    %c17_i32_153 = arith.constant 17 : i32
    %210 = tpu.dynamic_rotate %209 by %c17_i32_153 dim 1 : vector<8x512xf32>, i32 -> vector<8x512xf32>
    %c0_154 = arith.constant 0 : index
    %c0_155 = arith.constant 0 : index
    %c0_156 = arith.constant 0 : index
    %211 = vector.load %arg2[%c0_154, %c0_155, %c0_156] : memref<9x8x512xf32, #tpu.memory_space<vmem>>, vector<1x8x512xf32>
    %212 = vector.shape_cast %211 : vector<1x8x512xf32> to vector<8x512xf32>
    %213 = arith.mulf %210, %212 : vector<8x512xf32>
    %c16_i32_157 = arith.constant 16 : i32
    %214 = tpu.dynamic_rotate %209 by %c16_i32_157 dim 1 : vector<8x512xf32>, i32 -> vector<8x512xf32>
    %c1_158 = arith.constant 1 : index
    %c0_159 = arith.constant 0 : index
    %c0_160 = arith.constant 0 : index
    %215 = vector.load %arg2[%c1_158, %c0_159, %c0_160] : memref<9x8x512xf32, #tpu.memory_space<vmem>>, vector<1x8x512xf32>
    %216 = vector.shape_cast %215 : vector<1x8x512xf32> to vector<8x512xf32>
    %217 = arith.mulf %214, %216 : vector<8x512xf32>
    %c15_i32_161 = arith.constant 15 : i32
    %218 = tpu.dynamic_rotate %209 by %c15_i32_161 dim 1 : vector<8x512xf32>, i32 -> vector<8x512xf32>
    %c2_162 = arith.constant 2 : index
    %c0_163 = arith.constant 0 : index
    %c0_164 = arith.constant 0 : index
    %219 = vector.load %arg2[%c2_162, %c0_163, %c0_164] : memref<9x8x512xf32, #tpu.memory_space<vmem>>, vector<1x8x512xf32>
    %220 = vector.shape_cast %219 : vector<1x8x512xf32> to vector<8x512xf32>
    %221 = arith.mulf %218, %220 : vector<8x512xf32>
    %c1_i32_165 = arith.constant 1 : i32
    %222 = tpu.dynamic_rotate %209 by %c1_i32_165 dim 1 : vector<8x512xf32>, i32 -> vector<8x512xf32>
    %c3_166 = arith.constant 3 : index
    %c0_167 = arith.constant 0 : index
    %c0_168 = arith.constant 0 : index
    %223 = vector.load %arg2[%c3_166, %c0_167, %c0_168] : memref<9x8x512xf32, #tpu.memory_space<vmem>>, vector<1x8x512xf32>
    %224 = vector.shape_cast %223 : vector<1x8x512xf32> to vector<8x512xf32>
    %225 = arith.mulf %222, %224 : vector<8x512xf32>
    %c511_i32_169 = arith.constant 511 : i32
    %226 = tpu.dynamic_rotate %209 by %c511_i32_169 dim 1 : vector<8x512xf32>, i32 -> vector<8x512xf32>
    %c5_170 = arith.constant 5 : index
    %c0_171 = arith.constant 0 : index
    %c0_172 = arith.constant 0 : index
    %227 = vector.load %arg2[%c5_170, %c0_171, %c0_172] : memref<9x8x512xf32, #tpu.memory_space<vmem>>, vector<1x8x512xf32>
    %228 = vector.shape_cast %227 : vector<1x8x512xf32> to vector<8x512xf32>
    %229 = arith.mulf %226, %228 : vector<8x512xf32>
    %c497_i32_173 = arith.constant 497 : i32
    %230 = tpu.dynamic_rotate %209 by %c497_i32_173 dim 1 : vector<8x512xf32>, i32 -> vector<8x512xf32>
    %c6_174 = arith.constant 6 : index
    %c0_175 = arith.constant 0 : index
    %c0_176 = arith.constant 0 : index
    %231 = vector.load %arg2[%c6_174, %c0_175, %c0_176] : memref<9x8x512xf32, #tpu.memory_space<vmem>>, vector<1x8x512xf32>
    %232 = vector.shape_cast %231 : vector<1x8x512xf32> to vector<8x512xf32>
    %233 = arith.mulf %230, %232 : vector<8x512xf32>
    %c496_i32_177 = arith.constant 496 : i32
    %234 = tpu.dynamic_rotate %209 by %c496_i32_177 dim 1 : vector<8x512xf32>, i32 -> vector<8x512xf32>
    %c7_178 = arith.constant 7 : index
    %c0_179 = arith.constant 0 : index
    %c0_180 = arith.constant 0 : index
    %235 = vector.load %arg2[%c7_178, %c0_179, %c0_180] : memref<9x8x512xf32, #tpu.memory_space<vmem>>, vector<1x8x512xf32>
    %236 = vector.shape_cast %235 : vector<1x8x512xf32> to vector<8x512xf32>
    %237 = arith.mulf %234, %236 : vector<8x512xf32>
    %c495_i32_181 = arith.constant 495 : i32
    %238 = tpu.dynamic_rotate %209 by %c495_i32_181 dim 1 : vector<8x512xf32>, i32 -> vector<8x512xf32>
    %c8_182 = arith.constant 8 : index
    %c0_183 = arith.constant 0 : index
    %c0_184 = arith.constant 0 : index
    %239 = vector.load %arg2[%c8_182, %c0_183, %c0_184] : memref<9x8x512xf32, #tpu.memory_space<vmem>>, vector<1x8x512xf32>
    %240 = vector.shape_cast %239 : vector<1x8x512xf32> to vector<8x512xf32>
    %241 = arith.mulf %238, %240 : vector<8x512xf32>
    %242 = tpu.concatenate %213, %217, %221, %225, %209, %229, %233, %237, %241 in 0 : vector<8x512xf32>, vector<8x512xf32>, vector<8x512xf32>, vector<8x512xf32>, vector<8x512xf32>, vector<8x512xf32>, vector<8x512xf32>, vector<8x512xf32>, vector<8x512xf32> -> vector<72x512xf32>
    %c0_185 = arith.constant 0 : index
    %c0_186 = arith.constant 0 : index
    %243 = vector.load %arg9[%c0_185, %c0_186] : memref<8x72xf32, #tpu.memory_space<vmem>>, vector<8x72xf32>
    %cst_187 = arith.constant dense<0.000000e+00> : vector<8x512xf32>
    %244 = tpu.matmul %243, %242, %cst_187 {dimension_numbers = #tpu.dot_dimension_numbers<[1], [0], [0], [1], [0, 0, 1, 1], [], []>} : vector<8x72xf32>, vector<72x512xf32>, vector<8x512xf32> -> vector<8x512xf32>
    %c0_188 = arith.constant 0 : index
    %c0_189 = arith.constant 0 : index
    %245 = vector.load %arg10[%c0_188, %c0_189] : memref<8x512xf32, #tpu.memory_space<vmem>>, vector<8x512xf32>
    %246 = arith.addf %244, %245 : vector<8x512xf32>
    %c0_190 = arith.constant 0 : index
    %c0_191 = arith.constant 0 : index
    %c0_192 = arith.constant 0 : index
    %247 = vector.load %arg13[%c0_190, %c0_191, %c0_192] : memref<1x8x512xf32, #tpu.memory_space<vmem>>, vector<1x8x512xf32>
    %248 = vector.shape_cast %247 : vector<1x8x512xf32> to vector<8x512xf32>
    %249 = vector.shape_cast %246 : vector<8x512xf32> to vector<1x8x512xf32>
    tpu.vector_store %arg13[%c0_190, %c0_191, %c0_192], %249 {strides = array<i32>} : memref<1x8x512xf32, #tpu.memory_space<vmem>>, vector<1x8x512xf32>,
    return
  }
  func.func @transform_0(%arg0: i32) -> (i32, i32, i32) {
    %c0_i32 = arith.constant 0 : i32
    %c0_i32_0 = arith.constant 0 : i32
    %c0_i32_1 = arith.constant 0 : i32
    return %arg0, %c0_i32, %c0_i32_0 : i32, i32, i32
  }
  func.func @transform_1(%arg0: i32) -> (i32, i32, i32) {
    %c0_i32 = arith.constant 0 : i32
    %c0_i32_0 = arith.constant 0 : i32
    %c0_i32_1 = arith.constant 0 : i32
    %c0_i32_2 = arith.constant 0 : i32
    return %c0_i32, %c0_i32_0, %c0_i32_1 : i32, i32, i32
  }
  func.func @transform_2(%arg0: i32) -> (i32, i32) {
    %c0_i32 = arith.constant 0 : i32
    %c0_i32_0 = arith.constant 0 : i32
    %c0_i32_1 = arith.constant 0 : i32
    return %c0_i32, %c0_i32_0 : i32, i32
  }
  func.func @transform_3(%arg0: i32) -> (i32, i32) {
    %c0_i32 = arith.constant 0 : i32
    %c0_i32_0 = arith.constant 0 : i32
    %c0_i32_1 = arith.constant 0 : i32
    return %c0_i32, %c0_i32_0 : i32, i32
  }
  func.func @transform_4(%arg0: i32) -> (i32, i32) {
    %c0_i32 = arith.constant 0 : i32
    %c0_i32_0 = arith.constant 0 : i32
    %c0_i32_1 = arith.constant 0 : i32
    return %c0_i32, %c0_i32_0 : i32, i32
  }
  func.func @transform_5(%arg0: i32) -> (i32, i32) {
    %c0_i32 = arith.constant 0 : i32
    %c0_i32_0 = arith.constant 0 : i32
    %c0_i32_1 = arith.constant 0 : i32
    return %c0_i32, %c0_i32_0 : i32, i32
  }
  func.func @transform_6(%arg0: i32) -> (i32, i32) {
    %c0_i32 = arith.constant 0 : i32
    %c0_i32_0 = arith.constant 0 : i32
    %c0_i32_1 = arith.constant 0 : i32
    return %c0_i32, %c0_i32_0 : i32, i32
  }
  func.func @transform_7(%arg0: i32) -> (i32, i32) {
    %c0_i32 = arith.constant 0 : i32
    %c0_i32_0 = arith.constant 0 : i32
    %c0_i32_1 = arith.constant 0 : i32
    return %c0_i32, %c0_i32_0 : i32, i32
  }
  func.func @transform_8(%arg0: i32) -> (i32, i32) {
    %c0_i32 = arith.constant 0 : i32
    %c0_i32_0 = arith.constant 0 : i32
    %c0_i32_1 = arith.constant 0 : i32
    return %c0_i32, %c0_i32_0 : i32, i32
  }
  func.func @transform_9(%arg0: i32) -> (i32, i32) {
    %c0_i32 = arith.constant 0 : i32
    %c0_i32_0 = arith.constant 0 : i32
    %c0_i32_1 = arith.constant 0 : i32
    return %c0_i32, %c0_i32_0 : i32, i32
  }
  func.func @transform_10(%arg0: i32) -> (i32, i32) {
    %c0_i32 = arith.constant 0 : i32
    %c0_i32_0 = arith.constant 0 : i32
    %c0_i32_1 = arith.constant 0 : i32
    return %c0_i32, %c0_i32_0 : i32, i32
  }
  func.func @transform_11(%arg0: i32) -> (i32, i32) {
    %c0_i32 = arith.constant 0 : i32
    %c0_i32_0 = arith.constant 0 : i32
    %c0_i32_1 = arith.constant 0 : i32
    return %c0_i32, %c0_i32_0 : i32, i32
  }
  func.func @transform_12(%arg0: i32) -> (i32, i32, i32) {
    %c0_i32 = arith.constant 0 : i32
    %c0_i32_0 = arith.constant 0 : i32
    %c0_i32_1 = arith.constant 0 : i32
    return %arg0, %c0_i32, %c0_i32_0 : i32, i32, i32
  }
}

</mosaic_0001>

<llo_original>
// kernel: attention_forward.1
$region0: #{attention_forward.1}
  #allocation0 [shape = 'u32[]', space=smem, size = 0x4, offset = 0x4, fixed_abs, tag = 'smem constant byte address 0x4 - core index']
  #allocation1 [shape = 'u32[144,128]{1,0:T(1,128)}', space=vmem, size = 0x12000, scoped, tag = 'internal scratch']
  %s0 = inlined_call_operand.vmem [shape: f32[1,8,512], index: 0, kind: input, shape index: {}]
  %s1 = inlined_call_operand.vmem [shape: f32[9,8,512], index: 1, kind: input, shape index: {}]
  %s2 = inlined_call_operand.vmem [shape: f32[2,512], index: 2, kind: input, shape index: {}]
  %s3 = inlined_call_operand.vmem [shape: f32[512,2], index: 3, kind: input, shape index: {}]
  %s4 = inlined_call_operand.vmem [shape: f32[64,72], index: 4, kind: input, shape index: {}]
  %s5 = inlined_call_operand.vmem [shape: f32[64,512], index: 5, kind: input, shape index: {}]
  %s6 = inlined_call_operand.vmem [shape: f32[72,64], index: 6, kind: input, shape index: {}]
  %s7 = inlined_call_operand.vmem [shape: f32[8,512], index: 7, kind: input, shape index: {}]
  %s8 = inlined_call_operand.vmem [shape: f32[8,72], index: 8, kind: input, shape index: {}]
  %s9 = inlined_call_operand.vmem [shape: f32[8,512], index: 9, kind: input, shape index: {}]
  %s10 = inlined_call_operand.vmem [shape: f32[16,64], index: 10, kind: input, shape index: {}]
  %s11 = inlined_call_operand.vmem [shape: f32[64,16], index: 11, kind: input, shape index: {}]
  %s12 = inlined_call_operand.vmem [shape: f32[1,8,512], index: 12, kind: output, shape index: {}]
  %s13 = sld [smem:[#allocation0]]
  $region58: #{attention_forward.1} parent=0
    _
  %s15 = ssub.s32 1, %s13
  %s16 = scalar_select 0, %s15, %s13
  // Predicated region
  $region2: #{attention_forward.1} parent=0 // pred_check
    _
  $region3: #{attention_forward.1} parent=0 // pred_check_branch
    %18 = sbr.rel (0) target = $region5
  $region4: #{attention_forward.1} parent=0 // pred_region
    _
  $region5: #{attention_forward.1} parent=0 // pred_fallthru
    _
  // Predicated region
  $region6: #{attention_forward.1} parent=0 // pred_check
    _
  $region7: #{attention_forward.1} parent=0 // pred_check_branch
    %20 = sbr.rel (0) target = $region9
  $region8: #{attention_forward.1} parent=0 // pred_region
    _
  $region9: #{attention_forward.1} parent=0 // pred_fallthru
    _
  // Predicated region
  $region10: #{attention_forward.1} parent=0 // pred_check
    _
  $region11: #{attention_forward.1} parent=0 // pred_check_branch
    %22 = sbr.rel (0) target = $region13
  $region12: #{attention_forward.1} parent=0 // pred_region
    _
  $region13: #{attention_forward.1} parent=0 // pred_fallthru
    _
  // Predicated region
  $region14: #{attention_forward.1} parent=0 // pred_check
    _
  $region15: #{attention_forward.1} parent=0 // pred_check_branch
    %24 = sbr.rel (0) target = $region17
  $region16: #{attention_forward.1} parent=0 // pred_region
    _
  $region17: #{attention_forward.1} parent=0 // pred_fallthru
    _
  // Predicated region
  $region18: #{attention_forward.1} parent=0 // pred_check
    _
  $region19: #{attention_forward.1} parent=0 // pred_check_branch
    %26 = sbr.rel (0) target = $region21
  $region20: #{attention_forward.1} parent=0 // pred_region
    _
  $region21: #{attention_forward.1} parent=0 // pred_fallthru
    _
  // Predicated region
  $region22: #{attention_forward.1} parent=0 // pred_check
    _
  $region23: #{attention_forward.1} parent=0 // pred_check_branch
    %28 = sbr.rel (0) target = $region25
  $region24: #{attention_forward.1} parent=0 // pred_region
    _
  $region25: #{attention_forward.1} parent=0 // pred_fallthru
    _
  // Predicated region
  $region26: #{attention_forward.1} parent=0 // pred_check
    _
  $region27: #{attention_forward.1} parent=0 // pred_check_branch
    %30 = sbr.rel (0) target = $region29
  $region28: #{attention_forward.1} parent=0 // pred_region
    _
  $region29: #{attention_forward.1} parent=0 // pred_fallthru
    _
  // Predicated region
  $region30: #{attention_forward.1} parent=0 // pred_check
    _
  $region31: #{attention_forward.1} parent=0 // pred_check_branch
    %32 = sbr.rel (0) target = $region33
  $region32: #{attention_forward.1} parent=0 // pred_region
    _
  $region33: #{attention_forward.1} parent=0 // pred_fallthru
    _
  // Predicated region
  $region34: #{attention_forward.1} parent=0 // pred_check
    _
  $region35: #{attention_forward.1} parent=0 // pred_check_branch
    %34 = sbr.rel (0) target = $region37
  $region36: #{attention_forward.1} parent=0 // pred_region
    _
  $region37: #{attention_forward.1} parent=0 // pred_fallthru
    _
  // Predicated region
  $region38: #{attention_forward.1} parent=0 // pred_check
    _
  $region39: #{attention_forward.1} parent=0 // pred_check_branch
    %36 = sbr.rel (0) target = $region41
  $region40: #{attention_forward.1} parent=0 // pred_region
    _
  $region41: #{attention_forward.1} parent=0 // pred_fallthru
    _
  // Predicated region
  $region42: #{attention_forward.1} parent=0 // pred_check
    _
  $region43: #{attention_forward.1} parent=0 // pred_check_branch
    %38 = sbr.rel (0) target = $region45
  $region44: #{attention_forward.1} parent=0 // pred_region
    _
  $region45: #{attention_forward.1} parent=0 // pred_fallthru
    _
  // Predicated region
  $region46: #{attention_forward.1} parent=0 // pred_check
    _
  $region47: #{attention_forward.1} parent=0 // pred_check_branch
    %40 = sbr.rel (0) target = $region49
  $region48: #{attention_forward.1} parent=0 // pred_region
    _
  $region49: #{attention_forward.1} parent=0 // pred_fallthru
    _
  %v41 = vld [vmem:[%s0] sm:$0xff]
  %v42 = vld [vmem:[%s0 + $0x8] sm:$0xff]
  %v43 = vld [vmem:[%s0 + $0x10] sm:$0xff]
  %v44 = vld [vmem:[%s0 + $0x18] sm:$0xff]
  %45 = vrot.lane.b32.xlu0 %v41, 17
  %v46 = vpop.permute.xlu0 %45
  %47 = vrot.lane.b32.xlu0 %v42, 17
  %v48 = vpop.permute.xlu0 %47
  %49 = vrot.lane.b32.xlu0 %v43, 17
  %v50 = vpop.permute.xlu0 %49
  %51 = vrot.lane.b32.xlu0 %v44, 17
  %v52 = vpop.permute.xlu0 %51
  %v53 = vlaneseq
  %v54 = vand.u32 %v53, 127
  %vm55 = vcmp.lt.s32.totalorder %v54, 17
  %v56 = vsel %vm55, %v50, %v52
  %v57 = vsel %vm55, %v48, %v50
  %v58 = vsel %vm55, %v46, %v48
  %v59 = vsel %vm55, %v52, %v46
  %v60 = vld [vmem:[%s1] sm:$0xff]
  %v61 = vld [vmem:[%s1 + $0x8] sm:$0xff]
  %v62 = vld [vmem:[%s1 + $0x10] sm:$0xff]
  %v63 = vld [vmem:[%s1 + $0x18] sm:$0xff]
  %v64 = vmul.f32 %v59, %v60
  %v65 = vmul.f32 %v58, %v61
  %v66 = vmul.f32 %v57, %v62
  %v67 = vmul.f32 %v56, %v63
  %68 = vrot.lane.b32.xlu0 %v41, 16
  %v69 = vpop.permute.xlu0 %68
  %70 = vrot.lane.b32.xlu0 %v42, 16
  %v71 = vpop.permute.xlu0 %70
  %72 = vrot.lane.b32.xlu0 %v43, 16
  %v73 = vpop.permute.xlu0 %72
  %74 = vrot.lane.b32.xlu0 %v44, 16
  %v75 = vpop.permute.xlu0 %74
  %vm76 = vcmp.lt.s32.totalorder %v54, 16
  %v77 = vsel %vm76, %v73, %v75
  %v78 = vsel %vm76, %v71, %v73
  %v79 = vsel %vm76, %v69, %v71
  %v80 = vsel %vm76, %v75, %v69
  %s81 = scalar_lea.vmem %s1, 32
  %v82 = vld [vmem:[%s81] sm:$0xff]
  %v83 = vld [vmem:[%s81 + $0x8] sm:$0xff]
  %v84 = vld [vmem:[%s81 + $0x10] sm:$0xff]
  %v85 = vld [vmem:[%s81 + $0x18] sm:$0xff]
  %v86 = vmul.f32 %v80, %v82
  %v87 = vmul.f32 %v79, %v83
  %v88 = vmul.f32 %v78, %v84
  %v89 = vmul.f32 %v77, %v85
  %90 = vrot.lane.b32.xlu0 %v41, 15
  %v91 = vpop.permute.xlu0 %90
  %92 = vrot.lane.b32.xlu0 %v42, 15
  %v93 = vpop.permute.xlu0 %92
  %94 = vrot.lane.b32.xlu0 %v43, 15
  %v95 = vpop.permute.xlu0 %94
  %96 = vrot.lane.b32.xlu0 %v44, 15
  %v97 = vpop.permute.xlu0 %96
  %vm98 = vcmp.lt.s32.totalorder %v54, 15
  %v99 = vsel %vm98, %v95, %v97
  %v100 = vsel %vm98, %v93, %v95
  %v101 = vsel %vm98, %v91, %v93
  %v102 = vsel %vm98, %v97, %v91
  %s103 = scalar_lea.vmem %s1, 64
  %v104 = vld [vmem:[%s103] sm:$0xff]
  %v105 = vld [vmem:[%s103 + $0x8] sm:$0xff]
  %v106 = vld [vmem:[%s103 + $0x10] sm:$0xff]
  %v107 = vld [vmem:[%s103 + $0x18] sm:$0xff]
  %v108 = vmul.f32 %v102, %v104
  %v109 = vmul.f32 %v101, %v105
  %v110 = vmul.f32 %v100, %v106
  %v111 = vmul.f32 %v99, %v107
  %112 = vrot.lane.b32.xlu0 %v41, 1
  %v113 = vpop.permute.xlu0 %112
  %114 = vrot.lane.b32.xlu0 %v42, 1
  %v115 = vpop.permute.xlu0 %114
  %116 = vrot.lane.b32.xlu0 %v43, 1
  %v117 = vpop.permute.xlu0 %116
  %118 = vrot.lane.b32.xlu0 %v44, 1
  %v119 = vpop.permute.xlu0 %118
  %vm120 = vcmp.lt.s32.totalorder %v54, 1
  %v121 = vsel %vm120, %v117, %v119
  %v122 = vsel %vm120, %v115, %v117
  %v123 = vsel %vm120, %v113, %v115
  %v124 = vsel %vm120, %v119, %v113
  %s125 = scalar_lea.vmem %s1, 96
  %v126 = vld [vmem:[%s125] sm:$0xff]
  %v127 = vld [vmem:[%s125 + $0x8] sm:$0xff]
  %v128 = vld [vmem:[%s125 + $0x10] sm:$0xff]
  %v129 = vld [vmem:[%s125 + $0x18] sm:$0xff]
  %v130 = vmul.f32 %v124, %v126
  %v131 = vmul.f32 %v123, %v127
  %v132 = vmul.f32 %v122, %v128
  %v133 = vmul.f32 %v121, %v129
  %134 = vrot.lane.b32.xlu0 %v41, 127
  %v135 = vpop.permute.xlu0 %134
  %136 = vrot.lane.b32.xlu0 %v42, 127
  %v137 = vpop.permute.xlu0 %136
  %138 = vrot.lane.b32.xlu0 %v43, 127
  %v139 = vpop.permute.xlu0 %138
  %140 = vrot.lane.b32.xlu0 %v44, 127
  %v141 = vpop.permute.xlu0 %140
  %vm142 = vcmp.lt.s32.totalorder %v54, 127
  %v143 = vsel %vm142, %v139, %v141
  %v144 = vsel %vm142, %v137, %v139
  %v145 = vsel %vm142, %v135, %v137
  %v146 = vsel %vm142, %v141, %v135
  %s147 = scalar_lea.vmem %s1, 160
  %v148 = vld [vmem:[%s147] sm:$0xff]
  %v149 = vld [vmem:[%s147 + $0x8] sm:$0xff]
  %v150 = vld [vmem:[%s147 + $0x10] sm:$0xff]
  %v151 = vld [vmem:[%s147 + $0x18] sm:$0xff]
  %v152 = vmul.f32 %v145, %v148
  %v153 = vmul.f32 %v144, %v149
  %v154 = vmul.f32 %v143, %v150
  %v155 = vmul.f32 %v146, %v151
  %156 = vrot.lane.b32.xlu0 %v41, 113
  %v157 = vpop.permute.xlu0 %156
  %158 = vrot.lane.b32.xlu0 %v42, 113
  %v159 = vpop.permute.xlu0 %158
  %160 = vrot.lane.b32.xlu0 %v43, 113
  %v161 = vpop.permute.xlu0 %160
  %162 = vrot.lane.b32.xlu0 %v44, 113
  %v163 = vpop.permute.xlu0 %162
  %vm164 = vcmp.lt.s32.totalorder %v54, 113
  %v165 = vsel %vm164, %v161, %v163
  %v166 = vsel %vm164, %v159, %v161
  %v167 = vsel %vm164, %v157, %v159
  %v168 = vsel %vm164, %v163, %v157
  %s169 = scalar_lea.vmem %s1, 192
  %v170 = vld [vmem:[%s169] sm:$0xff]
  %v171 = vld [vmem:[%s169 + $0x8] sm:$0xff]
  %v172 = vld [vmem:[%s169 + $0x10] sm:$0xff]
  %v173 = vld [vmem:[%s169 + $0x18] sm:$0xff]
  %v174 = vmul.f32 %v167, %v170
  %v175 = vmul.f32 %v166, %v171
  %v176 = vmul.f32 %v165, %v172
  %v177 = vmul.f32 %v168, %v173
  %178 = vrot.lane.b32.xlu0 %v41, 112
  %v179 = vpop.permute.xlu0 %178
  %180 = vrot.lane.b32.xlu0 %v42, 112
  %v181 = vpop.permute.xlu0 %180
  %182 = vrot.lane.b32.xlu0 %v43, 112
  %v183 = vpop.permute.xlu0 %182
  %184 = vrot.lane.b32.xlu0 %v44, 112
  %v185 = vpop.permute.xlu0 %184
  %vm186 = vcmp.lt.s32.totalorder %v54, 112
  %v187 = vsel %vm186, %v183, %v185
  %v188 = vsel %vm186, %v181, %v183
  %v189 = vsel %vm186, %v179, %v181
  %v190 = vsel %vm186, %v185, %v179
  %s191 = scalar_lea.vmem %s1, 224
  %v192 = vld [vmem:[%s191] sm:$0xff]
  %v193 = vld [vmem:[%s191 + $0x8] sm:$0xff]
  %v194 = vld [vmem:[%s191 + $0x10] sm:$0xff]
  %v195 = vld [vmem:[%s191 + $0x18] sm:$0xff]
  %v196 = vmul.f32 %v189, %v192
  %v197 = vmul.f32 %v188, %v193
  %v198 = vmul.f32 %v187, %v194
  %v199 = vmul.f32 %v190, %v195
  %200 = vrot.lane.b32.xlu0 %v41, 111
  %v201 = vpop.permute.xlu0 %200
  %202 = vrot.lane.b32.xlu0 %v42, 111
  %v203 = vpop.permute.xlu0 %202
  %204 = vrot.lane.b32.xlu0 %v43, 111
  %v205 = vpop.permute.xlu0 %204
  %206 = vrot.lane.b32.xlu0 %v44, 111
  %v207 = vpop.permute.xlu0 %206
  %vm208 = vcmp.lt.s32.totalorder %v54, 111
  %v209 = vsel %vm208, %v205, %v207
  %v210 = vsel %vm208, %v203, %v205
  %v211 = vsel %vm208, %v201, %v203
  %v212 = vsel %vm208, %v207, %v201
  %s213 = scalar_lea.vmem %s1, 256
  %v214 = vld [vmem:[%s213] sm:$0xff]
  %v215 = vld [vmem:[%s213 + $0x8] sm:$0xff]
  %v216 = vld [vmem:[%s213 + $0x10] sm:$0xff]
  %v217 = vld [vmem:[%s213 + $0x18] sm:$0xff]
  %v218 = vmul.f32 %v211, %v214
  %v219 = vmul.f32 %v210, %v215
  %v220 = vmul.f32 %v209, %v216
  %v221 = vmul.f32 %v212, %v217
  %v222 = vld [vmem:[%s4] sm:$0xff]
  %v223 = vld [vmem:[%s4 + $0x8] sm:$0xff]
  %v224 = vld [vmem:[%s4 + $0x10] sm:$0xff]
  %v225 = vld [vmem:[%s4 + $0x18] sm:$0xff]
  %v226 = vld [vmem:[%s4 + $0x20] sm:$0xff]
  %v227 = vld [vmem:[%s4 + $0x28] sm:$0xff]
  %v228 = vld [vmem:[%s4 + $0x30] sm:$0xff]
  %v229 = vld [vmem:[%s4 + $0x38] sm:$0xff]
  %v230 = vld [vmem:[%s5] sm:$0xff]
  %v231 = vld [vmem:[%s5 + $0x8] sm:$0xff]
  %v232 = vld [vmem:[%s5 + $0x10] sm:$0xff]
  %v233 = vld [vmem:[%s5 + $0x18] sm:$0xff]
  %v234 = vld [vmem:[%s5 + $0x20] sm:$0xff]
  %v235 = vld [vmem:[%s5 + $0x28] sm:$0xff]
  %v236 = vld [vmem:[%s5 + $0x30] sm:$0xff]
  %v237 = vld [vmem:[%s5 + $0x38] sm:$0xff]
  %v238 = vld [vmem:[%s5 + $0x40] sm:$0xff]
  %v239 = vld [vmem:[%s5 + $0x48] sm:$0xff]
  %v240 = vld [vmem:[%s5 + $0x50] sm:$0xff]
  %v241 = vld [vmem:[%s5 + $0x58] sm:$0xff]
  %v242 = vld [vmem:[%s5 + $0x60] sm:$0xff]
  %v243 = vld [vmem:[%s5 + $0x68] sm:$0xff]
  %v244 = vld [vmem:[%s5 + $0x70] sm:$0xff]
  %v245 = vld [vmem:[%s5 + $0x78] sm:$0xff]
  %v246 = vld [vmem:[%s5 + $0x80] sm:$0xff]
  %v247 = vld [vmem:[%s5 + $0x88] sm:$0xff]
  %v248 = vld [vmem:[%s5 + $0x90] sm:$0xff]
  %v249 = vld [vmem:[%s5 + $0x98] sm:$0xff]
  %v250 = vld [vmem:[%s5 + $0xa0] sm:$0xff]
  %v251 = vld [vmem:[%s5 + $0xa8] sm:$0xff]
  %v252 = vld [vmem:[%s5 + $0xb0] sm:$0xff]
  %v253 = vld [vmem:[%s5 + $0xb8] sm:$0xff]
  %v254 = vld [vmem:[%s5 + $0xc0] sm:$0xff]
  %v255 = vld [vmem:[%s5 + $0xc8] sm:$0xff]
  %v256 = vld [vmem:[%s5 + $0xd0] sm:$0xff]
  %v257 = vld [vmem:[%s5 + $0xd8] sm:$0xff]
  %v258 = vld [vmem:[%s5 + $0xe0] sm:$0xff]
  %v259 = vld [vmem:[%s5 + $0xe8] sm:$0xff]
  %v260 = vld [vmem:[%s5 + $0xf0] sm:$0xff]
  %v261 = vld [vmem:[%s5 + $0xf8] sm:$0xff]
  %vm262 = vcmask 588800
  %v264 = vsel %vm262, %v222, 0
  %v267 = vsel %vm262, %v223, 0
  %v270 = vsel %vm262, %v224, 0
  %v273 = vsel %vm262, %v225, 0
  %v276 = vsel %vm262, %v226, 0
  %v279 = vsel %vm262, %v227, 0
  %v282 = vsel %vm262, %v228, 0
  %v285 = vsel %vm262, %v229, 0
  %287 = vmatprep.subr.mxu0 0.0
  %288 = vmatpush1.msra.mxu0 0.0
  %289 = vmatprep.subr.mxu0 0.0
  %290 = vmatpush1.msra.mxu0 0.0
  %291 = vmatprep.subr.mxu0 0.0
  %292 = vmatpush1.msra.mxu0 0.0
  %293 = vmatprep.subr.mxu0 0.0
  %294 = vmatpush1.msra.mxu0 0.0
  %295 = vmatprep.subr.mxu0 0.0
  %296 = vmatpush1.msra.mxu0 0.0
  %297 = vmatprep.subr.mxu0 0.0
  %298 = vmatpush1.msra.mxu0 0.0
  %299 = vmatprep.subr.mxu0 0.0
  %300 = vmatpush1.msra.mxu0 0.0
  %301 = vmatprep.subr.mxu0 %v219
  %302 = vmatpush1.msra.mxu0 %v218
  %303 = vmatprep.subr.mxu0 %v197
  %304 = vmatpush1.msra.mxu0 %v196
  %305 = vmatprep.subr.mxu0 %v175
  %306 = vmatpush1.msra.mxu0 %v174
  %307 = vmatprep.subr.mxu0 %v153
  %308 = vmatpush1.msra.mxu0 %v152
  %309 = vmatprep.subr.mxu0 %v42
  %310 = vmatpush1.msra.mxu0 %v41
  %311 = vmatprep.subr.mxu0 %v131
  %312 = vmatpush1.msra.mxu0 %v130
  %313 = vmatprep.subr.mxu0 %v109
  %314 = vmatpush1.msra.mxu0 %v108
  %315 = vmatprep.subr.mxu0 %v87
  %316 = vmatpush1.msra.mxu0 %v86
  %317 = vmatprep.subr.mxu0 %v65
  %318 = vmatpush1.msra.mxu0 %v64
  %319 = vmatprep.subr.mxu0 0.0
  %320 = vmatpush2.msra.mxu0 0.0
  %321 = vmatprep.subr.mxu0 0.0
  %322 = vmatpush2.msra.mxu0 0.0
  %323 = vmatprep.subr.mxu0 0.0
  %324 = vmatpush2.msra.mxu0 0.0
  %325 = vmatprep.subr.mxu0 0.0
  %326 = vmatpush2.msra.mxu0 0.0
  %327 = vmatprep.subr.mxu0 0.0
  %328 = vmatpush2.msra.mxu0 0.0
  %329 = vmatprep.subr.mxu0 0.0
  %330 = vmatpush2.msra.mxu0 0.0
  %331 = vmatprep.subr.mxu0 0.0
  %332 = vmatpush2.msra.mxu0 0.0
  %333 = vmatprep.subr.mxu0 0.0
  %334 = vmatpush2.msra.mxu0 0.0
  %335 = vmatprep.subr.mxu0 0.0
  %336 = vmatpush2.msra.mxu0 0.0
  %337 = vmatprep.subr.mxu0 0.0
  %338 = vmatpush2.msra.mxu0 0.0
  %339 = vmatprep.subr.mxu0 0.0
  %340 = vmatpush2.msra.mxu0 0.0
  %341 = vmatprep.subr.mxu0 0.0
  %342 = vmatpush2.msra.mxu0 0.0
  %343 = vmatprep.subr.mxu0 0.0
  %344 = vmatpush2.msra.mxu0 0.0
  %345 = vmatprep.subr.mxu0 0.0
  %346 = vmatpush2.msra.mxu0 0.0
  %347 = vmatprep.subr.mxu0 0.0
  %348 = vmatpush2.msra.mxu0 0.0
  %349 = vmatprep.subr.mxu0 0.0
  %350 = vmatpush2.msra.mxu0 0.0
  %351 = vmatprep.mubr.f32.mxu0 0.0
  %352 = vmatmul.mubr.f32.gmra.mxu0 %v264
  %v353 = vpop.f32.mrf.mxu0
  %v354 = vadd.f32 %v230, %v353
  %v355 = vpop.f32.mrf.mxu0
  %v356 = vadd.f32 %v231, %v355
  %357 = vmatprep.mubr.f32.mxu0 0.0
  %358 = vmatmul.mubr.f32.gmra.mxu0 %v267
  %v359 = vpop.f32.mrf.mxu0
  %v360 = vadd.f32 %v234, %v359
  %v361 = vpop.f32.mrf.mxu0
  %v362 = vadd.f32 %v235, %v361
  %363 = vmatprep.mubr.f32.mxu0 0.0
  %364 = vmatmul.mubr.f32.gmra.mxu0 %v270
  %v365 = vpop.f32.mrf.mxu0
  %v366 = vadd.f32 %v238, %v365
  %v367 = vpop.f32.mrf.mxu0
  %v368 = vadd.f32 %v239, %v367
  %369 = vmatprep.mubr.f32.mxu0 0.0
  %370 = vmatmul.mubr.f32.gmra.mxu0 %v273
  %v371 = vpop.f32.mrf.mxu0
  %v372 = vadd.f32 %v242, %v371
  %v373 = vpop.f32.mrf.mxu0
  %v374 = vadd.f32 %v243, %v373
  %375 = vmatprep.mubr.f32.mxu0 0.0
  %376 = vmatmul.mubr.f32.gmra.mxu0 %v276
  %v377 = vpop.f32.mrf.mxu0
  %v378 = vadd.f32 %v246, %v377
  %v379 = vpop.f32.mrf.mxu0
  %v380 = vadd.f32 %v247, %v379
  %381 = vmatprep.mubr.f32.mxu0 0.0
  %382 = vmatmul.mubr.f32.gmra.mxu0 %v279
  %v383 = vpop.f32.mrf.mxu0
  %v384 = vadd.f32 %v250, %v383
  %v385 = vpop.f32.mrf.mxu0
  %v386 = vadd.f32 %v251, %v385
  %387 = vmatprep.mubr.f32.mxu0 0.0
  %388 = vmatmul.mubr.f32.gmra.mxu0 %v282
  %v389 = vpop.f32.mrf.mxu0
  %v390 = vadd.f32 %v254, %v389
  %v391 = vpop.f32.mrf.mxu0
  %v392 = vadd.f32 %v255, %v391
  %393 = vmatprep.mubr.f32.mxu0 0.0
  %394 = vmatmul.mubr.f32.gmra.mxu0 %v285
  %v395 = vpop.f32.mrf.mxu0
  %v396 = vadd.f32 %v258, %v395
  %v397 = vpop.f32.mrf.mxu0
  %v398 = vadd.f32 %v259, %v397
  %399 = vdwg.mxu0
  %400 = vmatprep.subr.mxu0 0.0
  %401 = vmatpush1.msra.mxu0 0.0
  %402 = vmatprep.subr.mxu0 0.0
  %403 = vmatpush1.msra.mxu0 0.0
  %404 = vmatprep.subr.mxu0 0.0
  %405 = vmatpush1.msra.mxu0 0.0
  %406 = vmatprep.subr.mxu0 0.0
  %407 = vmatpush1.msra.mxu0 0.0
  %408 = vmatprep.subr.mxu0 0.0
  %409 = vmatpush1.msra.mxu0 0.0
  %410 = vmatprep.subr.mxu0 0.0
  %411 = vmatpush1.msra.mxu0 0.0
  %412 = vmatprep.subr.mxu0 0.0
  %413 = vmatpush1.msra.mxu0 0.0
  %414 = vmatprep.subr.mxu0 %v221
  %415 = vmatpush1.msra.mxu0 %v220
  %416 = vmatprep.subr.mxu0 %v199
  %417 = vmatpush1.msra.mxu0 %v198
  %418 = vmatprep.subr.mxu0 %v177
  %419 = vmatpush1.msra.mxu0 %v176
  %420 = vmatprep.subr.mxu0 %v155
  %421 = vmatpush1.msra.mxu0 %v154
  %422 = vmatprep.subr.mxu0 %v44
  %423 = vmatpush1.msra.mxu0 %v43
  %424 = vmatprep.subr.mxu0 %v133
  %425 = vmatpush1.msra.mxu0 %v132
  %426 = vmatprep.subr.mxu0 %v111
  %427 = vmatpush1.msra.mxu0 %v110
  %428 = vmatprep.subr.mxu0 %v89
  %429 = vmatpush1.msra.mxu0 %v88
  %430 = vmatprep.subr.mxu0 %v67
  %431 = vmatpush1.msra.mxu0 %v66
  %432 = vmatprep.subr.mxu0 0.0
  %433 = vmatpush2.msra.mxu0 0.0
  %434 = vmatprep.subr.mxu0 0.0
  %435 = vmatpush2.msra.mxu0 0.0
  %436 = vmatprep.subr.mxu0 0.0
  %437 = vmatpush2.msra.mxu0 0.0
  %438 = vmatprep.subr.mxu0 0.0
  %439 = vmatpush2.msra.mxu0 0.0
  %440 = vmatprep.subr.mxu0 0.0
  %441 = vmatpush2.msra.mxu0 0.0
  %442 = vmatprep.subr.mxu0 0.0
  %443 = vmatpush2.msra.mxu0 0.0
  %444 = vmatprep.subr.mxu0 0.0
  %445 = vmatpush2.msra.mxu0 0.0
  %446 = vmatprep.subr.mxu0 0.0
  %447 = vmatpush2.msra.mxu0 0.0
  %448 = vmatprep.subr.mxu0 0.0
  %449 = vmatpush2.msra.mxu0 0.0
  %450 = vmatprep.subr.mxu0 0.0
  %451 = vmatpush2.msra.mxu0 0.0
  %452 = vmatprep.subr.mxu0 0.0
  %453 = vmatpush2.msra.mxu0 0.0
  %454 = vmatprep.subr.mxu0 0.0
  %455 = vmatpush2.msra.mxu0 0.0
  %456 = vmatprep.subr.mxu0 0.0
  %457 = vmatpush2.msra.mxu0 0.0
  %458 = vmatprep.subr.mxu0 0.0
  %459 = vmatpush2.msra.mxu0 0.0
  %460 = vmatprep.subr.mxu0 0.0
  %461 = vmatpush2.msra.mxu0 0.0
  %462 = vmatprep.subr.mxu0 0.0
  %463 = vmatpush2.msra.mxu0 0.0
  %464 = vmatprep.mubr.f32.mxu0 0.0
  %465 = vmatmul.mubr.f32.gmra.mxu0 %v264
  %v466 = vpop.f32.mrf.mxu0
  %v467 = vadd.f32 %v232, %v466
  %v468 = vpop.f32.mrf.mxu0
  %v469 = vadd.f32 %v233, %v468
  %470 = vmatprep.mubr.f32.mxu0 0.0
  %471 = vmatmul.mubr.f32.gmra.mxu0 %v267
  %v472 = vpop.f32.mrf.mxu0
  %v473 = vadd.f32 %v236, %v472
  %v474 = vpop.f32.mrf.mxu0
  %v475 = vadd.f32 %v237, %v474
  %476 = vmatprep.mubr.f32.mxu0 0.0
  %477 = vmatmul.mubr.f32.gmra.mxu0 %v270
  %v478 = vpop.f32.mrf.mxu0
  %v479 = vadd.f32 %v240, %v478
  %v480 = vpop.f32.mrf.mxu0
  %v481 = vadd.f32 %v241, %v480
  %482 = vmatprep.mubr.f32.mxu0 0.0
  %483 = vmatmul.mubr.f32.gmra.mxu0 %v273
  %v484 = vpop.f32.mrf.mxu0
  %v485 = vadd.f32 %v244, %v484
  %v486 = vpop.f32.mrf.mxu0
  %v487 = vadd.f32 %v245, %v486
  %488 = vmatprep.mubr.f32.mxu0 0.0
  %489 = vmatmul.mubr.f32.gmra.mxu0 %v276
  %v490 = vpop.f32.mrf.mxu0
  %v491 = vadd.f32 %v248, %v490
  %v492 = vpop.f32.mrf.mxu0
  %v493 = vadd.f32 %v249, %v492
  %494 = vmatprep.mubr.f32.mxu0 0.0
  %495 = vmatmul.mubr.f32.gmra.mxu0 %v279
  %v496 = vpop.f32.mrf.mxu0
  %v497 = vadd.f32 %v252, %v496
  %v498 = vpop.f32.mrf.mxu0
  %v499 = vadd.f32 %v253, %v498
  %500 = vmatprep.mubr.f32.mxu0 0.0
  %501 = vmatmul.mubr.f32.gmra.mxu0 %v282
  %v502 = vpop.f32.mrf.mxu0
  %v503 = vadd.f32 %v256, %v502
  %v504 = vpop.f32.mrf.mxu0
  %v505 = vadd.f32 %v257, %v504
  %506 = vmatprep.mubr.f32.mxu0 0.0
  %507 = vmatmul.mubr.f32.gmra.mxu0 %v285
  %v508 = vpop.f32.mrf.mxu0
  %v509 = vadd.f32 %v260, %v508
  %v510 = vpop.f32.mrf.mxu0
  %v511 = vadd.f32 %v261, %v510
  %512 = vdwg.mxu0
  %v513 = vmax.f32 %v354, 0.0
  %v514 = vmax.f32 %v356, 0.0
  %v515 = vmax.f32 %v467, 0.0
  %v516 = vmax.f32 %v469, 0.0
  %v517 = vmax.f32 %v360, 0.0
  %v518 = vmax.f32 %v362, 0.0
  %v519 = vmax.f32 %v473, 0.0
  %v520 = vmax.f32 %v475, 0.0
  %v521 = vmax.f32 %v366, 0.0
  %v522 = vmax.f32 %v368, 0.0
  %v523 = vmax.f32 %v479, 0.0
  %v524 = vmax.f32 %v481, 0.0
  %v525 = vmax.f32 %v372, 0.0
  %v526 = vmax.f32 %v374, 0.0
  %v527 = vmax.f32 %v485, 0.0
  %v528 = vmax.f32 %v487, 0.0
  %v529 = vmax.f32 %v378, 0.0
  %v530 = vmax.f32 %v380, 0.0
  %v531 = vmax.f32 %v491, 0.0
  %v532 = vmax.f32 %v493, 0.0
  %v533 = vmax.f32 %v384, 0.0
  %v534 = vmax.f32 %v386, 0.0
  %v535 = vmax.f32 %v497, 0.0
  %v536 = vmax.f32 %v499, 0.0
  %v537 = vmax.f32 %v390, 0.0
  %v538 = vmax.f32 %v392, 0.0
  %v539 = vmax.f32 %v503, 0.0
  %v540 = vmax.f32 %v505, 0.0
  %v541 = vmax.f32 %v396, 0.0
  %v542 = vmax.f32 %v398, 0.0
  %v543 = vmax.f32 %v509, 0.0
  %v544 = vmax.f32 %v511, 0.0
  %v545 = vld [vmem:[%s3] sm:$0xff]
  %v546 = vld [vmem:[%s3 + $0x8] sm:$0xff]
  %v547 = vld [vmem:[%s3 + $0x10] sm:$0xff]
  %v548 = vld [vmem:[%s3 + $0x18] sm:$0xff]
  %v549 = vld [vmem:[%s3 + $0x20] sm:$0xff]
  %v550 = vld [vmem:[%s3 + $0x28] sm:$0xff]
  %v551 = vld [vmem:[%s3 + $0x30] sm:$0xff]
  %v552 = vld [vmem:[%s3 + $0x38] sm:$0xff]
  %v553 = vld [vmem:[%s3 + $0x40] sm:$0xff]
  %v554 = vld [vmem:[%s3 + $0x48] sm:$0xff]
  %v555 = vld [vmem:[%s3 + $0x50] sm:$0xff]
  %v556 = vld [vmem:[%s3 + $0x58] sm:$0xff]
  %v557 = vld [vmem:[%s3 + $0x60] sm:$0xff]
  %v558 = vld [vmem:[%s3 + $0x68] sm:$0xff]
  %v559 = vld [vmem:[%s3 + $0x70] sm:$0xff]
  %v560 = vld [vmem:[%s3 + $0x78] sm:$0xff]
  %v561 = vld [vmem:[%s3 + $0x80] sm:$0xff]
  %v562 = vld [vmem:[%s3 + $0x88] sm:$0xff]
  %v563 = vld [vmem:[%s3 + $0x90] sm:$0xff]
  %v564 = vld [vmem:[%s3 + $0x98] sm:$0xff]
  %v565 = vld [vmem:[%s3 + $0xa0] sm:$0xff]
  %v566 = vld [vmem:[%s3 + $0xa8] sm:$0xff]
  %v567 = vld [vmem:[%s3 + $0xb0] sm:$0xff]
  %v568 = vld [vmem:[%s3 + $0xb8] sm:$0xff]
  %v569 = vld [vmem:[%s3 + $0xc0] sm:$0xff]
  %v570 = vld [vmem:[%s3 + $0xc8] sm:$0xff]
  %v571 = vld [vmem:[%s3 + $0xd0] sm:$0xff]
  %v572 = vld [vmem:[%s3 + $0xd8] sm:$0xff]
  %v573 = vld [vmem:[%s3 + $0xe0] sm:$0xff]
  %v574 = vld [vmem:[%s3 + $0xe8] sm:$0xff]
  %v575 = vld [vmem:[%s3 + $0xf0] sm:$0xff]
  %v576 = vld [vmem:[%s3 + $0xf8] sm:$0xff]
  %v577 = vld [vmem:[%s3 + $0x100] sm:$0xff]
  %v578 = vld [vmem:[%s3 + $0x108] sm:$0xff]
  %v579 = vld [vmem:[%s3 + $0x110] sm:$0xff]
  %v580 = vld [vmem:[%s3 + $0x118] sm:$0xff]
  %v581 = vld [vmem:[%s3 + $0x120] sm:$0xff]
  %v582 = vld [vmem:[%s3 + $0x128] sm:$0xff]
  %v583 = vld [vmem:[%s3 + $0x130] sm:$0xff]
  %v584 = vld [vmem:[%s3 + $0x138] sm:$0xff]
  %v585 = vld [vmem:[%s3 + $0x140] sm:$0xff]
  %v586 = vld [vmem:[%s3 + $0x148] sm:$0xff]
  %v587 = vld [vmem:[%s3 + $0x150] sm:$0xff]
  %v588 = vld [vmem:[%s3 + $0x158] sm:$0xff]
  %v589 = vld [vmem:[%s3 + $0x160] sm:$0xff]
  %v590 = vld [vmem:[%s3 + $0x168] sm:$0xff]
  %v591 = vld [vmem:[%s3 + $0x170] sm:$0xff]
  %v592 = vld [vmem:[%s3 + $0x178] sm:$0xff]
  %v593 = vld [vmem:[%s3 + $0x180] sm:$0xff]
  %v594 = vld [vmem:[%s3 + $0x188] sm:$0xff]
  %v595 = vld [vmem:[%s3 + $0x190] sm:$0xff]
  %v596 = vld [vmem:[%s3 + $0x198] sm:$0xff]
  %v597 = vld [vmem:[%s3 + $0x1a0] sm:$0xff]
  %v598 = vld [vmem:[%s3 + $0x1a8] sm:$0xff]
  %v599 = vld [vmem:[%s3 + $0x1b0] sm:$0xff]
  %v600 = vld [vmem:[%s3 + $0x1b8] sm:$0xff]
  %v601 = vld [vmem:[%s3 + $0x1c0] sm:$0xff]
  %v602 = vld [vmem:[%s3 + $0x1c8] sm:$0xff]
  %v603 = vld [vmem:[%s3 + $0x1d0] sm:$0xff]
  %v604 = vld [vmem:[%s3 + $0x1d8] sm:$0xff]
  %v605 = vld [vmem:[%s3 + $0x1e0] sm:$0xff]
  %v606 = vld [vmem:[%s3 + $0x1e8] sm:$0xff]
  %v607 = vld [vmem:[%s3 + $0x1f0] sm:$0xff]
  %v608 = vld [vmem:[%s3 + $0x1f8] sm:$0xff]
  %609 = vmatprep.subr.mxu0 0.0
  %610 = vmatpush1.msra.mxu0 %v560
  %611 = vmatprep.subr.mxu0 0.0
  %612 = vmatpush1.msra.mxu0 %v559
  %613 = vmatprep.subr.mxu0 0.0
  %614 = vmatpush1.msra.mxu0 %v558
  %615 = vmatprep.subr.mxu0 0.0
  %616 = vmatpush1.msra.mxu0 %v557
  %617 = vmatprep.subr.mxu0 0.0
  %618 = vmatpush1.msra.mxu0 %v556
  %619 = vmatprep.subr.mxu0 0.0
  %620 = vmatpush1.msra.mxu0 %v555
  %621 = vmatprep.subr.mxu0 0.0
  %622 = vmatpush1.msra.mxu0 %v554
  %623 = vmatprep.subr.mxu0 0.0
  %624 = vmatpush1.msra.mxu0 %v553
  %625 = vmatprep.subr.mxu0 0.0
  %626 = vmatpush1.msra.mxu0 %v552
  %627 = vmatprep.subr.mxu0 0.0
  %628 = vmatpush1.msra.mxu0 %v551
  %629 = vmatprep.subr.mxu0 0.0
  %630 = vmatpush1.msra.mxu0 %v550
  %631 = vmatprep.subr.mxu0 0.0
  %632 = vmatpush1.msra.mxu0 %v549
  %633 = vmatprep.subr.mxu0 0.0
  %634 = vmatpush1.msra.mxu0 %v548
  %635 = vmatprep.subr.mxu0 0.0
  %636 = vmatpush1.msra.mxu0 %v547
  %637 = vmatprep.subr.mxu0 0.0
  %638 = vmatpush1.msra.mxu0 %v546
  %639 = vmatprep.subr.mxu0 0.0
  %640 = vmatpush1.msra.mxu0 %v545
  %641 = vmatprep.subr.mxu0 0.0
  %642 = vmatpush2.msra.mxu0 %v576
  %643 = vmatprep.subr.mxu0 0.0
  %644 = vmatpush2.msra.mxu0 %v575
  %645 = vmatprep.subr.mxu0 0.0
  %646 = vmatpush2.msra.mxu0 %v574
  %647 = vmatprep.subr.mxu0 0.0
  %648 = vmatpush2.msra.mxu0 %v573
  %649 = vmatprep.subr.mxu0 0.0
  %650 = vmatpush2.msra.mxu0 %v572
  %651 = vmatprep.subr.mxu0 0.0
  %652 = vmatpush2.msra.mxu0 %v571
  %653 = vmatprep.subr.mxu0 0.0
  %654 = vmatpush2.msra.mxu0 %v570
  %655 = vmatprep.subr.mxu0 0.0
  %656 = vmatpush2.msra.mxu0 %v569
  %657 = vmatprep.subr.mxu0 0.0
  %658 = vmatpush2.msra.mxu0 %v568
  %659 = vmatprep.subr.mxu0 0.0
  %660 = vmatpush2.msra.mxu0 %v567
  %661 = vmatprep.subr.mxu0 0.0
  %662 = vmatpush2.msra.mxu0 %v566
  %663 = vmatprep.subr.mxu0 0.0
  %664 = vmatpush2.msra.mxu0 %v565
  %665 = vmatprep.subr.mxu0 0.0
  %666 = vmatpush2.msra.mxu0 %v564
  %667 = vmatprep.subr.mxu0 0.0
  %668 = vmatpush2.msra.mxu0 %v563
  %669 = vmatprep.subr.mxu0 0.0
  %670 = vmatpush2.msra.mxu0 %v562
  %671 = vmatprep.subr.mxu0 0.0
  %672 = vmatpush2.msra.mxu0 %v561
  %673 = vmatprep.mubr.f32.mxu0 %v514
  %674 = vmatmul.mubr.f32.gmra.mxu0 %v513
  %v675 = vpop.f32.mrf.mxu0
  %v676 = vadd.f32 0.0, %v675
  %v677 = vpop.f32.mrf.mxu0
  %678 = vmatprep.mubr.f32.mxu0 %v518
  %679 = vmatmul.mubr.f32.gmra.mxu0 %v517
  %v680 = vpop.f32.mrf.mxu0
  %v681 = vadd.f32 0.0, %v680
  %v682 = vpop.f32.mrf.mxu0
  %683 = vmatprep.mubr.f32.mxu0 %v522
  %684 = vmatmul.mubr.f32.gmra.mxu0 %v521
  %v685 = vpop.f32.mrf.mxu0
  %v686 = vadd.f32 0.0, %v685
  %v687 = vpop.f32.mrf.mxu0
  %688 = vmatprep.mubr.f32.mxu0 %v526
  %689 = vmatmul.mubr.f32.gmra.mxu0 %v525
  %v690 = vpop.f32.mrf.mxu0
  %v691 = vadd.f32 0.0, %v690
  %v692 = vpop.f32.mrf.mxu0
  %693 = vmatprep.mubr.f32.mxu0 %v530
  %694 = vmatmul.mubr.f32.gmra.mxu0 %v529
  %v695 = vpop.f32.mrf.mxu0
  %v696 = vadd.f32 0.0, %v695
  %v697 = vpop.f32.mrf.mxu0
  %698 = vmatprep.mubr.f32.mxu0 %v534
  %699 = vmatmul.mubr.f32.gmra.mxu0 %v533
  %v700 = vpop.f32.mrf.mxu0
  %v701 = vadd.f32 0.0, %v700
  %v702 = vpop.f32.mrf.mxu0
  %703 = vmatprep.mubr.f32.mxu0 %v538
  %704 = vmatmul.mubr.f32.gmra.mxu0 %v537
  %v705 = vpop.f32.mrf.mxu0
  %v706 = vadd.f32 0.0, %v705
  %v707 = vpop.f32.mrf.mxu0
  %708 = vmatprep.mubr.f32.mxu0 %v542
  %709 = vmatmul.mubr.f32.gmra.mxu0 %v541
  %v710 = vpop.f32.mrf.mxu0
  %v711 = vadd.f32 0.0, %v710
  %v712 = vpop.f32.mrf.mxu0
  %713 = vdwg.mxu0
  %714 = vmatprep.subr.mxu0 0.0
  %715 = vmatpush1.msra.mxu0 %v592
  %716 = vmatprep.subr.mxu0 0.0
  %717 = vmatpush1.msra.mxu0 %v591
  %718 = vmatprep.subr.mxu0 0.0
  %719 = vmatpush1.msra.mxu0 %v590
  %720 = vmatprep.subr.mxu0 0.0
  %721 = vmatpush1.msra.mxu0 %v589
  %722 = vmatprep.subr.mxu0 0.0
  %723 = vmatpush1.msra.mxu0 %v588
  %724 = vmatprep.subr.mxu0 0.0
  %725 = vmatpush1.msra.mxu0 %v587
  %726 = vmatprep.subr.mxu0 0.0
  %727 = vmatpush1.msra.mxu0 %v586
  %728 = vmatprep.subr.mxu0 0.0
  %729 = vmatpush1.msra.mxu0 %v585
  %730 = vmatprep.subr.mxu0 0.0
  %731 = vmatpush1.msra.mxu0 %v584
  %732 = vmatprep.subr.mxu0 0.0
  %733 = vmatpush1.msra.mxu0 %v583
  %734 = vmatprep.subr.mxu0 0.0
  %735 = vmatpush1.msra.mxu0 %v582
  %736 = vmatprep.subr.mxu0 0.0
  %737 = vmatpush1.msra.mxu0 %v581
  %738 = vmatprep.subr.mxu0 0.0
  %739 = vmatpush1.msra.mxu0 %v580
  %740 = vmatprep.subr.mxu0 0.0
  %741 = vmatpush1.msra.mxu0 %v579
  %742 = vmatprep.subr.mxu0 0.0
  %743 = vmatpush1.msra.mxu0 %v578
  %744 = vmatprep.subr.mxu0 0.0
  %745 = vmatpush1.msra.mxu0 %v577
  %746 = vmatprep.subr.mxu0 0.0
  %747 = vmatpush2.msra.mxu0 %v608
  %748 = vmatprep.subr.mxu0 0.0
  %749 = vmatpush2.msra.mxu0 %v607
  %750 = vmatprep.subr.mxu0 0.0
  %751 = vmatpush2.msra.mxu0 %v606
  %752 = vmatprep.subr.mxu0 0.0
  %753 = vmatpush2.msra.mxu0 %v605
  %754 = vmatprep.subr.mxu0 0.0
  %755 = vmatpush2.msra.mxu0 %v604
  %756 = vmatprep.subr.mxu0 0.0
  %757 = vmatpush2.msra.mxu0 %v603
  %758 = vmatprep.subr.mxu0 0.0
  %759 = vmatpush2.msra.mxu0 %v602
  %760 = vmatprep.subr.mxu0 0.0
  %761 = vmatpush2.msra.mxu0 %v601
  %762 = vmatprep.subr.mxu0 0.0
  %763 = vmatpush2.msra.mxu0 %v600
  %764 = vmatprep.subr.mxu0 0.0
  %765 = vmatpush2.msra.mxu0 %v599
  %766 = vmatprep.subr.mxu0 0.0
  %767 = vmatpush2.msra.mxu0 %v598
  %768 = vmatprep.subr.mxu0 0.0
  %769 = vmatpush2.msra.mxu0 %v597
  %770 = vmatprep.subr.mxu0 0.0
  %771 = vmatpush2.msra.mxu0 %v596
  %772 = vmatprep.subr.mxu0 0.0
  %773 = vmatpush2.msra.mxu0 %v595
  %774 = vmatprep.subr.mxu0 0.0
  %775 = vmatpush2.msra.mxu0 %v594
  %776 = vmatprep.subr.mxu0 0.0
  %777 = vmatpush2.msra.mxu0 %v593
  %778 = vmatprep.mubr.f32.mxu0 %v516
  %779 = vmatmul.mubr.f32.gmra.mxu0 %v515
  %v780 = vpop.f32.mrf.mxu0
  %v781 = vadd.f32 %v676, %v780
  %v782 = vpop.f32.mrf.mxu0
  %783 = vmatprep.mubr.f32.mxu0 %v520
  %784 = vmatmul.mubr.f32.gmra.mxu0 %v519
  %v785 = vpop.f32.mrf.mxu0
  %v786 = vadd.f32 %v681, %v785
  %v787 = vpop.f32.mrf.mxu0
  %788 = vmatprep.mubr.f32.mxu0 %v524
  %789 = vmatmul.mubr.f32.gmra.mxu0 %v523
  %v790 = vpop.f32.mrf.mxu0
  %v791 = vadd.f32 %v686, %v790
  %v792 = vpop.f32.mrf.mxu0
  %793 = vmatprep.mubr.f32.mxu0 %v528
  %794 = vmatmul.mubr.f32.gmra.mxu0 %v527
  %v795 = vpop.f32.mrf.mxu0
  %v796 = vadd.f32 %v691, %v795
  %v797 = vpop.f32.mrf.mxu0
  %798 = vmatprep.mubr.f32.mxu0 %v532
  %799 = vmatmul.mubr.f32.gmra.mxu0 %v531
  %v800 = vpop.f32.mrf.mxu0
  %v801 = vadd.f32 %v696, %v800
  %v802 = vpop.f32.mrf.mxu0
  %803 = vmatprep.mubr.f32.mxu0 %v536
  %804 = vmatmul.mubr.f32.gmra.mxu0 %v535
  %v805 = vpop.f32.mrf.mxu0
  %v806 = vadd.f32 %v701, %v805
  %v807 = vpop.f32.mrf.mxu0
  %808 = vmatprep.mubr.f32.mxu0 %v540
  %809 = vmatmul.mubr.f32.gmra.mxu0 %v539
  %v810 = vpop.f32.mrf.mxu0
  %v811 = vadd.f32 %v706, %v810
  %v812 = vpop.f32.mrf.mxu0
  %813 = vmatprep.mubr.f32.mxu0 %v544
  %814 = vmatmul.mubr.f32.gmra.mxu0 %v543
  %v815 = vpop.f32.mrf.mxu0
  %v816 = vadd.f32 %v711, %v815
  %v817 = vpop.f32.mrf.mxu0
  %818 = vdwg.mxu0
  %v819 = vmul.f32 %v781, 0.00390625
  %v820 = vmul.f32 %v786, 0.00390625
  %v821 = vmul.f32 %v791, 0.00390625
  %v822 = vmul.f32 %v796, 0.00390625
  %v823 = vmul.f32 %v801, 0.00390625
  %v824 = vmul.f32 %v806, 0.00390625
  %v825 = vmul.f32 %v811, 0.00390625
  %v826 = vmul.f32 %v816, 0.00390625
  %v827 = vld [vmem:[%s10] sm:$0xff]
  %v828 = vld [vmem:[%s10 + $0x8] sm:$0xff]
  %vm829 = vcmask 523264
  %v831 = vsel %vm829, %v827, 0
  %v834 = vsel %vm829, %v828, 0
  %836 = vmatprep.subr.mxu0 0.0
  %837 = vmatpush1.msra.mxu0 0.0
  %838 = vmatprep.subr.mxu0 0.0
  %839 = vmatpush1.msra.mxu0 0.0
  %840 = vmatprep.subr.mxu0 0.0
  %841 = vmatpush1.msra.mxu0 0.0
  %842 = vmatprep.subr.mxu0 0.0
  %843 = vmatpush1.msra.mxu0 0.0
  %844 = vmatprep.subr.mxu0 0.0
  %845 = vmatpush1.msra.mxu0 0.0
  %846 = vmatprep.subr.mxu0 0.0
  %847 = vmatpush1.msra.mxu0 0.0
  %848 = vmatprep.subr.mxu0 0.0
  %849 = vmatpush1.msra.mxu0 0.0
  %850 = vmatprep.subr.mxu0 0.0
  %851 = vmatpush1.msra.mxu0 0.0
  %852 = vmatprep.subr.mxu0 0.0
  %853 = vmatpush1.msra.mxu0 %v826
  %854 = vmatprep.subr.mxu0 0.0
  %855 = vmatpush1.msra.mxu0 %v825
  %856 = vmatprep.subr.mxu0 0.0
  %857 = vmatpush1.msra.mxu0 %v824
  %858 = vmatprep.subr.mxu0 0.0
  %859 = vmatpush1.msra.mxu0 %v823
  %860 = vmatprep.subr.mxu0 0.0
  %861 = vmatpush1.msra.mxu0 %v822
  %862 = vmatprep.subr.mxu0 0.0
  %863 = vmatpush1.msra.mxu0 %v821
  %864 = vmatprep.subr.mxu0 0.0
  %865 = vmatpush1.msra.mxu0 %v820
  %866 = vmatprep.subr.mxu0 0.0
  %867 = vmatpush1.msra.mxu0 %v819
  %868 = vmatprep.subr.mxu0 0.0
  %869 = vmatpush2.msra.mxu0 0.0
  %870 = vmatprep.subr.mxu0 0.0
  %871 = vmatpush2.msra.mxu0 0.0
  %872 = vmatprep.subr.mxu0 0.0
  %873 = vmatpush2.msra.mxu0 0.0
  %874 = vmatprep.subr.mxu0 0.0
  %875 = vmatpush2.msra.mxu0 0.0
  %876 = vmatprep.subr.mxu0 0.0
  %877 = vmatpush2.msra.mxu0 0.0
  %878 = vmatprep.subr.mxu0 0.0
  %879 = vmatpush2.msra.mxu0 0.0
  %880 = vmatprep.subr.mxu0 0.0
  %881 = vmatpush2.msra.mxu0 0.0
  %882 = vmatprep.subr.mxu0 0.0
  %883 = vmatpush2.msra.mxu0 0.0
  %884 = vmatprep.subr.mxu0 0.0
  %885 = vmatpush2.msra.mxu0 0.0
  %886 = vmatprep.subr.mxu0 0.0
  %887 = vmatpush2.msra.mxu0 0.0
  %888 = vmatprep.subr.mxu0 0.0
  %889 = vmatpush2.msra.mxu0 0.0
  %890 = vmatprep.subr.mxu0 0.0
  %891 = vmatpush2.msra.mxu0 0.0
  %892 = vmatprep.subr.mxu0 0.0
  %893 = vmatpush2.msra.mxu0 0.0
  %894 = vmatprep.subr.mxu0 0.0
  %895 = vmatpush2.msra.mxu0 0.0
  %896 = vmatprep.subr.mxu0 0.0
  %897 = vmatpush2.msra.mxu0 0.0
  %898 = vmatprep.subr.mxu0 0.0
  %899 = vmatpush2.msra.mxu0 0.0
  %900 = vmatprep.mubr.f32.mxu0 0.0
  %901 = vmatmul.mubr.f32.gmra.mxu0 %v831
  %v902 = vpop.f32.mrf.mxu0
  %v903 = vadd.f32 0.0, %v902
  %v904 = vpop.f32.mrf.mxu0
  %905 = vmatprep.mubr.f32.mxu0 0.0
  %906 = vmatmul.mubr.f32.gmra.mxu0 %v834
  %v907 = vpop.f32.mrf.mxu0
  %v908 = vadd.f32 0.0, %v907
  %v909 = vpop.f32.mrf.mxu0
  %910 = vdwg.mxu0
  %v911 = vmax.f32 %v903, 0.0
  %v912 = vmax.f32 %v908, 0.0
  %v913 = vld [vmem:[%s11] sm:$0xff]
  %v914 = vld [vmem:[%s11 + $0x8] sm:$0xff]
  %v915 = vld [vmem:[%s11 + $0x10] sm:$0xff]
  %v916 = vld [vmem:[%s11 + $0x18] sm:$0xff]
  %v917 = vld [vmem:[%s11 + $0x20] sm:$0xff]
  %v918 = vld [vmem:[%s11 + $0x28] sm:$0xff]
  %v919 = vld [vmem:[%s11 + $0x30] sm:$0xff]
  %v920 = vld [vmem:[%s11 + $0x38] sm:$0xff]
  %vm921 = vcmask 130048
  %v923 = vsel %vm921, %v913, 0
  %v926 = vsel %vm921, %v914, 0
  %v929 = vsel %vm921, %v915, 0
  %v932 = vsel %vm921, %v916, 0
  %v935 = vsel %vm921, %v917, 0
  %v938 = vsel %vm921, %v918, 0
  %v941 = vsel %vm921, %v919, 0
  %v944 = vsel %vm921, %v920, 0
  %946 = vmatprep.subr.mxu0 0.0
  %947 = vmatpush1.msra.mxu0 0.0
  %948 = vmatprep.subr.mxu0 0.0
  %949 = vmatpush1.msra.mxu0 0.0
  %950 = vmatprep.subr.mxu0 0.0
  %951 = vmatpush1.msra.mxu0 0.0
  %952 = vmatprep.subr.mxu0 0.0
  %953 = vmatpush1.msra.mxu0 0.0
  %954 = vmatprep.subr.mxu0 0.0
  %955 = vmatpush1.msra.mxu0 0.0
  %956 = vmatprep.subr.mxu0 0.0
  %957 = vmatpush1.msra.mxu0 0.0
  %958 = vmatprep.subr.mxu0 0.0
  %959 = vmatpush1.msra.mxu0 0.0
  %960 = vmatprep.subr.mxu0 0.0
  %961 = vmatpush1.msra.mxu0 0.0
  %962 = vmatprep.subr.mxu0 0.0
  %963 = vmatpush1.msra.mxu0 0.0
  %964 = vmatprep.subr.mxu0 0.0
  %965 = vmatpush1.msra.mxu0 0.0
  %966 = vmatprep.subr.mxu0 0.0
  %967 = vmatpush1.msra.mxu0 0.0
  %968 = vmatprep.subr.mxu0 0.0
  %969 = vmatpush1.msra.mxu0 0.0
  %970 = vmatprep.subr.mxu0 0.0
  %971 = vmatpush1.msra.mxu0 0.0
  %972 = vmatprep.subr.mxu0 0.0
  %973 = vmatpush1.msra.mxu0 0.0
  %974 = vmatprep.subr.mxu0 0.0
  %975 = vmatpush1.msra.mxu0 %v912
  %976 = vmatprep.subr.mxu0 0.0
  %977 = vmatpush1.msra.mxu0 %v911
  %978 = vmatprep.subr.mxu0 0.0
  %979 = vmatpush2.msra.mxu0 0.0
  %980 = vmatprep.subr.mxu0 0.0
  %981 = vmatpush2.msra.mxu0 0.0
  %982 = vmatprep.subr.mxu0 0.0
  %983 = vmatpush2.msra.mxu0 0.0
  %984 = vmatprep.subr.mxu0 0.0
  %985 = vmatpush2.msra.mxu0 0.0
  %986 = vmatprep.subr.mxu0 0.0
  %987 = vmatpush2.msra.mxu0 0.0
  %988 = vmatprep.subr.mxu0 0.0
  %989 = vmatpush2.msra.mxu0 0.0
  %990 = vmatprep.subr.mxu0 0.0
  %991 = vmatpush2.msra.mxu0 0.0
  %992 = vmatprep.subr.mxu0 0.0
  %993 = vmatpush2.msra.mxu0 0.0
  %994 = vmatprep.subr.mxu0 0.0
  %995 = vmatpush2.msra.mxu0 0.0
  %996 = vmatprep.subr.mxu0 0.0
  %997 = vmatpush2.msra.mxu0 0.0
  %998 = vmatprep.subr.mxu0 0.0
  %999 = vmatpush2.msra.mxu0 0.0
  %1000 = vmatprep.subr.mxu0 0.0
  %1001 = vmatpush2.msra.mxu0 0.0
  %1002 = vmatprep.subr.mxu0 0.0
  %1003 = vmatpush2.msra.mxu0 0.0
  %1004 = vmatprep.subr.mxu0 0.0
  %1005 = vmatpush2.msra.mxu0 0.0
  %1006 = vmatprep.subr.mxu0 0.0
  %1007 = vmatpush2.msra.mxu0 0.0
  %1008 = vmatprep.subr.mxu0 0.0
  %1009 = vmatpush2.msra.mxu0 0.0
  %1010 = vmatprep.mubr.f32.mxu0 0.0
  %1011 = vmatmul.mubr.f32.gmra.mxu0 %v923
  %v1012 = vpop.f32.mrf.mxu0
  %v1013 = vadd.f32 0.0, %v1012
  %v1014 = vpop.f32.mrf.mxu0
  %1015 = vmatprep.mubr.f32.mxu0 0.0
  %1016 = vmatmul.mubr.f32.gmra.mxu0 %v926
  %v1017 = vpop.f32.mrf.mxu0
  %v1018 = vadd.f32 0.0, %v1017
  %v1019 = vpop.f32.mrf.mxu0
  %1020 = vmatprep.mubr.f32.mxu0 0.0
  %1021 = vmatmul.mubr.f32.gmra.mxu0 %v929
  %v1022 = vpop.f32.mrf.mxu0
  %v1023 = vadd.f32 0.0, %v1022
  %v1024 = vpop.f32.mrf.mxu0
  %1025 = vmatprep.mubr.f32.mxu0 0.0
  %1026 = vmatmul.mubr.f32.gmra.mxu0 %v932
  %v1027 = vpop.f32.mrf.mxu0
  %v1028 = vadd.f32 0.0, %v1027
  %v1029 = vpop.f32.mrf.mxu0
  %1030 = vmatprep.mubr.f32.mxu0 0.0
  %1031 = vmatmul.mubr.f32.gmra.mxu0 %v935
  %v1032 = vpop.f32.mrf.mxu0
  %v1033 = vadd.f32 0.0, %v1032
  %v1034 = vpop.f32.mrf.mxu0
  %1035 = vmatprep.mubr.f32.mxu0 0.0
  %1036 = vmatmul.mubr.f32.gmra.mxu0 %v938
  %v1037 = vpop.f32.mrf.mxu0
  %v1038 = vadd.f32 0.0, %v1037
  %v1039 = vpop.f32.mrf.mxu0
  %1040 = vmatprep.mubr.f32.mxu0 0.0
  %1041 = vmatmul.mubr.f32.gmra.mxu0 %v941
  %v1042 = vpop.f32.mrf.mxu0
  %v1043 = vadd.f32 0.0, %v1042
  %v1044 = vpop.f32.mrf.mxu0
  %1045 = vmatprep.mubr.f32.mxu0 0.0
  %1046 = vmatmul.mubr.f32.gmra.mxu0 %v944
  %v1047 = vpop.f32.mrf.mxu0
  %v1048 = vadd.f32 0.0, %v1047
  %v1049 = vpop.f32.mrf.mxu0
  %1050 = vdwg.mxu0
  %v1051 = vxor.u32 %v1013, 2147483648
  %v1052 = vxor.u32 %v1018, 2147483648
  %v1053 = vxor.u32 %v1023, 2147483648
  %v1054 = vxor.u32 %v1028, 2147483648
  %v1055 = vxor.u32 %v1033, 2147483648
  %v1056 = vxor.u32 %v1038, 2147483648
  %v1057 = vxor.u32 %v1043, 2147483648
  %v1058 = vxor.u32 %v1048, 2147483648
  %v1059 = vmul.f32 %v1051, 1.442695
  %v1060 = vpow.pop %v1059
  %v1061 = vmul.f32 %v1052, 1.442695
  %v1062 = vpow.pop %v1061
  %v1063 = vmul.f32 %v1053, 1.442695
  %v1064 = vpow.pop %v1063
  %v1065 = vmul.f32 %v1054, 1.442695
  %v1066 = vpow.pop %v1065
  %v1067 = vmul.f32 %v1055, 1.442695
  %v1068 = vpow.pop %v1067
  %v1069 = vmul.f32 %v1056, 1.442695
  %v1070 = vpow.pop %v1069
  %v1071 = vmul.f32 %v1057, 1.442695
  %v1072 = vpow.pop %v1071
  %v1073 = vmul.f32 %v1058, 1.442695
  %v1074 = vpow.pop %v1073
  %v1075 = vadd.f32 %v1060, 1.0
  %v1076 = vadd.f32 %v1062, 1.0
  %v1077 = vadd.f32 %v1064, 1.0
  %v1078 = vadd.f32 %v1066, 1.0
  %v1079 = vadd.f32 %v1068, 1.0
  %v1080 = vadd.f32 %v1070, 1.0
  %v1081 = vadd.f32 %v1072, 1.0
  %v1082 = vadd.f32 %v1074, 1.0
  %v1083 = vrcp.pop %v1075
  %v1084 = vmul.f32 1.0, %v1083
  %v1085 = vrcp.pop %v1076
  %v1086 = vmul.f32 1.0, %v1085
  %v1087 = vrcp.pop %v1077
  %v1088 = vmul.f32 1.0, %v1087
  %v1089 = vrcp.pop %v1078
  %v1090 = vmul.f32 1.0, %v1089
  %v1091 = vrcp.pop %v1079
  %v1092 = vmul.f32 1.0, %v1091
  %v1093 = vrcp.pop %v1080
  %v1094 = vmul.f32 1.0, %v1093
  %v1095 = vrcp.pop %v1081
  %v1096 = vmul.f32 1.0, %v1095
  %v1097 = vrcp.pop %v1082
  %v1098 = vmul.f32 1.0, %v1097
  %v1099 = vld [vmem:[%s2] sm:$0xff]
  %v1101 = vcombine.high %v1099, %v1099
  %v1103 = vunpack.c.l.s4 1983009808
  %v1104 = vunpack.c.0.s8 %v1103
  %v1105 = vlaneseq
  %v1106 = vshrl.u32 %v1105, 7
  %v1107 = vsub.s32 %v1104, %v1106
  %v1108 = vrot.slane %v1099, %v1107
  %v1110 = vunpack.c.l.s4 1983009808
  %v1111 = vunpack.c.0.s8 %v1110
  %v1112 = vlaneseq
  %v1113 = vshrl.u32 %v1112, 7
  %v1114 = vsub.s32 %v1111, %v1113
  %v1115 = vrot.slane %v1101, %v1114
  %v1116 = vcombine.high %v1108, %v1108
  %v1117 = vcombine.high %v1115, %v1115
  %vm1118 = vcmask 15360
  %v1120 = vsel %vm1118, %v1084, 0
  %v1123 = vsel %vm1118, %v1086, 0
  %v1126 = vsel %vm1118, %v1088, 0
  %v1129 = vsel %vm1118, %v1090, 0
  %v1132 = vsel %vm1118, %v1092, 0
  %v1135 = vsel %vm1118, %v1094, 0
  %v1138 = vsel %vm1118, %v1096, 0
  %v1141 = vsel %vm1118, %v1098, 0
  %vm1143 = vcmask 1041408
  %v1144 = vsel %vm1143, %v1108, 0
  %v1146 = vsel %vm1143, %v1116, 0
  %v1148 = vsel %vm1143, %v1115, 0
  %v1150 = vsel %vm1143, %v1117, 0
  %1152 = vmatprep.subr.mxu0 0.0
  %1153 = vmatpush1.msra.mxu0 0.0
  %1154 = vmatprep.subr.mxu0 0.0
  %1155 = vmatpush1.msra.mxu0 0.0
  %1156 = vmatprep.subr.mxu0 0.0
  %1157 = vmatpush1.msra.mxu0 0.0
  %1158 = vmatprep.subr.mxu0 0.0
  %1159 = vmatpush1.msra.mxu0 0.0
  %1160 = vmatprep.subr.mxu0 0.0
  %1161 = vmatpush1.msra.mxu0 0.0
  %1162 = vmatprep.subr.mxu0 0.0
  %1163 = vmatpush1.msra.mxu0 0.0
  %1164 = vmatprep.subr.mxu0 0.0
  %1165 = vmatpush1.msra.mxu0 0.0
  %1166 = vmatprep.subr.mxu0 0.0
  %1167 = vmatpush1.msra.mxu0 0.0
  %1168 = vmatprep.subr.mxu0 0.0
  %1169 = vmatpush1.msra.mxu0 0.0
  %1170 = vmatprep.subr.mxu0 0.0
  %1171 = vmatpush1.msra.mxu0 0.0
  %1172 = vmatprep.subr.mxu0 0.0
  %1173 = vmatpush1.msra.mxu0 0.0
  %1174 = vmatprep.subr.mxu0 0.0
  %1175 = vmatpush1.msra.mxu0 0.0
  %1176 = vmatprep.subr.mxu0 0.0
  %1177 = vmatpush1.msra.mxu0 0.0
  %1178 = vmatprep.subr.mxu0 0.0
  %1179 = vmatpush1.msra.mxu0 0.0
  %1180 = vmatprep.subr.mxu0 0.0
  %1181 = vmatpush1.msra.mxu0 0.0
  %1182 = vmatprep.subr.mxu0 %v1146
  %1183 = vmatpush1.msra.mxu0 %v1144
  %1184 = vmatprep.subr.mxu0 0.0
  %1185 = vmatpush2.msra.mxu0 0.0
  %1186 = vmatprep.subr.mxu0 0.0
  %1187 = vmatpush2.msra.mxu0 0.0
  %1188 = vmatprep.subr.mxu0 0.0
  %1189 = vmatpush2.msra.mxu0 0.0
  %1190 = vmatprep.subr.mxu0 0.0
  %1191 = vmatpush2.msra.mxu0 0.0
  %1192 = vmatprep.subr.mxu0 0.0
  %1193 = vmatpush2.msra.mxu0 0.0
  %1194 = vmatprep.subr.mxu0 0.0
  %1195 = vmatpush2.msra.mxu0 0.0
  %1196 = vmatprep.subr.mxu0 0.0
  %1197 = vmatpush2.msra.mxu0 0.0
  %1198 = vmatprep.subr.mxu0 0.0
  %1199 = vmatpush2.msra.mxu0 0.0
  %1200 = vmatprep.subr.mxu0 0.0
  %1201 = vmatpush2.msra.mxu0 0.0
  %1202 = vmatprep.subr.mxu0 0.0
  %1203 = vmatpush2.msra.mxu0 0.0
  %1204 = vmatprep.subr.mxu0 0.0
  %1205 = vmatpush2.msra.mxu0 0.0
  %1206 = vmatprep.subr.mxu0 0.0
  %1207 = vmatpush2.msra.mxu0 0.0
  %1208 = vmatprep.subr.mxu0 0.0
  %1209 = vmatpush2.msra.mxu0 0.0
  %1210 = vmatprep.subr.mxu0 0.0
  %1211 = vmatpush2.msra.mxu0 0.0
  %1212 = vmatprep.subr.mxu0 0.0
  %1213 = vmatpush2.msra.mxu0 0.0
  %1214 = vmatprep.subr.mxu0 0.0
  %1215 = vmatpush2.msra.mxu0 0.0
  %1216 = vmatprep.mubr.f32.mxu0 0.0
  %1217 = vmatmul.mubr.f32.gmra.mxu0 %v1120
  %v1218 = vpop.f32.mrf.mxu0
  %v1219 = vadd.f32 0.0, %v1218
  %v1220 = vpop.f32.mrf.mxu0
  %v1221 = vadd.f32 0.0, %v1220
  %1222 = vmatprep.mubr.f32.mxu0 0.0
  %1223 = vmatmul.mubr.f32.gmra.mxu0 %v1123
  %v1224 = vpop.f32.mrf.mxu0
  %v1225 = vadd.f32 0.0, %v1224
  %v1226 = vpop.f32.mrf.mxu0
  %v1227 = vadd.f32 0.0, %v1226
  %1228 = vmatprep.mubr.f32.mxu0 0.0
  %1229 = vmatmul.mubr.f32.gmra.mxu0 %v1126
  %v1230 = vpop.f32.mrf.mxu0
  %v1231 = vadd.f32 0.0, %v1230
  %v1232 = vpop.f32.mrf.mxu0
  %v1233 = vadd.f32 0.0, %v1232
  %1234 = vmatprep.mubr.f32.mxu0 0.0
  %1235 = vmatmul.mubr.f32.gmra.mxu0 %v1129
  %v1236 = vpop.f32.mrf.mxu0
  %v1237 = vadd.f32 0.0, %v1236
  %v1238 = vpop.f32.mrf.mxu0
  %v1239 = vadd.f32 0.0, %v1238
  %1240 = vmatprep.mubr.f32.mxu0 0.0
  %1241 = vmatmul.mubr.f32.gmra.mxu0 %v1132
  %v1242 = vpop.f32.mrf.mxu0
  %v1243 = vadd.f32 0.0, %v1242
  %v1244 = vpop.f32.mrf.mxu0
  %v1245 = vadd.f32 0.0, %v1244
  %1246 = vmatprep.mubr.f32.mxu0 0.0
  %1247 = vmatmul.mubr.f32.gmra.mxu0 %v1135
  %v1248 = vpop.f32.mrf.mxu0
  %v1249 = vadd.f32 0.0, %v1248
  %v1250 = vpop.f32.mrf.mxu0
  %v1251 = vadd.f32 0.0, %v1250
  %1252 = vmatprep.mubr.f32.mxu0 0.0
  %1253 = vmatmul.mubr.f32.gmra.mxu0 %v1138
  %v1254 = vpop.f32.mrf.mxu0
  %v1255 = vadd.f32 0.0, %v1254
  %v1256 = vpop.f32.mrf.mxu0
  %v1257 = vadd.f32 0.0, %v1256
  %1258 = vmatprep.mubr.f32.mxu0 0.0
  %1259 = vmatmul.mubr.f32.gmra.mxu0 %v1141
  %v1260 = vpop.f32.mrf.mxu0
  %v1261 = vadd.f32 0.0, %v1260
  %v1262 = vpop.f32.mrf.mxu0
  %v1263 = vadd.f32 0.0, %v1262
  %1264 = vdwg.mxu0
  %1265 = vmatprep.subr.mxu0 0.0
  %1266 = vmatpush1.msra.mxu0 0.0
  %1267 = vmatprep.subr.mxu0 0.0
  %1268 = vmatpush1.msra.mxu0 0.0
  %1269 = vmatprep.subr.mxu0 0.0
  %1270 = vmatpush1.msra.mxu0 0.0
  %1271 = vmatprep.subr.mxu0 0.0
  %1272 = vmatpush1.msra.mxu0 0.0
  %1273 = vmatprep.subr.mxu0 0.0
  %1274 = vmatpush1.msra.mxu0 0.0
  %1275 = vmatprep.subr.mxu0 0.0
  %1276 = vmatpush1.msra.mxu0 0.0
  %1277 = vmatprep.subr.mxu0 0.0
  %1278 = vmatpush1.msra.mxu0 0.0
  %1279 = vmatprep.subr.mxu0 0.0
  %1280 = vmatpush1.msra.mxu0 0.0
  %1281 = vmatprep.subr.mxu0 0.0
  %1282 = vmatpush1.msra.mxu0 0.0
  %1283 = vmatprep.subr.mxu0 0.0
  %1284 = vmatpush1.msra.mxu0 0.0
  %1285 = vmatprep.subr.mxu0 0.0
  %1286 = vmatpush1.msra.mxu0 0.0
  %1287 = vmatprep.subr.mxu0 0.0
  %1288 = vmatpush1.msra.mxu0 0.0
  %1289 = vmatprep.subr.mxu0 0.0
  %1290 = vmatpush1.msra.mxu0 0.0
  %1291 = vmatprep.subr.mxu0 0.0
  %1292 = vmatpush1.msra.mxu0 0.0
  %1293 = vmatprep.subr.mxu0 0.0
  %1294 = vmatpush1.msra.mxu0 0.0
  %1295 = vmatprep.subr.mxu0 %v1150
  %1296 = vmatpush1.msra.mxu0 %v1148
  %1297 = vmatprep.subr.mxu0 0.0
  %1298 = vmatpush2.msra.mxu0 0.0
  %1299 = vmatprep.subr.mxu0 0.0
  %1300 = vmatpush2.msra.mxu0 0.0
  %1301 = vmatprep.subr.mxu0 0.0
  %1302 = vmatpush2.msra.mxu0 0.0
  %1303 = vmatprep.subr.mxu0 0.0
  %1304 = vmatpush2.msra.mxu0 0.0
  %1305 = vmatprep.subr.mxu0 0.0
  %1306 = vmatpush2.msra.mxu0 0.0
  %1307 = vmatprep.subr.mxu0 0.0
  %1308 = vmatpush2.msra.mxu0 0.0
  %1309 = vmatprep.subr.mxu0 0.0
  %1310 = vmatpush2.msra.mxu0 0.0
  %1311 = vmatprep.subr.mxu0 0.0
  %1312 = vmatpush2.msra.mxu0 0.0
  %1313 = vmatprep.subr.mxu0 0.0
  %1314 = vmatpush2.msra.mxu0 0.0
  %1315 = vmatprep.subr.mxu0 0.0
  %1316 = vmatpush2.msra.mxu0 0.0
  %1317 = vmatprep.subr.mxu0 0.0
  %1318 = vmatpush2.msra.mxu0 0.0
  %1319 = vmatprep.subr.mxu0 0.0
  %1320 = vmatpush2.msra.mxu0 0.0
  %1321 = vmatprep.subr.mxu0 0.0
  %1322 = vmatpush2.msra.mxu0 0.0
  %1323 = vmatprep.subr.mxu0 0.0
  %1324 = vmatpush2.msra.mxu0 0.0
  %1325 = vmatprep.subr.mxu0 0.0
  %1326 = vmatpush2.msra.mxu0 0.0
  %1327 = vmatprep.subr.mxu0 0.0
  %1328 = vmatpush2.msra.mxu0 0.0
  %1329 = vmatprep.mubr.f32.mxu0 0.0
  %1330 = vmatmul.mubr.f32.gmra.mxu0 %v1120
  %v1331 = vpop.f32.mrf.mxu0
  %v1332 = vadd.f32 0.0, %v1331
  %v1333 = vpop.f32.mrf.mxu0
  %v1334 = vadd.f32 0.0, %v1333
  %1335 = vmatprep.mubr.f32.mxu0 0.0
  %1336 = vmatmul.mubr.f32.gmra.mxu0 %v1123
  %v1337 = vpop.f32.mrf.mxu0
  %v1338 = vadd.f32 0.0, %v1337
  %v1339 = vpop.f32.mrf.mxu0
  %v1340 = vadd.f32 0.0, %v1339
  %1341 = vmatprep.mubr.f32.mxu0 0.0
  %1342 = vmatmul.mubr.f32.gmra.mxu0 %v1126
  %v1343 = vpop.f32.mrf.mxu0
  %v1344 = vadd.f32 0.0, %v1343
  %v1345 = vpop.f32.mrf.mxu0
  %v1346 = vadd.f32 0.0, %v1345
  %1347 = vmatprep.mubr.f32.mxu0 0.0
  %1348 = vmatmul.mubr.f32.gmra.mxu0 %v1129
  %v1349 = vpop.f32.mrf.mxu0
  %v1350 = vadd.f32 0.0, %v1349
  %v1351 = vpop.f32.mrf.mxu0
  %v1352 = vadd.f32 0.0, %v1351
  %1353 = vmatprep.mubr.f32.mxu0 0.0
  %1354 = vmatmul.mubr.f32.gmra.mxu0 %v1132
  %v1355 = vpop.f32.mrf.mxu0
  %v1356 = vadd.f32 0.0, %v1355
  %v1357 = vpop.f32.mrf.mxu0
  %v1358 = vadd.f32 0.0, %v1357
  %1359 = vmatprep.mubr.f32.mxu0 0.0
  %1360 = vmatmul.mubr.f32.gmra.mxu0 %v1135
  %v1361 = vpop.f32.mrf.mxu0
  %v1362 = vadd.f32 0.0, %v1361
  %v1363 = vpop.f32.mrf.mxu0
  %v1364 = vadd.f32 0.0, %v1363
  %1365 = vmatprep.mubr.f32.mxu0 0.0
  %1366 = vmatmul.mubr.f32.gmra.mxu0 %v1138
  %v1367 = vpop.f32.mrf.mxu0
  %v1368 = vadd.f32 0.0, %v1367
  %v1369 = vpop.f32.mrf.mxu0
  %v1370 = vadd.f32 0.0, %v1369
  %1371 = vmatprep.mubr.f32.mxu0 0.0
  %1372 = vmatmul.mubr.f32.gmra.mxu0 %v1141
  %v1373 = vpop.f32.mrf.mxu0
  %v1374 = vadd.f32 0.0, %v1373
  %v1375 = vpop.f32.mrf.mxu0
  %v1376 = vadd.f32 0.0, %v1375
  %1377 = vdwg.mxu0
  %v1378 = vmul.f32 %v513, %v1219
  %v1379 = vmul.f32 %v514, %v1221
  %v1380 = vmul.f32 %v515, %v1332
  %v1381 = vmul.f32 %v516, %v1334
  %v1382 = vmul.f32 %v517, %v1225
  %v1383 = vmul.f32 %v518, %v1227
  %v1384 = vmul.f32 %v519, %v1338
  %v1385 = vmul.f32 %v520, %v1340
  %v1386 = vmul.f32 %v521, %v1231
  %v1387 = vmul.f32 %v522, %v1233
  %v1388 = vmul.f32 %v523, %v1344
  %v1389 = vmul.f32 %v524, %v1346
  %v1390 = vmul.f32 %v525, %v1237
  %v1391 = vmul.f32 %v526, %v1239
  %v1392 = vmul.f32 %v527, %v1350
  %v1393 = vmul.f32 %v528, %v1352
  %v1394 = vmul.f32 %v529, %v1243
  %v1395 = vmul.f32 %v530, %v1245
  %v1396 = vmul.f32 %v531, %v1356
  %v1397 = vmul.f32 %v532, %v1358
  %v1398 = vmul.f32 %v533, %v1249
  %v1399 = vmul.f32 %v534, %v1251
  %v1400 = vmul.f32 %v535, %v1362
  %v1401 = vmul.f32 %v536, %v1364
  %v1402 = vmul.f32 %v537, %v1255
  %v1403 = vmul.f32 %v538, %v1257
  %v1404 = vmul.f32 %v539, %v1368
  %v1405 = vmul.f32 %v540, %v1370
  %v1406 = vmul.f32 %v541, %v1261
  %v1407 = vmul.f32 %v542, %v1263
  %v1408 = vmul.f32 %v543, %v1374
  %v1409 = vmul.f32 %v544, %v1376
  %v1410 = vld [vmem:[%s6] sm:$0xff]
  %v1411 = vld [vmem:[%s6 + $0x8] sm:$0xff]
  %v1412 = vld [vmem:[%s6 + $0x10] sm:$0xff]
  %v1413 = vld [vmem:[%s6 + $0x18] sm:$0xff]
  %v1414 = vld [vmem:[%s6 + $0x20] sm:$0xff]
  %v1415 = vld [vmem:[%s6 + $0x28] sm:$0xff]
  %v1416 = vld [vmem:[%s6 + $0x30] sm:$0xff]
  %v1417 = vld [vmem:[%s6 + $0x38] sm:$0xff]
  %v1418 = vld [vmem:[%s6 + $0x40] sm:$0xff]
  %v1420 = vsel %vm829, %v1410, 0
  %v1423 = vsel %vm829, %v1411, 0
  %v1426 = vsel %vm829, %v1412, 0
  %v1429 = vsel %vm829, %v1413, 0
  %v1432 = vsel %vm829, %v1414, 0
  %v1435 = vsel %vm829, %v1415, 0
  %v1438 = vsel %vm829, %v1416, 0
  %v1441 = vsel %vm829, %v1417, 0
  %v1444 = vsel %vm829, %v1418, 0
  %1446 = vmatprep.subr.mxu0 0.0
  %1447 = vmatpush1.msra.mxu0 0.0
  %1448 = vmatprep.subr.mxu0 0.0
  %1449 = vmatpush1.msra.mxu0 0.0
  %1450 = vmatprep.subr.mxu0 0.0
  %1451 = vmatpush1.msra.mxu0 0.0
  %1452 = vmatprep.subr.mxu0 0.0
  %1453 = vmatpush1.msra.mxu0 0.0
  %1454 = vmatprep.subr.mxu0 0.0
  %1455 = vmatpush1.msra.mxu0 0.0
  %1456 = vmatprep.subr.mxu0 0.0
  %1457 = vmatpush1.msra.mxu0 0.0
  %1458 = vmatprep.subr.mxu0 0.0
  %1459 = vmatpush1.msra.mxu0 0.0
  %1460 = vmatprep.subr.mxu0 0.0
  %1461 = vmatpush1.msra.mxu0 0.0
  %1462 = vmatprep.subr.mxu0 %v1407
  %1463 = vmatpush1.msra.mxu0 %v1406
  %1464 = vmatprep.subr.mxu0 %v1403
  %1465 = vmatpush1.msra.mxu0 %v1402
  %1466 = vmatprep.subr.mxu0 %v1399
  %1467 = vmatpush1.msra.mxu0 %v1398
  %1468 = vmatprep.subr.mxu0 %v1395
  %1469 = vmatpush1.msra.mxu0 %v1394
  %1470 = vmatprep.subr.mxu0 %v1391
  %1471 = vmatpush1.msra.mxu0 %v1390
  %1472 = vmatprep.subr.mxu0 %v1387
  %1473 = vmatpush1.msra.mxu0 %v1386
  %1474 = vmatprep.subr.mxu0 %v1383
  %1475 = vmatpush1.msra.mxu0 %v1382
  %1476 = vmatprep.subr.mxu0 %v1379
  %1477 = vmatpush1.msra.mxu0 %v1378
  %1478 = vmatprep.subr.mxu0 0.0
  %1479 = vmatpush2.msra.mxu0 0.0
  %1480 = vmatprep.subr.mxu0 0.0
  %1481 = vmatpush2.msra.mxu0 0.0
  %1482 = vmatprep.subr.mxu0 0.0
  %1483 = vmatpush2.msra.mxu0 0.0
  %1484 = vmatprep.subr.mxu0 0.0
  %1485 = vmatpush2.msra.mxu0 0.0
  %1486 = vmatprep.subr.mxu0 0.0
  %1487 = vmatpush2.msra.mxu0 0.0
  %1488 = vmatprep.subr.mxu0 0.0
  %1489 = vmatpush2.msra.mxu0 0.0
  %1490 = vmatprep.subr.mxu0 0.0
  %1491 = vmatpush2.msra.mxu0 0.0
  %1492 = vmatprep.subr.mxu0 0.0
  %1493 = vmatpush2.msra.mxu0 0.0
  %1494 = vmatprep.subr.mxu0 0.0
  %1495 = vmatpush2.msra.mxu0 0.0
  %1496 = vmatprep.subr.mxu0 0.0
  %1497 = vmatpush2.msra.mxu0 0.0
  %1498 = vmatprep.subr.mxu0 0.0
  %1499 = vmatpush2.msra.mxu0 0.0
  %1500 = vmatprep.subr.mxu0 0.0
  %1501 = vmatpush2.msra.mxu0 0.0
  %1502 = vmatprep.subr.mxu0 0.0
  %1503 = vmatpush2.msra.mxu0 0.0
  %1504 = vmatprep.subr.mxu0 0.0
  %1505 = vmatpush2.msra.mxu0 0.0
  %1506 = vmatprep.subr.mxu0 0.0
  %1507 = vmatpush2.msra.mxu0 0.0
  %1508 = vmatprep.subr.mxu0 0.0
  %1509 = vmatpush2.msra.mxu0 0.0
  %1510 = vmatprep.mubr.f32.mxu0 0.0
  %1511 = vmatmul.mubr.f32.gmra.mxu0 %v1420
  %v1512 = vpop.f32.mrf.mxu0
  %v1513 = vadd.f32 0.0, %v1512
  %v1514 = vpop.f32.mrf.mxu0
  %v1515 = vadd.f32 0.0, %v1514
  %1516 = vmatprep.mubr.f32.mxu0 0.0
  %1517 = vmatmul.mubr.f32.gmra.mxu0 %v1423
  %v1518 = vpop.f32.mrf.mxu0
  %v1519 = vadd.f32 0.0, %v1518
  %v1520 = vpop.f32.mrf.mxu0
  %v1521 = vadd.f32 0.0, %v1520
  %1522 = vmatprep.mubr.f32.mxu0 0.0
  %1523 = vmatmul.mubr.f32.gmra.mxu0 %v1426
  %v1524 = vpop.f32.mrf.mxu0
  %v1525 = vadd.f32 0.0, %v1524
  %v1526 = vpop.f32.mrf.mxu0
  %v1527 = vadd.f32 0.0, %v1526
  %1528 = vmatprep.mubr.f32.mxu0 0.0
  %1529 = vmatmul.mubr.f32.gmra.mxu0 %v1429
  %v1530 = vpop.f32.mrf.mxu0
  %v1531 = vadd.f32 0.0, %v1530
  %v1532 = vpop.f32.mrf.mxu0
  %v1533 = vadd.f32 0.0, %v1532
  %1534 = vmatprep.mubr.f32.mxu0 0.0
  %1535 = vmatmul.mubr.f32.gmra.mxu0 %v1432
  %v1536 = vpop.f32.mrf.mxu0
  %v1537 = vadd.f32 0.0, %v1536
  %v1538 = vpop.f32.mrf.mxu0
  %v1539 = vadd.f32 0.0, %v1538
  %1540 = vmatprep.mubr.f32.mxu0 0.0
  %1541 = vmatmul.mubr.f32.gmra.mxu0 %v1435
  %v1542 = vpop.f32.mrf.mxu0
  %v1543 = vadd.f32 0.0, %v1542
  %v1544 = vpop.f32.mrf.mxu0
  %v1545 = vadd.f32 0.0, %v1544
  %1546 = vmatprep.mubr.f32.mxu0 0.0
  %1547 = vmatmul.mubr.f32.gmra.mxu0 %v1438
  %v1548 = vpop.f32.mrf.mxu0
  %v1549 = vadd.f32 0.0, %v1548
  %v1550 = vpop.f32.mrf.mxu0
  %v1551 = vadd.f32 0.0, %v1550
  %1552 = vmatprep.mubr.f32.mxu0 0.0
  %1553 = vmatmul.mubr.f32.gmra.mxu0 %v1441
  %v1554 = vpop.f32.mrf.mxu0
  %v1555 = vadd.f32 0.0, %v1554
  %v1556 = vpop.f32.mrf.mxu0
  %v1557 = vadd.f32 0.0, %v1556
  %1558 = vmatprep.mubr.f32.mxu0 0.0
  %1559 = vmatmul.mubr.f32.gmra.mxu0 %v1444
  %v1560 = vpop.f32.mrf.mxu0
  %v1561 = vadd.f32 0.0, %v1560
  %v1562 = vpop.f32.mrf.mxu0
  %v1563 = vadd.f32 0.0, %v1562
  %1564 = vdwg.mxu0
  %1565 = vmatprep.subr.mxu0 0.0
  %1566 = vmatpush1.msra.mxu0 0.0
  %1567 = vmatprep.subr.mxu0 0.0
  %1568 = vmatpush1.msra.mxu0 0.0
  %1569 = vmatprep.subr.mxu0 0.0
  %1570 = vmatpush1.msra.mxu0 0.0
  %1571 = vmatprep.subr.mxu0 0.0
  %1572 = vmatpush1.msra.mxu0 0.0
  %1573 = vmatprep.subr.mxu0 0.0
  %1574 = vmatpush1.msra.mxu0 0.0
  %1575 = vmatprep.subr.mxu0 0.0
  %1576 = vmatpush1.msra.mxu0 0.0
  %1577 = vmatprep.subr.mxu0 0.0
  %1578 = vmatpush1.msra.mxu0 0.0
  %1579 = vmatprep.subr.mxu0 0.0
  %1580 = vmatpush1.msra.mxu0 0.0
  %1581 = vmatprep.subr.mxu0 %v1409
  %1582 = vmatpush1.msra.mxu0 %v1408
  %1583 = vmatprep.subr.mxu0 %v1405
  %1584 = vmatpush1.msra.mxu0 %v1404
  %1585 = vmatprep.subr.mxu0 %v1401
  %1586 = vmatpush1.msra.mxu0 %v1400
  %1587 = vmatprep.subr.mxu0 %v1397
  %1588 = vmatpush1.msra.mxu0 %v1396
  %1589 = vmatprep.subr.mxu0 %v1393
  %1590 = vmatpush1.msra.mxu0 %v1392
  %1591 = vmatprep.subr.mxu0 %v1389
  %1592 = vmatpush1.msra.mxu0 %v1388
  %1593 = vmatprep.subr.mxu0 %v1385
  %1594 = vmatpush1.msra.mxu0 %v1384
  %1595 = vmatprep.subr.mxu0 %v1381
  %1596 = vmatpush1.msra.mxu0 %v1380
  %1597 = vmatprep.subr.mxu0 0.0
  %1598 = vmatpush2.msra.mxu0 0.0
  %1599 = vmatprep.subr.mxu0 0.0
  %1600 = vmatpush2.msra.mxu0 0.0
  %1601 = vmatprep.subr.mxu0 0.0
  %1602 = vmatpush2.msra.mxu0 0.0
  %1603 = vmatprep.subr.mxu0 0.0
  %1604 = vmatpush2.msra.mxu0 0.0
  %1605 = vmatprep.subr.mxu0 0.0
  %1606 = vmatpush2.msra.mxu0 0.0
  %1607 = vmatprep.subr.mxu0 0.0
  %1608 = vmatpush2.msra.mxu0 0.0
  %1609 = vmatprep.subr.mxu0 0.0
  %1610 = vmatpush2.msra.mxu0 0.0
  %1611 = vmatprep.subr.mxu0 0.0
  %1612 = vmatpush2.msra.mxu0 0.0
  %1613 = vmatprep.subr.mxu0 0.0
  %1614 = vmatpush2.msra.mxu0 0.0
  %1615 = vmatprep.subr.mxu0 0.0
  %1616 = vmatpush2.msra.mxu0 0.0
  %1617 = vmatprep.subr.mxu0 0.0
  %1618 = vmatpush2.msra.mxu0 0.0
  %1619 = vmatprep.subr.mxu0 0.0
  %1620 = vmatpush2.msra.mxu0 0.0
  %1621 = vmatprep.subr.mxu0 0.0
  %1622 = vmatpush2.msra.mxu0 0.0
  %1623 = vmatprep.subr.mxu0 0.0
  %1624 = vmatpush2.msra.mxu0 0.0
  %1625 = vmatprep.subr.mxu0 0.0
  %1626 = vmatpush2.msra.mxu0 0.0
  %1627 = vmatprep.subr.mxu0 0.0
  %1628 = vmatpush2.msra.mxu0 0.0
  %1629 = vmatprep.mubr.f32.mxu0 0.0
  %1630 = vmatmul.mubr.f32.gmra.mxu0 %v1420
  %v1631 = vpop.f32.mrf.mxu0
  %v1632 = vadd.f32 0.0, %v1631
  %v1633 = vpop.f32.mrf.mxu0
  %v1634 = vadd.f32 0.0, %v1633
  %1635 = vmatprep.mubr.f32.mxu0 0.0
  %1636 = vmatmul.mubr.f32.gmra.mxu0 %v1423
  %v1637 = vpop.f32.mrf.mxu0
  %v1638 = vadd.f32 0.0, %v1637
  %v1639 = vpop.f32.mrf.mxu0
  %v1640 = vadd.f32 0.0, %v1639
  %1641 = vmatprep.mubr.f32.mxu0 0.0
  %1642 = vmatmul.mubr.f32.gmra.mxu0 %v1426
  %v1643 = vpop.f32.mrf.mxu0
  %v1644 = vadd.f32 0.0, %v1643
  %v1645 = vpop.f32.mrf.mxu0
  %v1646 = vadd.f32 0.0, %v1645
  %1647 = vmatprep.mubr.f32.mxu0 0.0
  %1648 = vmatmul.mubr.f32.gmra.mxu0 %v1429
  %v1649 = vpop.f32.mrf.mxu0
  %v1650 = vadd.f32 0.0, %v1649
  %v1651 = vpop.f32.mrf.mxu0
  %v1652 = vadd.f32 0.0, %v1651
  %1653 = vmatprep.mubr.f32.mxu0 0.0
  %1654 = vmatmul.mubr.f32.gmra.mxu0 %v1432
  %v1655 = vpop.f32.mrf.mxu0
  %v1656 = vadd.f32 0.0, %v1655
  %v1657 = vpop.f32.mrf.mxu0
  %v1658 = vadd.f32 0.0, %v1657
  %1659 = vmatprep.mubr.f32.mxu0 0.0
  %1660 = vmatmul.mubr.f32.gmra.mxu0 %v1435
  %v1661 = vpop.f32.mrf.mxu0
  %v1662 = vadd.f32 0.0, %v1661
  %v1663 = vpop.f32.mrf.mxu0
  %v1664 = vadd.f32 0.0, %v1663
  %1665 = vmatprep.mubr.f32.mxu0 0.0
  %1666 = vmatmul.mubr.f32.gmra.mxu0 %v1438
  %v1667 = vpop.f32.mrf.mxu0
  %v1668 = vadd.f32 0.0, %v1667
  %v1669 = vpop.f32.mrf.mxu0
  %v1670 = vadd.f32 0.0, %v1669
  %1671 = vmatprep.mubr.f32.mxu0 0.0
  %1672 = vmatmul.mubr.f32.gmra.mxu0 %v1441
  %v1673 = vpop.f32.mrf.mxu0
  %v1674 = vadd.f32 0.0, %v1673
  %v1675 = vpop.f32.mrf.mxu0
  %v1676 = vadd.f32 0.0, %v1675
  %1677 = vmatprep.mubr.f32.mxu0 0.0
  %1678 = vmatmul.mubr.f32.gmra.mxu0 %v1444
  %v1679 = vpop.f32.mrf.mxu0
  %v1680 = vadd.f32 0.0, %v1679
  %v1681 = vpop.f32.mrf.mxu0
  %v1682 = vadd.f32 0.0, %v1681
  %1683 = vdwg.mxu0
  %v1684 = vld [vmem:[%s7] sm:$0xff]
  %v1685 = vld [vmem:[%s7 + $0x8] sm:$0xff]
  %v1686 = vld [vmem:[%s7 + $0x10] sm:$0xff]
  %v1687 = vld [vmem:[%s7 + $0x18] sm:$0xff]
  %1688 = vrot.lane.b32.xlu0 %v1513, 17
  %v1689 = vpop.permute.xlu0 %1688
  %1690 = vrot.lane.b32.xlu0 %v1515, 17
  %v1691 = vpop.permute.xlu0 %1690
  %1692 = vrot.lane.b32.xlu0 %v1632, 17
  %v1693 = vpop.permute.xlu0 %1692
  %1694 = vrot.lane.b32.xlu0 %v1634, 17
  %v1695 = vpop.permute.xlu0 %1694
  %v1696 = vsel %vm55, %v1693, %v1695
  %v1697 = vsel %vm55, %v1691, %v1693
  %v1698 = vsel %vm55, %v1689, %v1691
  %v1699 = vsel %vm55, %v1695, %v1689
  %v1700 = vmul.f32 %v1699, %v60
  %v1701 = vmul.f32 %v1698, %v61
  %v1702 = vmul.f32 %v1697, %v62
  %v1703 = vmul.f32 %v1696, %v63
  %v1704 = vadd.f32 %v1684, %v1700
  %v1705 = vadd.f32 %v1685, %v1701
  %v1706 = vadd.f32 %v1686, %v1702
  %v1707 = vadd.f32 %v1687, %v1703
  %1708 = vrot.lane.b32.xlu0 %v1519, 16
  %v1709 = vpop.permute.xlu0 %1708
  %1710 = vrot.lane.b32.xlu0 %v1521, 16
  %v1711 = vpop.permute.xlu0 %1710
  %1712 = vrot.lane.b32.xlu0 %v1638, 16
  %v1713 = vpop.permute.xlu0 %1712
  %1714 = vrot.lane.b32.xlu0 %v1640, 16
  %v1715 = vpop.permute.xlu0 %1714
  %v1716 = vsel %vm76, %v1713, %v1715
  %v1717 = vsel %vm76, %v1711, %v1713
  %v1718 = vsel %vm76, %v1709, %v1711
  %v1719 = vsel %vm76, %v1715, %v1709
  %v1720 = vmul.f32 %v1719, %v82
  %v1721 = vmul.f32 %v1718, %v83
  %v1722 = vmul.f32 %v1717, %v84
  %v1723 = vmul.f32 %v1716, %v85
  %v1724 = vadd.f32 %v1704, %v1720
  %v1725 = vadd.f32 %v1705, %v1721
  %v1726 = vadd.f32 %v1706, %v1722
  %v1727 = vadd.f32 %v1707, %v1723
  %1728 = vrot.lane.b32.xlu0 %v1525, 15
  %v1729 = vpop.permute.xlu0 %1728
  %1730 = vrot.lane.b32.xlu0 %v1527, 15
  %v1731 = vpop.permute.xlu0 %1730
  %1732 = vrot.lane.b32.xlu0 %v1644, 15
  %v1733 = vpop.permute.xlu0 %1732
  %1734 = vrot.lane.b32.xlu0 %v1646, 15
  %v1735 = vpop.permute.xlu0 %1734
  %v1736 = vsel %vm98, %v1733, %v1735
  %v1737 = vsel %vm98, %v1731, %v1733
  %v1738 = vsel %vm98, %v1729, %v1731
  %v1739 = vsel %vm98, %v1735, %v1729
  %v1740 = vmul.f32 %v1739, %v104
  %v1741 = vmul.f32 %v1738, %v105
  %v1742 = vmul.f32 %v1737, %v106
  %v1743 = vmul.f32 %v1736, %v107
  %v1744 = vadd.f32 %v1724, %v1740
  %v1745 = vadd.f32 %v1725, %v1741
  %v1746 = vadd.f32 %v1726, %v1742
  %v1747 = vadd.f32 %v1727, %v1743
  %1748 = vrot.lane.b32.xlu0 %v1531, 1
  %v1749 = vpop.permute.xlu0 %1748
  %1750 = vrot.lane.b32.xlu0 %v1533, 1
  %v1751 = vpop.permute.xlu0 %1750
  %1752 = vrot.lane.b32.xlu0 %v1650, 1
  %v1753 = vpop.permute.xlu0 %1752
  %1754 = vrot.lane.b32.xlu0 %v1652, 1
  %v1755 = vpop.permute.xlu0 %1754
  %v1756 = vsel %vm120, %v1753, %v1755
  %v1757 = vsel %vm120, %v1751, %v1753
  %v1758 = vsel %vm120, %v1749, %v1751
  %v1759 = vsel %vm120, %v1755, %v1749
  %v1760 = vmul.f32 %v1759, %v126
  %v1761 = vmul.f32 %v1758, %v127
  %v1762 = vmul.f32 %v1757, %v128
  %v1763 = vmul.f32 %v1756, %v129
  %v1764 = vadd.f32 %v1744, %v1760
  %v1765 = vadd.f32 %v1745, %v1761
  %v1766 = vadd.f32 %v1746, %v1762
  %v1767 = vadd.f32 %v1747, %v1763
  %v1768 = vadd.f32 %v1764, %v1537
  %v1769 = vadd.f32 %v1765, %v1539
  %v1770 = vadd.f32 %v1766, %v1656
  %v1771 = vadd.f32 %v1767, %v1658
  %1772 = vrot.lane.b32.xlu0 %v1543, 127
  %v1773 = vpop.permute.xlu0 %1772
  %1774 = vrot.lane.b32.xlu0 %v1545, 127
  %v1775 = vpop.permute.xlu0 %1774
  %1776 = vrot.lane.b32.xlu0 %v1662, 127
  %v1777 = vpop.permute.xlu0 %1776
  %1778 = vrot.lane.b32.xlu0 %v1664, 127
  %v1779 = vpop.permute.xlu0 %1778
  %v1780 = vsel %vm142, %v1777, %v1779
  %v1781 = vsel %vm142, %v1775, %v1777
  %v1782 = vsel %vm142, %v1773, %v1775
  %v1783 = vsel %vm142, %v1779, %v1773
  %v1784 = vmul.f32 %v1782, %v148
  %v1785 = vmul.f32 %v1781, %v149
  %v1786 = vmul.f32 %v1780, %v150
  %v1787 = vmul.f32 %v1783, %v151
  %v1788 = vadd.f32 %v1768, %v1784
  %v1789 = vadd.f32 %v1769, %v1785
  %v1790 = vadd.f32 %v1770, %v1786
  %v1791 = vadd.f32 %v1771, %v1787
  %1792 = vrot.lane.b32.xlu0 %v1549, 113
  %v1793 = vpop.permute.xlu0 %1792
  %1794 = vrot.lane.b32.xlu0 %v1551, 113
  %v1795 = vpop.permute.xlu0 %1794
  %1796 = vrot.lane.b32.xlu0 %v1668, 113
  %v1797 = vpop.permute.xlu0 %1796
  %1798 = vrot.lane.b32.xlu0 %v1670, 113
  %v1799 = vpop.permute.xlu0 %1798
  %v1800 = vsel %vm164, %v1797, %v1799
  %v1801 = vsel %vm164, %v1795, %v1797
  %v1802 = vsel %vm164, %v1793, %v1795
  %v1803 = vsel %vm164, %v1799, %v1793
  %v1804 = vmul.f32 %v1802, %v170
  %v1805 = vmul.f32 %v1801, %v171
  %v1806 = vmul.f32 %v1800, %v172
  %v1807 = vmul.f32 %v1803, %v173
  %v1808 = vadd.f32 %v1788, %v1804
  %v1809 = vadd.f32 %v1789, %v1805
  %v1810 = vadd.f32 %v1790, %v1806
  %v1811 = vadd.f32 %v1791, %v1807
  %1812 = vrot.lane.b32.xlu0 %v1555, 112
  %v1813 = vpop.permute.xlu0 %1812
  %1814 = vrot.lane.b32.xlu0 %v1557, 112
  %v1815 = vpop.permute.xlu0 %1814
  %1816 = vrot.lane.b32.xlu0 %v1674, 112
  %v1817 = vpop.permute.xlu0 %1816
  %1818 = vrot.lane.b32.xlu0 %v1676, 112
  %v1819 = vpop.permute.xlu0 %1818
  %v1820 = vsel %vm186, %v1817, %v1819
  %v1821 = vsel %vm186, %v1815, %v1817
  %v1822 = vsel %vm186, %v1813, %v1815
  %v1823 = vsel %vm186, %v1819, %v1813
  %v1824 = vmul.f32 %v1822, %v192
  %v1825 = vmul.f32 %v1821, %v193
  %v1826 = vmul.f32 %v1820, %v194
  %v1827 = vmul.f32 %v1823, %v195
  %v1828 = vadd.f32 %v1808, %v1824
  %v1829 = vadd.f32 %v1809, %v1825
  %v1830 = vadd.f32 %v1810, %v1826
  %v1831 = vadd.f32 %v1811, %v1827
  %1832 = vrot.lane.b32.xlu0 %v1561, 111
  %v1833 = vpop.permute.xlu0 %1832
  %1834 = vrot.lane.b32.xlu0 %v1563, 111
  %v1835 = vpop.permute.xlu0 %1834
  %1836 = vrot.lane.b32.xlu0 %v1680, 111
  %v1837 = vpop.permute.xlu0 %1836
  %1838 = vrot.lane.b32.xlu0 %v1682, 111
  %v1839 = vpop.permute.xlu0 %1838
  %v1840 = vsel %vm208, %v1837, %v1839
  %v1841 = vsel %vm208, %v1835, %v1837
  %v1842 = vsel %vm208, %v1833, %v1835
  %v1843 = vsel %vm208, %v1839, %v1833
  %v1844 = vmul.f32 %v1842, %v214
  %v1845 = vmul.f32 %v1841, %v215
  %v1846 = vmul.f32 %v1840, %v216
  %v1847 = vmul.f32 %v1843, %v217
  %v1848 = vadd.f32 %v1828, %v1844
  %v1849 = vadd.f32 %v1829, %v1845
  %v1850 = vadd.f32 %v1830, %v1846
  %v1851 = vadd.f32 %v1831, %v1847
  %v1852 = vmax.f32 %v1848, 0.0
  %v1853 = vmax.f32 %v1849, 0.0
  %v1854 = vmax.f32 %v1850, 0.0
  %v1855 = vmax.f32 %v1851, 0.0
  %v1856 = vadd.f32 %v1852, %v41
  %v1857 = vadd.f32 %v1853, %v42
  %v1858 = vadd.f32 %v1854, %v43
  %v1859 = vadd.f32 %v1855, %v44
  %1860 = vrot.lane.b32.xlu0 %v1856, 17
  %v1861 = vpop.permute.xlu0 %1860
  %1862 = vrot.lane.b32.xlu0 %v1857, 17
  %v1863 = vpop.permute.xlu0 %1862
  %1864 = vrot.lane.b32.xlu0 %v1858, 17
  %v1865 = vpop.permute.xlu0 %1864
  %1866 = vrot.lane.b32.xlu0 %v1859, 17
  %v1867 = vpop.permute.xlu0 %1866
  %v1868 = vsel %vm55, %v1865, %v1867
  %v1869 = vsel %vm55, %v1863, %v1865
  %v1870 = vsel %vm55, %v1861, %v1863
  %v1871 = vsel %vm55, %v1867, %v1861
  %v1872 = vmul.f32 %v1871, %v60
  %v1873 = vmul.f32 %v1870, %v61
  %v1874 = vmul.f32 %v1869, %v62
  %v1875 = vmul.f32 %v1868, %v63
  %1876 = vrot.lane.b32.xlu0 %v1856, 16
  %v1877 = vpop.permute.xlu0 %1876
  %1878 = vrot.lane.b32.xlu0 %v1857, 16
  %v1879 = vpop.permute.xlu0 %1878
  %1880 = vrot.lane.b32.xlu0 %v1858, 16
  %v1881 = vpop.permute.xlu0 %1880
  %1882 = vrot.lane.b32.xlu0 %v1859, 16
  %v1883 = vpop.permute.xlu0 %1882
  %v1884 = vsel %vm76, %v1881, %v1883
  %v1885 = vsel %vm76, %v1879, %v1881
  %v1886 = vsel %vm76, %v1877, %v1879
  %v1887 = vsel %vm76, %v1883, %v1877
  %v1888 = vmul.f32 %v1887, %v82
  %v1889 = vmul.f32 %v1886, %v83
  %v1890 = vmul.f32 %v1885, %v84
  %v1891 = vmul.f32 %v1884, %v85
  %1892 = vrot.lane.b32.xlu0 %v1856, 15
  %v1893 = vpop.permute.xlu0 %1892
  %1894 = vrot.lane.b32.xlu0 %v1857, 15
  %v1895 = vpop.permute.xlu0 %1894
  %1896 = vrot.lane.b32.xlu0 %v1858, 15
  %v1897 = vpop.permute.xlu0 %1896
  %1898 = vrot.lane.b32.xlu0 %v1859, 15
  %v1899 = vpop.permute.xlu0 %1898
  %v1900 = vsel %vm98, %v1897, %v1899
  %v1901 = vsel %vm98, %v1895, %v1897
  %v1902 = vsel %vm98, %v1893, %v1895
  %v1903 = vsel %vm98, %v1899, %v1893
  %v1904 = vmul.f32 %v1903, %v104
  %v1905 = vmul.f32 %v1902, %v105
  %v1906 = vmul.f32 %v1901, %v106
  %v1907 = vmul.f32 %v1900, %v107
  %1908 = vrot.lane.b32.xlu0 %v1856, 1
  %v1909 = vpop.permute.xlu0 %1908
  %1910 = vrot.lane.b32.xlu0 %v1857, 1
  %v1911 = vpop.permute.xlu0 %1910
  %1912 = vrot.lane.b32.xlu0 %v1858, 1
  %v1913 = vpop.permute.xlu0 %1912
  %1914 = vrot.lane.b32.xlu0 %v1859, 1
  %v1915 = vpop.permute.xlu0 %1914
  %v1916 = vsel %vm120, %v1913, %v1915
  %v1917 = vsel %vm120, %v1911, %v1913
  %v1918 = vsel %vm120, %v1909, %v1911
  %v1919 = vsel %vm120, %v1915, %v1909
  %v1920 = vmul.f32 %v1919, %v126
  %v1921 = vmul.f32 %v1918, %v127
  %v1922 = vmul.f32 %v1917, %v128
  %v1923 = vmul.f32 %v1916, %v129
  %1924 = vrot.lane.b32.xlu0 %v1856, 127
  %v1925 = vpop.permute.xlu0 %1924
  %1926 = vrot.lane.b32.xlu0 %v1857, 127
  %v1927 = vpop.permute.xlu0 %1926
  %1928 = vrot.lane.b32.xlu0 %v1858, 127
  %v1929 = vpop.permute.xlu0 %1928
  %1930 = vrot.lane.b32.xlu0 %v1859, 127
  %v1931 = vpop.permute.xlu0 %1930
  %v1932 = vsel %vm142, %v1929, %v1931
  %v1933 = vsel %vm142, %v1927, %v1929
  %v1934 = vsel %vm142, %v1925, %v1927
  %v1935 = vsel %vm142, %v1931, %v1925
  %v1936 = vmul.f32 %v1934, %v148
  %v1937 = vmul.f32 %v1933, %v149
  %v1938 = vmul.f32 %v1932, %v150
  %v1939 = vmul.f32 %v1935, %v151
  %1940 = vrot.lane.b32.xlu0 %v1856, 113
  %v1941 = vpop.permute.xlu0 %1940
  %1942 = vrot.lane.b32.xlu0 %v1857, 113
  %v1943 = vpop.permute.xlu0 %1942
  %1944 = vrot.lane.b32.xlu0 %v1858, 113
  %v1945 = vpop.permute.xlu0 %1944
  %1946 = vrot.lane.b32.xlu0 %v1859, 113
  %v1947 = vpop.permute.xlu0 %1946
  %v1948 = vsel %vm164, %v1945, %v1947
  %v1949 = vsel %vm164, %v1943, %v1945
  %v1950 = vsel %vm164, %v1941, %v1943
  %v1951 = vsel %vm164, %v1947, %v1941
  %v1952 = vmul.f32 %v1950, %v170
  %v1953 = vmul.f32 %v1949, %v171
  %v1954 = vmul.f32 %v1948, %v172
  %v1955 = vmul.f32 %v1951, %v173
  %1956 = vrot.lane.b32.xlu0 %v1856, 112
  %v1957 = vpop.permute.xlu0 %1956
  %1958 = vrot.lane.b32.xlu0 %v1857, 112
  %v1959 = vpop.permute.xlu0 %1958
  %1960 = vrot.lane.b32.xlu0 %v1858, 112
  %v1961 = vpop.permute.xlu0 %1960
  %1962 = vrot.lane.b32.xlu0 %v1859, 112
  %v1963 = vpop.permute.xlu0 %1962
  %v1964 = vsel %vm186, %v1961, %v1963
  %v1965 = vsel %vm186, %v1959, %v1961
  %v1966 = vsel %vm186, %v1957, %v1959
  %v1967 = vsel %vm186, %v1963, %v1957
  %v1968 = vmul.f32 %v1966, %v192
  %v1969 = vmul.f32 %v1965, %v193
  %v1970 = vmul.f32 %v1964, %v194
  %v1971 = vmul.f32 %v1967, %v195
  %1972 = vrot.lane.b32.xlu0 %v1856, 111
  %v1973 = vpop.permute.xlu0 %1972
  %1974 = vrot.lane.b32.xlu0 %v1857, 111
  %v1975 = vpop.permute.xlu0 %1974
  %1976 = vrot.lane.b32.xlu0 %v1858, 111
  %v1977 = vpop.permute.xlu0 %1976
  %1978 = vrot.lane.b32.xlu0 %v1859, 111
  %v1979 = vpop.permute.xlu0 %1978
  %v1980 = vsel %vm208, %v1977, %v1979
  %v1981 = vsel %vm208, %v1975, %v1977
  %v1982 = vsel %vm208, %v1973, %v1975
  %v1983 = vsel %vm208, %v1979, %v1973
  %v1984 = vmul.f32 %v1982, %v214
  %v1985 = vmul.f32 %v1981, %v215
  %v1986 = vmul.f32 %v1980, %v216
  %v1987 = vmul.f32 %v1983, %v217
  %1988 = vmatprep.subr.mxu0 0.0
  %1989 = vmatpush1.msra.mxu0 0.0
  %1990 = vmatprep.subr.mxu0 0.0
  %1991 = vmatpush1.msra.mxu0 0.0
  %1992 = vmatprep.subr.mxu0 0.0
  %1993 = vmatpush1.msra.mxu0 0.0
  %1994 = vmatprep.subr.mxu0 0.0
  %1995 = vmatpush1.msra.mxu0 0.0
  %1996 = vmatprep.subr.mxu0 0.0
  %1997 = vmatpush1.msra.mxu0 0.0
  %1998 = vmatprep.subr.mxu0 0.0
  %1999 = vmatpush1.msra.mxu0 0.0
  %2000 = vmatprep.subr.mxu0 0.0
  %2001 = vmatpush1.msra.mxu0 0.0
  %2002 = vmatprep.subr.mxu0 %v1985
  %2003 = vmatpush1.msra.mxu0 %v1984
  %2004 = vmatprep.subr.mxu0 %v1969
  %2005 = vmatpush1.msra.mxu0 %v1968
  %2006 = vmatprep.subr.mxu0 %v1953
  %2007 = vmatpush1.msra.mxu0 %v1952
  %2008 = vmatprep.subr.mxu0 %v1937
  %2009 = vmatpush1.msra.mxu0 %v1936
  %2010 = vmatprep.subr.mxu0 %v1857
  %2011 = vmatpush1.msra.mxu0 %v1856
  %2012 = vmatprep.subr.mxu0 %v1921
  %2013 = vmatpush1.msra.mxu0 %v1920
  %2014 = vmatprep.subr.mxu0 %v1905
  %2015 = vmatpush1.msra.mxu0 %v1904
  %2016 = vmatprep.subr.mxu0 %v1889
  %2017 = vmatpush1.msra.mxu0 %v1888
  %2018 = vmatprep.subr.mxu0 %v1873
  %2019 = vmatpush1.msra.mxu0 %v1872
  %2020 = vmatprep.subr.mxu0 0.0
  %2021 = vmatpush2.msra.mxu0 0.0
  %2022 = vmatprep.subr.mxu0 0.0
  %2023 = vmatpush2.msra.mxu0 0.0
  %2024 = vmatprep.subr.mxu0 0.0
  %2025 = vmatpush2.msra.mxu0 0.0
  %2026 = vmatprep.subr.mxu0 0.0
  %2027 = vmatpush2.msra.mxu0 0.0
  %2028 = vmatprep.subr.mxu0 0.0
  %2029 = vmatpush2.msra.mxu0 0.0
  %2030 = vmatprep.subr.mxu0 0.0
  %2031 = vmatpush2.msra.mxu0 0.0
  %2032 = vmatprep.subr.mxu0 0.0
  %2033 = vmatpush2.msra.mxu0 0.0
  %2034 = vmatprep.subr.mxu0 0.0
  %2035 = vmatpush2.msra.mxu0 0.0
  %2036 = vmatprep.subr.mxu0 0.0
  %2037 = vmatpush2.msra.mxu0 0.0
  %2038 = vmatprep.subr.mxu0 0.0
  %2039 = vmatpush2.msra.mxu0 0.0
  %2040 = vmatprep.subr.mxu0 0.0
  %2041 = vmatpush2.msra.mxu0 0.0
  %2042 = vmatprep.subr.mxu0 0.0
  %2043 = vmatpush2.msra.mxu0 0.0
  %2044 = vmatprep.subr.mxu0 0.0
  %2045 = vmatpush2.msra.mxu0 0.0
  %2046 = vmatprep.subr.mxu0 0.0
  %2047 = vmatpush2.msra.mxu0 0.0
  %2048 = vmatprep.subr.mxu0 0.0
  %2049 = vmatpush2.msra.mxu0 0.0
  %2050 = vmatprep.subr.mxu0 0.0
  %2051 = vmatpush2.msra.mxu0 0.0
  %2052 = vmatprep.mubr.f32.mxu0 0.0
  %2053 = vmatmul.mubr.f32.gmra.mxu0 %v264
  %v2054 = vpop.f32.mrf.mxu0
  %v2055 = vadd.f32 %v230, %v2054
  %v2056 = vpop.f32.mrf.mxu0
  %v2057 = vadd.f32 %v231, %v2056
  %2058 = vmatprep.mubr.f32.mxu0 0.0
  %2059 = vmatmul.mubr.f32.gmra.mxu0 %v267
  %v2060 = vpop.f32.mrf.mxu0
  %v2061 = vadd.f32 %v234, %v2060
  %v2062 = vpop.f32.mrf.mxu0
  %v2063 = vadd.f32 %v235, %v2062
  %2064 = vmatprep.mubr.f32.mxu0 0.0
  %2065 = vmatmul.mubr.f32.gmra.mxu0 %v270
  %v2066 = vpop.f32.mrf.mxu0
  %v2067 = vadd.f32 %v238, %v2066
  %v2068 = vpop.f32.mrf.mxu0
  %v2069 = vadd.f32 %v239, %v2068
  %2070 = vmatprep.mubr.f32.mxu0 0.0
  %2071 = vmatmul.mubr.f32.gmra.mxu0 %v273
  %v2072 = vpop.f32.mrf.mxu0
  %v2073 = vadd.f32 %v242, %v2072
  %v2074 = vpop.f32.mrf.mxu0
  %v2075 = vadd.f32 %v243, %v2074
  %2076 = vmatprep.mubr.f32.mxu0 0.0
  %2077 = vmatmul.mubr.f32.gmra.mxu0 %v276
  %v2078 = vpop.f32.mrf.mxu0
  %v2079 = vadd.f32 %v246, %v2078
  %v2080 = vpop.f32.mrf.mxu0
  %v2081 = vadd.f32 %v247, %v2080
  %2082 = vmatprep.mubr.f32.mxu0 0.0
  %2083 = vmatmul.mubr.f32.gmra.mxu0 %v279
  %v2084 = vpop.f32.mrf.mxu0
  %v2085 = vadd.f32 %v250, %v2084
  %v2086 = vpop.f32.mrf.mxu0
  %v2087 = vadd.f32 %v251, %v2086
  %2088 = vmatprep.mubr.f32.mxu0 0.0
  %2089 = vmatmul.mubr.f32.gmra.mxu0 %v282
  %v2090 = vpop.f32.mrf.mxu0
  %v2091 = vadd.f32 %v254, %v2090
  %v2092 = vpop.f32.mrf.mxu0
  %v2093 = vadd.f32 %v255, %v2092
  %2094 = vmatprep.mubr.f32.mxu0 0.0
  %2095 = vmatmul.mubr.f32.gmra.mxu0 %v285
  %v2096 = vpop.f32.mrf.mxu0
  %v2097 = vadd.f32 %v258, %v2096
  %v2098 = vpop.f32.mrf.mxu0
  %v2099 = vadd.f32 %v259, %v2098
  %2100 = vdwg.mxu0
  %2101 = vmatprep.subr.mxu0 0.0
  %2102 = vmatpush1.msra.mxu0 0.0
  %2103 = vmatprep.subr.mxu0 0.0
  %2104 = vmatpush1.msra.mxu0 0.0
  %2105 = vmatprep.subr.mxu0 0.0
  %2106 = vmatpush1.msra.mxu0 0.0
  %2107 = vmatprep.subr.mxu0 0.0
  %2108 = vmatpush1.msra.mxu0 0.0
  %2109 = vmatprep.subr.mxu0 0.0
  %2110 = vmatpush1.msra.mxu0 0.0
  %2111 = vmatprep.subr.mxu0 0.0
  %2112 = vmatpush1.msra.mxu0 0.0
  %2113 = vmatprep.subr.mxu0 0.0
  %2114 = vmatpush1.msra.mxu0 0.0
  %2115 = vmatprep.subr.mxu0 %v1987
  %2116 = vmatpush1.msra.mxu0 %v1986
  %2117 = vmatprep.subr.mxu0 %v1971
  %2118 = vmatpush1.msra.mxu0 %v1970
  %2119 = vmatprep.subr.mxu0 %v1955
  %2120 = vmatpush1.msra.mxu0 %v1954
  %2121 = vmatprep.subr.mxu0 %v1939
  %2122 = vmatpush1.msra.mxu0 %v1938
  %2123 = vmatprep.subr.mxu0 %v1859
  %2124 = vmatpush1.msra.mxu0 %v1858
  %2125 = vmatprep.subr.mxu0 %v1923
  %2126 = vmatpush1.msra.mxu0 %v1922
  %2127 = vmatprep.subr.mxu0 %v1907
  %2128 = vmatpush1.msra.mxu0 %v1906
  %2129 = vmatprep.subr.mxu0 %v1891
  %2130 = vmatpush1.msra.mxu0 %v1890
  %2131 = vmatprep.subr.mxu0 %v1875
  %2132 = vmatpush1.msra.mxu0 %v1874
  %2133 = vmatprep.subr.mxu0 0.0
  %2134 = vmatpush2.msra.mxu0 0.0
  %2135 = vmatprep.subr.mxu0 0.0
  %2136 = vmatpush2.msra.mxu0 0.0
  %2137 = vmatprep.subr.mxu0 0.0
  %2138 = vmatpush2.msra.mxu0 0.0
  %2139 = vmatprep.subr.mxu0 0.0
  %2140 = vmatpush2.msra.mxu0 0.0
  %2141 = vmatprep.subr.mxu0 0.0
  %2142 = vmatpush2.msra.mxu0 0.0
  %2143 = vmatprep.subr.mxu0 0.0
  %2144 = vmatpush2.msra.mxu0 0.0
  %2145 = vmatprep.subr.mxu0 0.0
  %2146 = vmatpush2.msra.mxu0 0.0
  %2147 = vmatprep.subr.mxu0 0.0
  %2148 = vmatpush2.msra.mxu0 0.0
  %2149 = vmatprep.subr.mxu0 0.0
  %2150 = vmatpush2.msra.mxu0 0.0
  %2151 = vmatprep.subr.mxu0 0.0
  %2152 = vmatpush2.msra.mxu0 0.0
  %2153 = vmatprep.subr.mxu0 0.0
  %2154 = vmatpush2.msra.mxu0 0.0
  %2155 = vmatprep.subr.mxu0 0.0
  %2156 = vmatpush2.msra.mxu0 0.0
  %2157 = vmatprep.subr.mxu0 0.0
  %2158 = vmatpush2.msra.mxu0 0.0
  %2159 = vmatprep.subr.mxu0 0.0
  %2160 = vmatpush2.msra.mxu0 0.0
  %2161 = vmatprep.subr.mxu0 0.0
  %2162 = vmatpush2.msra.mxu0 0.0
  %2163 = vmatprep.subr.mxu0 0.0
  %2164 = vmatpush2.msra.mxu0 0.0
  %2165 = vmatprep.mubr.f32.mxu0 0.0
  %2166 = vmatmul.mubr.f32.gmra.mxu0 %v264
  %v2167 = vpop.f32.mrf.mxu0
  %v2168 = vadd.f32 %v232, %v2167
  %v2169 = vpop.f32.mrf.mxu0
  %v2170 = vadd.f32 %v233, %v2169
  %2171 = vmatprep.mubr.f32.mxu0 0.0
  %2172 = vmatmul.mubr.f32.gmra.mxu0 %v267
  %v2173 = vpop.f32.mrf.mxu0
  %v2174 = vadd.f32 %v236, %v2173
  %v2175 = vpop.f32.mrf.mxu0
  %v2176 = vadd.f32 %v237, %v2175
  %2177 = vmatprep.mubr.f32.mxu0 0.0
  %2178 = vmatmul.mubr.f32.gmra.mxu0 %v270
  %v2179 = vpop.f32.mrf.mxu0
  %v2180 = vadd.f32 %v240, %v2179
  %v2181 = vpop.f32.mrf.mxu0
  %v2182 = vadd.f32 %v241, %v2181
  %2183 = vmatprep.mubr.f32.mxu0 0.0
  %2184 = vmatmul.mubr.f32.gmra.mxu0 %v273
  %v2185 = vpop.f32.mrf.mxu0
  %v2186 = vadd.f32 %v244, %v2185
  %v2187 = vpop.f32.mrf.mxu0
  %v2188 = vadd.f32 %v245, %v2187
  %2189 = vmatprep.mubr.f32.mxu0 0.0
  %2190 = vmatmul.mubr.f32.gmra.mxu0 %v276
  %v2191 = vpop.f32.mrf.mxu0
  %v2192 = vadd.f32 %v248, %v2191
  %v2193 = vpop.f32.mrf.mxu0
  %v2194 = vadd.f32 %v249, %v2193
  %2195 = vmatprep.mubr.f32.mxu0 0.0
  %2196 = vmatmul.mubr.f32.gmra.mxu0 %v279
  %v2197 = vpop.f32.mrf.mxu0
  %v2198 = vadd.f32 %v252, %v2197
  %v2199 = vpop.f32.mrf.mxu0
  %v2200 = vadd.f32 %v253, %v2199
  %2201 = vmatprep.mubr.f32.mxu0 0.0
  %2202 = vmatmul.mubr.f32.gmra.mxu0 %v282
  %v2203 = vpop.f32.mrf.mxu0
  %v2204 = vadd.f32 %v256, %v2203
  %v2205 = vpop.f32.mrf.mxu0
  %v2206 = vadd.f32 %v257, %v2205
  %2207 = vmatprep.mubr.f32.mxu0 0.0
  %2208 = vmatmul.mubr.f32.gmra.mxu0 %v285
  %v2209 = vpop.f32.mrf.mxu0
  %v2210 = vadd.f32 %v260, %v2209
  %v2211 = vpop.f32.mrf.mxu0
  %v2212 = vadd.f32 %v261, %v2211
  %2213 = vdwg.mxu0
  %v2214 = vmax.f32 %v2055, 0.0
  %v2215 = vmax.f32 %v2057, 0.0
  %v2216 = vmax.f32 %v2168, 0.0
  %v2217 = vmax.f32 %v2170, 0.0
  %v2218 = vmax.f32 %v2061, 0.0
  %v2219 = vmax.f32 %v2063, 0.0
  %v2220 = vmax.f32 %v2174, 0.0
  %v2221 = vmax.f32 %v2176, 0.0
  %v2222 = vmax.f32 %v2067, 0.0
  %v2223 = vmax.f32 %v2069, 0.0
  %v2224 = vmax.f32 %v2180, 0.0
  %v2225 = vmax.f32 %v2182, 0.0
  %v2226 = vmax.f32 %v2073, 0.0
  %v2227 = vmax.f32 %v2075, 0.0
  %v2228 = vmax.f32 %v2186, 0.0
  %v2229 = vmax.f32 %v2188, 0.0
  %v2230 = vmax.f32 %v2079, 0.0
  %v2231 = vmax.f32 %v2081, 0.0
  %v2232 = vmax.f32 %v2192, 0.0
  %v2233 = vmax.f32 %v2194, 0.0
  %v2234 = vmax.f32 %v2085, 0.0
  %v2235 = vmax.f32 %v2087, 0.0
  %v2236 = vmax.f32 %v2198, 0.0
  %v2237 = vmax.f32 %v2200, 0.0
  %v2238 = vmax.f32 %v2091, 0.0
  %v2239 = vmax.f32 %v2093, 0.0
  %v2240 = vmax.f32 %v2204, 0.0
  %v2241 = vmax.f32 %v2206, 0.0
  %v2242 = vmax.f32 %v2097, 0.0
  %v2243 = vmax.f32 %v2099, 0.0
  %v2244 = vmax.f32 %v2210, 0.0
  %v2245 = vmax.f32 %v2212, 0.0
  %2246 = vmatprep.subr.mxu0 0.0
  %2247 = vmatpush1.msra.mxu0 0.0
  %2248 = vmatprep.subr.mxu0 0.0
  %2249 = vmatpush1.msra.mxu0 0.0
  %2250 = vmatprep.subr.mxu0 0.0
  %2251 = vmatpush1.msra.mxu0 0.0
  %2252 = vmatprep.subr.mxu0 0.0
  %2253 = vmatpush1.msra.mxu0 0.0
  %2254 = vmatprep.subr.mxu0 0.0
  %2255 = vmatpush1.msra.mxu0 0.0
  %2256 = vmatprep.subr.mxu0 0.0
  %2257 = vmatpush1.msra.mxu0 0.0
  %2258 = vmatprep.subr.mxu0 0.0
  %2259 = vmatpush1.msra.mxu0 0.0
  %2260 = vmatprep.subr.mxu0 0.0
  %2261 = vmatpush1.msra.mxu0 0.0
  %2262 = vmatprep.subr.mxu0 %v2243
  %2263 = vmatpush1.msra.mxu0 %v2242
  %2264 = vmatprep.subr.mxu0 %v2239
  %2265 = vmatpush1.msra.mxu0 %v2238
  %2266 = vmatprep.subr.mxu0 %v2235
  %2267 = vmatpush1.msra.mxu0 %v2234
  %2268 = vmatprep.subr.mxu0 %v2231
  %2269 = vmatpush1.msra.mxu0 %v2230
  %2270 = vmatprep.subr.mxu0 %v2227
  %2271 = vmatpush1.msra.mxu0 %v2226
  %2272 = vmatprep.subr.mxu0 %v2223
  %2273 = vmatpush1.msra.mxu0 %v2222
  %2274 = vmatprep.subr.mxu0 %v2219
  %2275 = vmatpush1.msra.mxu0 %v2218
  %2276 = vmatprep.subr.mxu0 %v2215
  %2277 = vmatpush1.msra.mxu0 %v2214
  %2278 = vmatprep.subr.mxu0 0.0
  %2279 = vmatpush2.msra.mxu0 0.0
  %2280 = vmatprep.subr.mxu0 0.0
  %2281 = vmatpush2.msra.mxu0 0.0
  %2282 = vmatprep.subr.mxu0 0.0
  %2283 = vmatpush2.msra.mxu0 0.0
  %2284 = vmatprep.subr.mxu0 0.0
  %2285 = vmatpush2.msra.mxu0 0.0
  %2286 = vmatprep.subr.mxu0 0.0
  %2287 = vmatpush2.msra.mxu0 0.0
  %2288 = vmatprep.subr.mxu0 0.0
  %2289 = vmatpush2.msra.mxu0 0.0
  %2290 = vmatprep.subr.mxu0 0.0
  %2291 = vmatpush2.msra.mxu0 0.0
  %2292 = vmatprep.subr.mxu0 0.0
  %2293 = vmatpush2.msra.mxu0 0.0
  %2294 = vmatprep.subr.mxu0 0.0
  %2295 = vmatpush2.msra.mxu0 0.0
  %2296 = vmatprep.subr.mxu0 0.0
  %2297 = vmatpush2.msra.mxu0 0.0
  %2298 = vmatprep.subr.mxu0 0.0
  %2299 = vmatpush2.msra.mxu0 0.0
  %2300 = vmatprep.subr.mxu0 0.0
  %2301 = vmatpush2.msra.mxu0 0.0
  %2302 = vmatprep.subr.mxu0 0.0
  %2303 = vmatpush2.msra.mxu0 0.0
  %2304 = vmatprep.subr.mxu0 0.0
  %2305 = vmatpush2.msra.mxu0 0.0
  %2306 = vmatprep.subr.mxu0 0.0
  %2307 = vmatpush2.msra.mxu0 0.0
  %2308 = vmatprep.subr.mxu0 0.0
  %2309 = vmatpush2.msra.mxu0 0.0
  %2310 = vmatprep.mubr.f32.mxu0 0.0
  %2311 = vmatmul.mubr.f32.gmra.mxu0 %v1420
  %v2312 = vpop.f32.mrf.mxu0
  %v2313 = vadd.f32 0.0, %v2312
  %v2314 = vpop.f32.mrf.mxu0
  %v2315 = vadd.f32 0.0, %v2314
  %2316 = vmatprep.mubr.f32.mxu0 0.0
  %2317 = vmatmul.mubr.f32.gmra.mxu0 %v1423
  %v2318 = vpop.f32.mrf.mxu0
  %v2319 = vadd.f32 0.0, %v2318
  %v2320 = vpop.f32.mrf.mxu0
  %v2321 = vadd.f32 0.0, %v2320
  %2322 = vmatprep.mubr.f32.mxu0 0.0
  %2323 = vmatmul.mubr.f32.gmra.mxu0 %v1426
  %v2324 = vpop.f32.mrf.mxu0
  %v2325 = vadd.f32 0.0, %v2324
  %v2326 = vpop.f32.mrf.mxu0
  %v2327 = vadd.f32 0.0, %v2326
  %2328 = vmatprep.mubr.f32.mxu0 0.0
  %2329 = vmatmul.mubr.f32.gmra.mxu0 %v1429
  %v2330 = vpop.f32.mrf.mxu0
  %v2331 = vadd.f32 0.0, %v2330
  %v2332 = vpop.f32.mrf.mxu0
  %v2333 = vadd.f32 0.0, %v2332
  %2334 = vmatprep.mubr.f32.mxu0 0.0
  %2335 = vmatmul.mubr.f32.gmra.mxu0 %v1432
  %v2336 = vpop.f32.mrf.mxu0
  %v2337 = vadd.f32 0.0, %v2336
  %v2338 = vpop.f32.mrf.mxu0
  %v2339 = vadd.f32 0.0, %v2338
  %2340 = vmatprep.mubr.f32.mxu0 0.0
  %2341 = vmatmul.mubr.f32.gmra.mxu0 %v1435
  %v2342 = vpop.f32.mrf.mxu0
  %v2343 = vadd.f32 0.0, %v2342
  %v2344 = vpop.f32.mrf.mxu0
  %v2345 = vadd.f32 0.0, %v2344
  %2346 = vmatprep.mubr.f32.mxu0 0.0
  %2347 = vmatmul.mubr.f32.gmra.mxu0 %v1438
  %v2348 = vpop.f32.mrf.mxu0
  %v2349 = vadd.f32 0.0, %v2348
  %v2350 = vpop.f32.mrf.mxu0
  %v2351 = vadd.f32 0.0, %v2350
  %2352 = vmatprep.mubr.f32.mxu0 0.0
  %2353 = vmatmul.mubr.f32.gmra.mxu0 %v1441
  %v2354 = vpop.f32.mrf.mxu0
  %v2355 = vadd.f32 0.0, %v2354
  %v2356 = vpop.f32.mrf.mxu0
  %v2357 = vadd.f32 0.0, %v2356
  %2358 = vmatprep.mubr.f32.mxu0 0.0
  %2359 = vmatmul.mubr.f32.gmra.mxu0 %v1444
  %v2360 = vpop.f32.mrf.mxu0
  %v2361 = vadd.f32 0.0, %v2360
  %v2362 = vpop.f32.mrf.mxu0
  %v2363 = vadd.f32 0.0, %v2362
  %2364 = vdwg.mxu0
  %2365 = vmatprep.subr.mxu0 0.0
  %2366 = vmatpush1.msra.mxu0 0.0
  %2367 = vmatprep.subr.mxu0 0.0
  %2368 = vmatpush1.msra.mxu0 0.0
  %2369 = vmatprep.subr.mxu0 0.0
  %2370 = vmatpush1.msra.mxu0 0.0
  %2371 = vmatprep.subr.mxu0 0.0
  %2372 = vmatpush1.msra.mxu0 0.0
  %2373 = vmatprep.subr.mxu0 0.0
  %2374 = vmatpush1.msra.mxu0 0.0
  %2375 = vmatprep.subr.mxu0 0.0
  %2376 = vmatpush1.msra.mxu0 0.0
  %2377 = vmatprep.subr.mxu0 0.0
  %2378 = vmatpush1.msra.mxu0 0.0
  %2379 = vmatprep.subr.mxu0 0.0
  %2380 = vmatpush1.msra.mxu0 0.0
  %2381 = vmatprep.subr.mxu0 %v2245
  %2382 = vmatpush1.msra.mxu0 %v2244
  %2383 = vmatprep.subr.mxu0 %v2241
  %2384 = vmatpush1.msra.mxu0 %v2240
  %2385 = vmatprep.subr.mxu0 %v2237
  %2386 = vmatpush1.msra.mxu0 %v2236
  %2387 = vmatprep.subr.mxu0 %v2233
  %2388 = vmatpush1.msra.mxu0 %v2232
  %2389 = vmatprep.subr.mxu0 %v2229
  %2390 = vmatpush1.msra.mxu0 %v2228
  %2391 = vmatprep.subr.mxu0 %v2225
  %2392 = vmatpush1.msra.mxu0 %v2224
  %2393 = vmatprep.subr.mxu0 %v2221
  %2394 = vmatpush1.msra.mxu0 %v2220
  %2395 = vmatprep.subr.mxu0 %v2217
  %2396 = vmatpush1.msra.mxu0 %v2216
  %2397 = vmatprep.subr.mxu0 0.0
  %2398 = vmatpush2.msra.mxu0 0.0
  %2399 = vmatprep.subr.mxu0 0.0
  %2400 = vmatpush2.msra.mxu0 0.0
  %2401 = vmatprep.subr.mxu0 0.0
  %2402 = vmatpush2.msra.mxu0 0.0
  %2403 = vmatprep.subr.mxu0 0.0
  %2404 = vmatpush2.msra.mxu0 0.0
  %2405 = vmatprep.subr.mxu0 0.0
  %2406 = vmatpush2.msra.mxu0 0.0
  %2407 = vmatprep.subr.mxu0 0.0
  %2408 = vmatpush2.msra.mxu0 0.0
  %2409 = vmatprep.subr.mxu0 0.0
  %2410 = vmatpush2.msra.mxu0 0.0
  %2411 = vmatprep.subr.mxu0 0.0
  %2412 = vmatpush2.msra.mxu0 0.0
  %2413 = vmatprep.subr.mxu0 0.0
  %2414 = vmatpush2.msra.mxu0 0.0
  %2415 = vmatprep.subr.mxu0 0.0
  %2416 = vmatpush2.msra.mxu0 0.0
  %2417 = vmatprep.subr.mxu0 0.0
  %2418 = vmatpush2.msra.mxu0 0.0
  %2419 = vmatprep.subr.mxu0 0.0
  %2420 = vmatpush2.msra.mxu0 0.0
  %2421 = vmatprep.subr.mxu0 0.0
  %2422 = vmatpush2.msra.mxu0 0.0
  %2423 = vmatprep.subr.mxu0 0.0
  %2424 = vmatpush2.msra.mxu0 0.0
  %2425 = vmatprep.subr.mxu0 0.0
  %2426 = vmatpush2.msra.mxu0 0.0
  %2427 = vmatprep.subr.mxu0 0.0
  %2428 = vmatpush2.msra.mxu0 0.0
  %2429 = vmatprep.mubr.f32.mxu0 0.0
  %2430 = vmatmul.mubr.f32.gmra.mxu0 %v1420
  %v2431 = vpop.f32.mrf.mxu0
  %v2432 = vadd.f32 0.0, %v2431
  %v2433 = vpop.f32.mrf.mxu0
  %v2434 = vadd.f32 0.0, %v2433
  %2435 = vmatprep.mubr.f32.mxu0 0.0
  %2436 = vmatmul.mubr.f32.gmra.mxu0 %v1423
  %v2437 = vpop.f32.mrf.mxu0
  %v2438 = vadd.f32 0.0, %v2437
  %v2439 = vpop.f32.mrf.mxu0
  %v2440 = vadd.f32 0.0, %v2439
  %2441 = vmatprep.mubr.f32.mxu0 0.0
  %2442 = vmatmul.mubr.f32.gmra.mxu0 %v1426
  %v2443 = vpop.f32.mrf.mxu0
  %v2444 = vadd.f32 0.0, %v2443
  %v2445 = vpop.f32.mrf.mxu0
  %v2446 = vadd.f32 0.0, %v2445
  %2447 = vmatprep.mubr.f32.mxu0 0.0
  %2448 = vmatmul.mubr.f32.gmra.mxu0 %v1429
  %v2449 = vpop.f32.mrf.mxu0
  %v2450 = vadd.f32 0.0, %v2449
  %v2451 = vpop.f32.mrf.mxu0
  %v2452 = vadd.f32 0.0, %v2451
  %2453 = vmatprep.mubr.f32.mxu0 0.0
  %2454 = vmatmul.mubr.f32.gmra.mxu0 %v1432
  %v2455 = vpop.f32.mrf.mxu0
  %v2456 = vadd.f32 0.0, %v2455
  %v2457 = vpop.f32.mrf.mxu0
  %v2458 = vadd.f32 0.0, %v2457
  %2459 = vmatprep.mubr.f32.mxu0 0.0
  %2460 = vmatmul.mubr.f32.gmra.mxu0 %v1435
  %v2461 = vpop.f32.mrf.mxu0
  %v2462 = vadd.f32 0.0, %v2461
  %v2463 = vpop.f32.mrf.mxu0
  %v2464 = vadd.f32 0.0, %v2463
  %2465 = vmatprep.mubr.f32.mxu0 0.0
  %2466 = vmatmul.mubr.f32.gmra.mxu0 %v1438
  %v2467 = vpop.f32.mrf.mxu0
  %v2468 = vadd.f32 0.0, %v2467
  %v2469 = vpop.f32.mrf.mxu0
  %v2470 = vadd.f32 0.0, %v2469
  %2471 = vmatprep.mubr.f32.mxu0 0.0
  %2472 = vmatmul.mubr.f32.gmra.mxu0 %v1441
  %v2473 = vpop.f32.mrf.mxu0
  %v2474 = vadd.f32 0.0, %v2473
  %v2475 = vpop.f32.mrf.mxu0
  %v2476 = vadd.f32 0.0, %v2475
  %2477 = vmatprep.mubr.f32.mxu0 0.0
  %2478 = vmatmul.mubr.f32.gmra.mxu0 %v1444
  %v2479 = vpop.f32.mrf.mxu0
  %v2480 = vadd.f32 0.0, %v2479
  %v2481 = vpop.f32.mrf.mxu0
  %v2482 = vadd.f32 0.0, %v2481
  %2483 = vdwg.mxu0
  %2484 = vrot.lane.b32.xlu0 %v2313, 17
  %v2485 = vpop.permute.xlu0 %2484
  %2486 = vrot.lane.b32.xlu0 %v2315, 17
  %v2487 = vpop.permute.xlu0 %2486
  %2488 = vrot.lane.b32.xlu0 %v2432, 17
  %v2489 = vpop.permute.xlu0 %2488
  %2490 = vrot.lane.b32.xlu0 %v2434, 17
  %v2491 = vpop.permute.xlu0 %2490
  %v2492 = vsel %vm55, %v2489, %v2491
  %v2493 = vsel %vm55, %v2487, %v2489
  %v2494 = vsel %vm55, %v2485, %v2487
  %v2495 = vsel %vm55, %v2491, %v2485
  %v2496 = vmul.f32 %v2495, %v60
  %v2497 = vmul.f32 %v2494, %v61
  %v2498 = vmul.f32 %v2493, %v62
  %v2499 = vmul.f32 %v2492, %v63
  %v2500 = vadd.f32 %v1684, %v2496
  %v2501 = vadd.f32 %v1685, %v2497
  %v2502 = vadd.f32 %v1686, %v2498
  %v2503 = vadd.f32 %v1687, %v2499
  %2504 = vrot.lane.b32.xlu0 %v2319, 16
  %v2505 = vpop.permute.xlu0 %2504
  %2506 = vrot.lane.b32.xlu0 %v2321, 16
  %v2507 = vpop.permute.xlu0 %2506
  %2508 = vrot.lane.b32.xlu0 %v2438, 16
  %v2509 = vpop.permute.xlu0 %2508
  %2510 = vrot.lane.b32.xlu0 %v2440, 16
  %v2511 = vpop.permute.xlu0 %2510
  %v2512 = vsel %vm76, %v2509, %v2511
  %v2513 = vsel %vm76, %v2507, %v2509
  %v2514 = vsel %vm76, %v2505, %v2507
  %v2515 = vsel %vm76, %v2511, %v2505
  %v2516 = vmul.f32 %v2515, %v82
  %v2517 = vmul.f32 %v2514, %v83
  %v2518 = vmul.f32 %v2513, %v84
  %v2519 = vmul.f32 %v2512, %v85
  %v2520 = vadd.f32 %v2500, %v2516
  %v2521 = vadd.f32 %v2501, %v2517
  %v2522 = vadd.f32 %v2502, %v2518
  %v2523 = vadd.f32 %v2503, %v2519
  %2524 = vrot.lane.b32.xlu0 %v2325, 15
  %v2525 = vpop.permute.xlu0 %2524
  %2526 = vrot.lane.b32.xlu0 %v2327, 15
  %v2527 = vpop.permute.xlu0 %2526
  %2528 = vrot.lane.b32.xlu0 %v2444, 15
  %v2529 = vpop.permute.xlu0 %2528
  %2530 = vrot.lane.b32.xlu0 %v2446, 15
  %v2531 = vpop.permute.xlu0 %2530
  %v2532 = vsel %vm98, %v2529, %v2531
  %v2533 = vsel %vm98, %v2527, %v2529
  %v2534 = vsel %vm98, %v2525, %v2527
  %v2535 = vsel %vm98, %v2531, %v2525
  %v2536 = vmul.f32 %v2535, %v104
  %v2537 = vmul.f32 %v2534, %v105
  %v2538 = vmul.f32 %v2533, %v106
  %v2539 = vmul.f32 %v2532, %v107
  %v2540 = vadd.f32 %v2520, %v2536
  %v2541 = vadd.f32 %v2521, %v2537
  %v2542 = vadd.f32 %v2522, %v2538
  %v2543 = vadd.f32 %v2523, %v2539
  %2544 = vrot.lane.b32.xlu0 %v2331, 1
  %v2545 = vpop.permute.xlu0 %2544
  %2546 = vrot.lane.b32.xlu0 %v2333, 1
  %v2547 = vpop.permute.xlu0 %2546
  %2548 = vrot.lane.b32.xlu0 %v2450, 1
  %v2549 = vpop.permute.xlu0 %2548
  %2550 = vrot.lane.b32.xlu0 %v2452, 1
  %v2551 = vpop.permute.xlu0 %2550
  %v2552 = vsel %vm120, %v2549, %v2551
  %v2553 = vsel %vm120, %v2547, %v2549
  %v2554 = vsel %vm120, %v2545, %v2547
  %v2555 = vsel %vm120, %v2551, %v2545
  %v2556 = vmul.f32 %v2555, %v126
  %v2557 = vmul.f32 %v2554, %v127
  %v2558 = vmul.f32 %v2553, %v128
  %v2559 = vmul.f32 %v2552, %v129
  %v2560 = vadd.f32 %v2540, %v2556
  %v2561 = vadd.f32 %v2541, %v2557
  %v2562 = vadd.f32 %v2542, %v2558
  %v2563 = vadd.f32 %v2543, %v2559
  %v2564 = vadd.f32 %v2560, %v2337
  %v2565 = vadd.f32 %v2561, %v2339
  %v2566 = vadd.f32 %v2562, %v2456
  %v2567 = vadd.f32 %v2563, %v2458
  %2568 = vrot.lane.b32.xlu0 %v2343, 127
  %v2569 = vpop.permute.xlu0 %2568
  %2570 = vrot.lane.b32.xlu0 %v2345, 127
  %v2571 = vpop.permute.xlu0 %2570
  %2572 = vrot.lane.b32.xlu0 %v2462, 127
  %v2573 = vpop.permute.xlu0 %2572
  %2574 = vrot.lane.b32.xlu0 %v2464, 127
  %v2575 = vpop.permute.xlu0 %2574
  %v2576 = vsel %vm142, %v2573, %v2575
  %v2577 = vsel %vm142, %v2571, %v2573
  %v2578 = vsel %vm142, %v2569, %v2571
  %v2579 = vsel %vm142, %v2575, %v2569
  %v2580 = vmul.f32 %v2578, %v148
  %v2581 = vmul.f32 %v2577, %v149
  %v2582 = vmul.f32 %v2576, %v150
  %v2583 = vmul.f32 %v2579, %v151
  %v2584 = vadd.f32 %v2564, %v2580
  %v2585 = vadd.f32 %v2565, %v2581
  %v2586 = vadd.f32 %v2566, %v2582
  %v2587 = vadd.f32 %v2567, %v2583
  %2588 = vrot.lane.b32.xlu0 %v2349, 113
  %v2589 = vpop.permute.xlu0 %2588
  %2590 = vrot.lane.b32.xlu0 %v2351, 113
  %v2591 = vpop.permute.xlu0 %2590
  %2592 = vrot.lane.b32.xlu0 %v2468, 113
  %v2593 = vpop.permute.xlu0 %2592
  %2594 = vrot.lane.b32.xlu0 %v2470, 113
  %v2595 = vpop.permute.xlu0 %2594
  %v2596 = vsel %vm164, %v2593, %v2595
  %v2597 = vsel %vm164, %v2591, %v2593
  %v2598 = vsel %vm164, %v2589, %v2591
  %v2599 = vsel %vm164, %v2595, %v2589
  %v2600 = vmul.f32 %v2598, %v170
  %v2601 = vmul.f32 %v2597, %v171
  %v2602 = vmul.f32 %v2596, %v172
  %v2603 = vmul.f32 %v2599, %v173
  %v2604 = vadd.f32 %v2584, %v2600
  %v2605 = vadd.f32 %v2585, %v2601
  %v2606 = vadd.f32 %v2586, %v2602
  %v2607 = vadd.f32 %v2587, %v2603
  %2608 = vrot.lane.b32.xlu0 %v2355, 112
  %v2609 = vpop.permute.xlu0 %2608
  %2610 = vrot.lane.b32.xlu0 %v2357, 112
  %v2611 = vpop.permute.xlu0 %2610
  %2612 = vrot.lane.b32.xlu0 %v2474, 112
  %v2613 = vpop.permute.xlu0 %2612
  %2614 = vrot.lane.b32.xlu0 %v2476, 112
  %v2615 = vpop.permute.xlu0 %2614
  %v2616 = vsel %vm186, %v2613, %v2615
  %v2617 = vsel %vm186, %v2611, %v2613
  %v2618 = vsel %vm186, %v2609, %v2611
  %v2619 = vsel %vm186, %v2615, %v2609
  %v2620 = vmul.f32 %v2618, %v192
  %v2621 = vmul.f32 %v2617, %v193
  %v2622 = vmul.f32 %v2616, %v194
  %v2623 = vmul.f32 %v2619, %v195
  %v2624 = vadd.f32 %v2604, %v2620
  %v2625 = vadd.f32 %v2605, %v2621
  %v2626 = vadd.f32 %v2606, %v2622
  %v2627 = vadd.f32 %v2607, %v2623
  %2628 = vrot.lane.b32.xlu0 %v2361, 111
  %v2629 = vpop.permute.xlu0 %2628
  %2630 = vrot.lane.b32.xlu0 %v2363, 111
  %v2631 = vpop.permute.xlu0 %2630
  %2632 = vrot.lane.b32.xlu0 %v2480, 111
  %v2633 = vpop.permute.xlu0 %2632
  %2634 = vrot.lane.b32.xlu0 %v2482, 111
  %v2635 = vpop.permute.xlu0 %2634
  %v2636 = vsel %vm208, %v2633, %v2635
  %v2637 = vsel %vm208, %v2631, %v2633
  %v2638 = vsel %vm208, %v2629, %v2631
  %v2639 = vsel %vm208, %v2635, %v2629
  %v2640 = vmul.f32 %v2638, %v214
  %v2641 = vmul.f32 %v2637, %v215
  %v2642 = vmul.f32 %v2636, %v216
  %v2643 = vmul.f32 %v2639, %v217
  %v2644 = vadd.f32 %v2624, %v2640
  %v2645 = vadd.f32 %v2625, %v2641
  %v2646 = vadd.f32 %v2626, %v2642
  %v2647 = vadd.f32 %v2627, %v2643
  %v2648 = vmax.f32 %v2644, 0.0
  %v2649 = vmax.f32 %v2645, 0.0
  %v2650 = vmax.f32 %v2646, 0.0
  %v2651 = vmax.f32 %v2647, 0.0
  %v2652 = vadd.f32 %v2648, %v41
  %v2653 = vadd.f32 %v2649, %v42
  %v2654 = vadd.f32 %v2650, %v43
  %v2655 = vadd.f32 %v2651, %v44
  %2656 = vrot.lane.b32.xlu0 %v2652, 17
  %v2657 = vpop.permute.xlu0 %2656
  %2658 = vrot.lane.b32.xlu0 %v2653, 17
  %v2659 = vpop.permute.xlu0 %2658
  %2660 = vrot.lane.b32.xlu0 %v2654, 17
  %v2661 = vpop.permute.xlu0 %2660
  %2662 = vrot.lane.b32.xlu0 %v2655, 17
  %v2663 = vpop.permute.xlu0 %2662
  %v2664 = vsel %vm55, %v2661, %v2663
  %v2665 = vsel %vm55, %v2659, %v2661
  %v2666 = vsel %vm55, %v2657, %v2659
  %v2667 = vsel %vm55, %v2663, %v2657
  %v2668 = vmul.f32 %v2667, %v60
  %v2669 = vmul.f32 %v2666, %v61
  %v2670 = vmul.f32 %v2665, %v62
  %v2671 = vmul.f32 %v2664, %v63
  %2672 = vrot.lane.b32.xlu0 %v2652, 16
  %v2673 = vpop.permute.xlu0 %2672
  %2674 = vrot.lane.b32.xlu0 %v2653, 16
  %v2675 = vpop.permute.xlu0 %2674
  %2676 = vrot.lane.b32.xlu0 %v2654, 16
  %v2677 = vpop.permute.xlu0 %2676
  %2678 = vrot.lane.b32.xlu0 %v2655, 16
  %v2679 = vpop.permute.xlu0 %2678
  %v2680 = vsel %vm76, %v2677, %v2679
  %v2681 = vsel %vm76, %v2675, %v2677
  %v2682 = vsel %vm76, %v2673, %v2675
  %v2683 = vsel %vm76, %v2679, %v2673
  %v2684 = vmul.f32 %v2683, %v82
  %v2685 = vmul.f32 %v2682, %v83
  %v2686 = vmul.f32 %v2681, %v84
  %v2687 = vmul.f32 %v2680, %v85
  %2688 = vrot.lane.b32.xlu0 %v2652, 15
  %v2689 = vpop.permute.xlu0 %2688
  %2690 = vrot.lane.b32.xlu0 %v2653, 15
  %v2691 = vpop.permute.xlu0 %2690
  %2692 = vrot.lane.b32.xlu0 %v2654, 15
  %v2693 = vpop.permute.xlu0 %2692
  %2694 = vrot.lane.b32.xlu0 %v2655, 15
  %v2695 = vpop.permute.xlu0 %2694
  %v2696 = vsel %vm98, %v2693, %v2695
  %v2697 = vsel %vm98, %v2691, %v2693
  %v2698 = vsel %vm98, %v2689, %v2691
  %v2699 = vsel %vm98, %v2695, %v2689
  %v2700 = vmul.f32 %v2699, %v104
  %v2701 = vmul.f32 %v2698, %v105
  %v2702 = vmul.f32 %v2697, %v106
  %v2703 = vmul.f32 %v2696, %v107
  %2704 = vrot.lane.b32.xlu0 %v2652, 1
  %v2705 = vpop.permute.xlu0 %2704
  %2706 = vrot.lane.b32.xlu0 %v2653, 1
  %v2707 = vpop.permute.xlu0 %2706
  %2708 = vrot.lane.b32.xlu0 %v2654, 1
  %v2709 = vpop.permute.xlu0 %2708
  %2710 = vrot.lane.b32.xlu0 %v2655, 1
  %v2711 = vpop.permute.xlu0 %2710
  %v2712 = vsel %vm120, %v2709, %v2711
  %v2713 = vsel %vm120, %v2707, %v2709
  %v2714 = vsel %vm120, %v2705, %v2707
  %v2715 = vsel %vm120, %v2711, %v2705
  %v2716 = vmul.f32 %v2715, %v126
  %v2717 = vmul.f32 %v2714, %v127
  %v2718 = vmul.f32 %v2713, %v128
  %v2719 = vmul.f32 %v2712, %v129
  %2720 = vrot.lane.b32.xlu0 %v2652, 127
  %v2721 = vpop.permute.xlu0 %2720
  %2722 = vrot.lane.b32.xlu0 %v2653, 127
  %v2723 = vpop.permute.xlu0 %2722
  %2724 = vrot.lane.b32.xlu0 %v2654, 127
  %v2725 = vpop.permute.xlu0 %2724
  %2726 = vrot.lane.b32.xlu0 %v2655, 127
  %v2727 = vpop.permute.xlu0 %2726
  %v2728 = vsel %vm142, %v2725, %v2727
  %v2729 = vsel %vm142, %v2723, %v2725
  %v2730 = vsel %vm142, %v2721, %v2723
  %v2731 = vsel %vm142, %v2727, %v2721
  %v2732 = vmul.f32 %v2730, %v148
  %v2733 = vmul.f32 %v2729, %v149
  %v2734 = vmul.f32 %v2728, %v150
  %v2735 = vmul.f32 %v2731, %v151
  %2736 = vrot.lane.b32.xlu0 %v2652, 113
  %v2737 = vpop.permute.xlu0 %2736
  %2738 = vrot.lane.b32.xlu0 %v2653, 113
  %v2739 = vpop.permute.xlu0 %2738
  %2740 = vrot.lane.b32.xlu0 %v2654, 113
  %v2741 = vpop.permute.xlu0 %2740
  %2742 = vrot.lane.b32.xlu0 %v2655, 113
  %v2743 = vpop.permute.xlu0 %2742
  %v2744 = vsel %vm164, %v2741, %v2743
  %v2745 = vsel %vm164, %v2739, %v2741
  %v2746 = vsel %vm164, %v2737, %v2739
  %v2747 = vsel %vm164, %v2743, %v2737
  %v2748 = vmul.f32 %v2746, %v170
  %v2749 = vmul.f32 %v2745, %v171
  %v2750 = vmul.f32 %v2744, %v172
  %v2751 = vmul.f32 %v2747, %v173
  %2752 = vrot.lane.b32.xlu0 %v2652, 112
  %v2753 = vpop.permute.xlu0 %2752
  %2754 = vrot.lane.b32.xlu0 %v2653, 112
  %v2755 = vpop.permute.xlu0 %2754
  %2756 = vrot.lane.b32.xlu0 %v2654, 112
  %v2757 = vpop.permute.xlu0 %2756
  %2758 = vrot.lane.b32.xlu0 %v2655, 112
  %v2759 = vpop.permute.xlu0 %2758
  %v2760 = vsel %vm186, %v2757, %v2759
  %v2761 = vsel %vm186, %v2755, %v2757
  %v2762 = vsel %vm186, %v2753, %v2755
  %v2763 = vsel %vm186, %v2759, %v2753
  %v2764 = vmul.f32 %v2762, %v192
  %v2765 = vmul.f32 %v2761, %v193
  %v2766 = vmul.f32 %v2760, %v194
  %v2767 = vmul.f32 %v2763, %v195
  %2768 = vrot.lane.b32.xlu0 %v2652, 111
  %v2769 = vpop.permute.xlu0 %2768
  %2770 = vrot.lane.b32.xlu0 %v2653, 111
  %v2771 = vpop.permute.xlu0 %2770
  %2772 = vrot.lane.b32.xlu0 %v2654, 111
  %v2773 = vpop.permute.xlu0 %2772
  %2774 = vrot.lane.b32.xlu0 %v2655, 111
  %v2775 = vpop.permute.xlu0 %2774
  %v2776 = vsel %vm208, %v2773, %v2775
  %v2777 = vsel %vm208, %v2771, %v2773
  %v2778 = vsel %vm208, %v2769, %v2771
  %v2779 = vsel %vm208, %v2775, %v2769
  %v2780 = vmul.f32 %v2778, %v214
  %v2781 = vmul.f32 %v2777, %v215
  %v2782 = vmul.f32 %v2776, %v216
  %v2783 = vmul.f32 %v2779, %v217
  %v2784 = vld [vmem:[%s8] sm:$0xff]
  %v2785 = vld [vmem:[%s9] sm:$0xff]
  %v2786 = vld [vmem:[%s9 + $0x8] sm:$0xff]
  %v2787 = vld [vmem:[%s9 + $0x10] sm:$0xff]
  %v2788 = vld [vmem:[%s9 + $0x18] sm:$0xff]
  %v2790 = vsel %vm262, %v2784, 0
  %2792 = vmatprep.subr.mxu0 0.0
  %2793 = vmatpush1.msra.mxu0 0.0
  %2794 = vmatprep.subr.mxu0 0.0
  %2795 = vmatpush1.msra.mxu0 0.0
  %2796 = vmatprep.subr.mxu0 0.0
  %2797 = vmatpush1.msra.mxu0 0.0
  %2798 = vmatprep.subr.mxu0 0.0
  %2799 = vmatpush1.msra.mxu0 0.0
  %2800 = vmatprep.subr.mxu0 0.0
  %2801 = vmatpush1.msra.mxu0 0.0
  %2802 = vmatprep.subr.mxu0 0.0
  %2803 = vmatpush1.msra.mxu0 0.0
  %2804 = vmatprep.subr.mxu0 0.0
  %2805 = vmatpush1.msra.mxu0 0.0
  %2806 = vmatprep.subr.mxu0 %v2781
  %2807 = vmatpush1.msra.mxu0 %v2780
  %2808 = vmatprep.subr.mxu0 %v2765
  %2809 = vmatpush1.msra.mxu0 %v2764
  %2810 = vmatprep.subr.mxu0 %v2749
  %2811 = vmatpush1.msra.mxu0 %v2748
  %2812 = vmatprep.subr.mxu0 %v2733
  %2813 = vmatpush1.msra.mxu0 %v2732
  %2814 = vmatprep.subr.mxu0 %v2653
  %2815 = vmatpush1.msra.mxu0 %v2652
  %2816 = vmatprep.subr.mxu0 %v2717
  %2817 = vmatpush1.msra.mxu0 %v2716
  %2818 = vmatprep.subr.mxu0 %v2701
  %2819 = vmatpush1.msra.mxu0 %v2700
  %2820 = vmatprep.subr.mxu0 %v2685
  %2821 = vmatpush1.msra.mxu0 %v2684
  %2822 = vmatprep.subr.mxu0 %v2669
  %2823 = vmatpush1.msra.mxu0 %v2668
  %2824 = vmatprep.subr.mxu0 0.0
  %2825 = vmatpush2.msra.mxu0 0.0
  %2826 = vmatprep.subr.mxu0 0.0
  %2827 = vmatpush2.msra.mxu0 0.0
  %2828 = vmatprep.subr.mxu0 0.0
  %2829 = vmatpush2.msra.mxu0 0.0
  %2830 = vmatprep.subr.mxu0 0.0
  %2831 = vmatpush2.msra.mxu0 0.0
  %2832 = vmatprep.subr.mxu0 0.0
  %2833 = vmatpush2.msra.mxu0 0.0
  %2834 = vmatprep.subr.mxu0 0.0
  %2835 = vmatpush2.msra.mxu0 0.0
  %2836 = vmatprep.subr.mxu0 0.0
  %2837 = vmatpush2.msra.mxu0 0.0
  %2838 = vmatprep.subr.mxu0 0.0
  %2839 = vmatpush2.msra.mxu0 0.0
  %2840 = vmatprep.subr.mxu0 0.0
  %2841 = vmatpush2.msra.mxu0 0.0
  %2842 = vmatprep.subr.mxu0 0.0
  %2843 = vmatpush2.msra.mxu0 0.0
  %2844 = vmatprep.subr.mxu0 0.0
  %2845 = vmatpush2.msra.mxu0 0.0
  %2846 = vmatprep.subr.mxu0 0.0
  %2847 = vmatpush2.msra.mxu0 0.0
  %2848 = vmatprep.subr.mxu0 0.0
  %2849 = vmatpush2.msra.mxu0 0.0
  %2850 = vmatprep.subr.mxu0 0.0
  %2851 = vmatpush2.msra.mxu0 0.0
  %2852 = vmatprep.subr.mxu0 0.0
  %2853 = vmatpush2.msra.mxu0 0.0
  %2854 = vmatprep.subr.mxu0 0.0
  %2855 = vmatpush2.msra.mxu0 0.0
  %2856 = vmatprep.mubr.f32.mxu0 0.0
  %2857 = vmatmul.mubr.f32.gmra.mxu0 %v2790
  %v2858 = vpop.f32.mrf.mxu0
  %v2859 = vadd.f32 %v2785, %v2858
  %v2860 = vpop.f32.mrf.mxu0
  %v2861 = vadd.f32 %v2786, %v2860
  %2862 = vdwg.mxu0
  %2863 = vmatprep.subr.mxu0 0.0
  %2864 = vmatpush1.msra.mxu0 0.0
  %2865 = vmatprep.subr.mxu0 0.0
  %2866 = vmatpush1.msra.mxu0 0.0
  %2867 = vmatprep.subr.mxu0 0.0
  %2868 = vmatpush1.msra.mxu0 0.0
  %2869 = vmatprep.subr.mxu0 0.0
  %2870 = vmatpush1.msra.mxu0 0.0
  %2871 = vmatprep.subr.mxu0 0.0
  %2872 = vmatpush1.msra.mxu0 0.0
  %2873 = vmatprep.subr.mxu0 0.0
  %2874 = vmatpush1.msra.mxu0 0.0
  %2875 = vmatprep.subr.mxu0 0.0
  %2876 = vmatpush1.msra.mxu0 0.0
  %2877 = vmatprep.subr.mxu0 %v2783
  %2878 = vmatpush1.msra.mxu0 %v2782
  %2879 = vmatprep.subr.mxu0 %v2767
  %2880 = vmatpush1.msra.mxu0 %v2766
  %2881 = vmatprep.subr.mxu0 %v2751
  %2882 = vmatpush1.msra.mxu0 %v2750
  %2883 = vmatprep.subr.mxu0 %v2735
  %2884 = vmatpush1.msra.mxu0 %v2734
  %2885 = vmatprep.subr.mxu0 %v2655
  %2886 = vmatpush1.msra.mxu0 %v2654
  %2887 = vmatprep.subr.mxu0 %v2719
  %2888 = vmatpush1.msra.mxu0 %v2718
  %2889 = vmatprep.subr.mxu0 %v2703
  %2890 = vmatpush1.msra.mxu0 %v2702
  %2891 = vmatprep.subr.mxu0 %v2687
  %2892 = vmatpush1.msra.mxu0 %v2686
  %2893 = vmatprep.subr.mxu0 %v2671
  %2894 = vmatpush1.msra.mxu0 %v2670
  %2895 = vmatprep.subr.mxu0 0.0
  %2896 = vmatpush2.msra.mxu0 0.0
  %2897 = vmatprep.subr.mxu0 0.0
  %2898 = vmatpush2.msra.mxu0 0.0
  %2899 = vmatprep.subr.mxu0 0.0
  %2900 = vmatpush2.msra.mxu0 0.0
  %2901 = vmatprep.subr.mxu0 0.0
  %2902 = vmatpush2.msra.mxu0 0.0
  %2903 = vmatprep.subr.mxu0 0.0
  %2904 = vmatpush2.msra.mxu0 0.0
  %2905 = vmatprep.subr.mxu0 0.0
  %2906 = vmatpush2.msra.mxu0 0.0
  %2907 = vmatprep.subr.mxu0 0.0
  %2908 = vmatpush2.msra.mxu0 0.0
  %2909 = vmatprep.subr.mxu0 0.0
  %2910 = vmatpush2.msra.mxu0 0.0
  %2911 = vmatprep.subr.mxu0 0.0
  %2912 = vmatpush2.msra.mxu0 0.0
  %2913 = vmatprep.subr.mxu0 0.0
  %2914 = vmatpush2.msra.mxu0 0.0
  %2915 = vmatprep.subr.mxu0 0.0
  %2916 = vmatpush2.msra.mxu0 0.0
  %2917 = vmatprep.subr.mxu0 0.0
  %2918 = vmatpush2.msra.mxu0 0.0
  %2919 = vmatprep.subr.mxu0 0.0
  %2920 = vmatpush2.msra.mxu0 0.0
  %2921 = vmatprep.subr.mxu0 0.0
  %2922 = vmatpush2.msra.mxu0 0.0
  %2923 = vmatprep.subr.mxu0 0.0
  %2924 = vmatpush2.msra.mxu0 0.0
  %2925 = vmatprep.subr.mxu0 0.0
  %2926 = vmatpush2.msra.mxu0 0.0
  %2927 = vmatprep.mubr.f32.mxu0 0.0
  %2928 = vmatmul.mubr.f32.gmra.mxu0 %v2790
  %v2929 = vpop.f32.mrf.mxu0
  %v2930 = vadd.f32 %v2787, %v2929
  %v2931 = vpop.f32.mrf.mxu0
  %v2932 = vadd.f32 %v2788, %v2931
  %2933 = vdwg.mxu0
  %2934 = vst [vmem:[%s12] sm:$0xff] %v2859
  %2935 = vst [vmem:[%s12 + $0x8] sm:$0xff] %v2861
  %2936 = vst [vmem:[%s12 + $0x10] sm:$0xff] %v2930
  %2937 = vst [vmem:[%s12 + $0x18] sm:$0xff] %v2932
  // Predicated region
  $region50: #{attention_forward.1} parent=0 // pred_check
    _
  $region51: #{attention_forward.1} parent=0 // pred_check_branch
    %2939 = sbr.rel (0) target = $region53
  $region52: #{attention_forward.1} parent=0 // pred_region
    _
  $region53: #{attention_forward.1} parent=0 // pred_fallthru
    _
  // Predicated region
  $region54: #{attention_forward.1} parent=0 // pred_check
    _
  $region55: #{attention_forward.1} parent=0 // pred_check_branch
    %2941 = sbr.rel (0) target = $region57
  $region56: #{attention_forward.1} parent=0 // pred_region
    _
  $region57: #{attention_forward.1} parent=0 // pred_fallthru
    _

</llo_original>
